<compile_context>
chip_gen: v6e
topology: v6e:2x2x1
jax: 0.10.0
libtpu: 0.0.40
codegen_flags: <defaults>
</compile_context>

<pallas_src>
import jax
import jax.numpy as jnp
from jax.experimental import pallas as pl
from jax.experimental.pallas import tpu as pltpu

# ----------------------------- small synthetic BERT config -------------------------
BATCH = 2
SEQ = 8
HIDDEN = 32
NUM_HEADS = 4
HEAD_DIM = HIDDEN // NUM_HEADS
INTERMEDIATE = 64
NUM_LAYERS = 2
VOCAB = 64
MAX_POS = 32
LN_EPS = 1e-12
TOKENS = BATCH * SEQ


# --------------------------------- kernel helpers ----------------------------------
def _ln(x, g, b):
    mu = jnp.mean(x, axis=-1, keepdims=True)
    var = jnp.mean(jnp.square(x - mu), axis=-1, keepdims=True)
    return (x - mu) * jax.lax.rsqrt(var + LN_EPS) * g + b


def _forward_logits(
    h0_ref, bias_ref,
    embg_ref, embb_ref,
    wqkv_ref, bqkv_ref, wo_ref, bo_ref, ln1g_ref, ln1b_ref,
    w1_ref, b1_ref, w2_ref, b2_ref, ln2g_ref, ln2b_ref,
    cw_ref, cb_ref,
    ctx_s,
):
    """Shared fused forward: embedding LN -> NUM_LAYERS encoder layers -> logits.

    Everything stays resident in VMEM; layer weights are stacked on a leading
    layer axis and indexed statically (loop is unrolled at trace time).
    """
    # Embedding LayerNorm (folded into the fused kernel — no standalone launch).
    h = _ln(h0_ref[...], embg_ref[...], embb_ref[...])           # (T, H)
    bias = bias_ref[...]                                         # (B, S, S) additive
    scale = 1.0 / float(HEAD_DIM) ** 0.5

    for l in range(NUM_LAYERS):
        # Fused Q|K|V projection: a single (T,H)x(H,3H) MXU push for all tokens.
        qkv = (
            jnp.dot(h, wqkv_ref[l], preferred_element_type=jnp.float32)
            + bqkv_ref[l]
        )                                                        # (T, 3H)

        # Per-head attention, batched over the batch axis (no explicit k.T).
        for hd in range(NUM_HEADS):
            lo = hd * HEAD_DIM
            q = qkv[:, lo:lo + HEAD_DIM].reshape(BATCH, SEQ, HEAD_DIM)
            k = qkv[:, HIDDEN + lo:HIDDEN + lo + HEAD_DIM].reshape(
                BATCH, SEQ, HEAD_DIM)
            v = qkv[:, 2 * HIDDEN + lo:2 * HIDDEN + lo + HEAD_DIM].reshape(
                BATCH, SEQ, HEAD_DIM)
            s = (
                jnp.einsum("bqd,bkd->bqk", q, k,
                           preferred_element_type=jnp.float32) * scale
                + bias
            )                                                    # (B, S, S)
            m = jnp.max(s, axis=-1, keepdims=True)
            p = jnp.exp(s - m)
            p = p / jnp.sum(p, axis=-1, keepdims=True)           # exact softmax
            ctx_s[:, lo:lo + HEAD_DIM] = jnp.einsum(
                "bqk,bkd->bqd", p, v, preferred_element_type=jnp.float32
            ).reshape(TOKENS, HEAD_DIM)

        # Output projection + residual + LN1.
        attn_out = (
            jnp.dot(ctx_s[...], wo_ref[l], preferred_element_type=jnp.float32)
            + bo_ref[l]
        )
        h1 = _ln(attn_out + h, ln1g_ref[l], ln1b_ref[l])

        # FFN (up + GELU + down) + residual + LN2.
        # TODO(synk): HF BERT uses exact (erf) GELU; tanh approximation kept for
        #             Mosaic-safe lowering (small numeric drift vs PyTorch).
        ffn = jax.nn.gelu(
            jnp.dot(h1, w1_ref[l], preferred_element_type=jnp.float32) + b1_ref[l],
            approximate=True,
        )
        ffn = jnp.dot(ffn, w2_ref[l], preferred_element_type=jnp.float32) + b2_ref[l]
        h = _ln(ffn + h1, ln2g_ref[l], ln2b_ref[l])

    # Classifier head (logits never leave VMEM).
    return (
        jnp.dot(h, cw_ref[...], preferred_element_type=jnp.float32) + cb_ref[...]
    )                                                            # (T, V)


def _infer_kernel(
    h0_ref, bias_ref,
    embg_ref, embb_ref,
    wqkv_ref, bqkv_ref, wo_ref, bo_ref, ln1g_ref, ln1b_ref,
    w1_ref, b1_ref, w2_ref, b2_ref, ln2g_ref, ln2b_ref,
    cw_ref, cb_ref,
    probs_ref,
    ctx_s,
):
    logits = _forward_logits(
        h0_ref, bias_ref, embg_ref, embb_ref,
        wqkv_ref, bqkv_ref, wo_ref, bo_ref, ln1g_ref, ln1b_ref,
        w1_ref, b1_ref, w2_ref, b2_ref, ln2g_ref, ln2b_ref,
        cw_ref, cb_ref, ctx_s,
    )
    m = jnp.max(logits, axis=-1, keepdims=True)
    e = jnp.exp(logits - m)
    probs_ref[...] = e / jnp.sum(e, axis=-1, keepdims=True)      # exact softmax


def _train_kernel(
    h0_ref, bias_ref, y_ref,
    embg_ref, embb_ref,
    wqkv_ref, bqkv_ref, wo_ref, bo_ref, ln1g_ref, ln1b_ref,
    w1_ref, b1_ref, w2_ref, b2_ref, ln2g_ref, ln2b_ref,
    cw_ref, cb_ref,
    loss_ref,
    ctx_s,
):
    logits = _forward_logits(
        h0_ref, bias_ref, embg_ref, embb_ref,
        wqkv_ref, bqkv_ref, wo_ref, bo_ref, ln1g_ref, ln1b_ref,
        w1_ref, b1_ref, w2_ref, b2_ref, ln2g_ref, ln2b_ref,
        cw_ref, cb_ref, ctx_s,
    )                                                            # (T, V)
    # nn.CrossEntropyLoss(ignore_index=-1) over all tokens (mean over valid).
    y = y_ref[...]                                               # (T, 1) int32
    m = jnp.max(logits, axis=-1, keepdims=True)
    lse = jnp.log(jnp.sum(jnp.exp(logits - m), axis=-1, keepdims=True)) + m
    col = jax.lax.broadcasted_iota(jnp.int32, logits.shape, 1)
    onehot = (col == y).astype(jnp.float32)
    logp_y = jnp.sum(logits * onehot, axis=-1, keepdims=True) - lse
    valid = (y != -1).astype(jnp.float32)
    # mean over valid tokens (NaN when all targets ignored, matching PyTorch)
    loss_ref[...] = (jnp.sum(-logp_y * valid) / jnp.sum(valid)).reshape(1, 1)


# ------------------------------ parameters (deterministic) -------------------------
def init_params(key):
    def norm(k, shape, scale=0.02):
        return scale * jax.random.normal(k, shape, dtype=jnp.float32)

    keys = iter(jax.random.split(key, 8 + NUM_LAYERS * 8))
    params = {
        "word_emb": norm(next(keys), (VOCAB, HIDDEN)),
        "pos_emb": norm(next(keys), (MAX_POS, HIDDEN)),
        "type_emb": norm(next(keys), (2, HIDDEN)),
        "emb_ln_g": jnp.ones((1, HIDDEN), jnp.float32),
        "emb_ln_b": jnp.zeros((1, HIDDEN), jnp.float32),
        "classify_w": norm(next(keys), (HIDDEN, VOCAB)),
        "classify_b": jnp.zeros((1, VOCAB), jnp.float32),
    }
    wqkv, wo, w1, w2 = [], [], [], []
    for _ in range(NUM_LAYERS):
        wq = norm(next(keys), (HIDDEN, HIDDEN))
        wk = norm(next(keys), (HIDDEN, HIDDEN))
        wv = norm(next(keys), (HIDDEN, HIDDEN))
        wqkv.append(jnp.concatenate([wq, wk, wv], axis=1))   # fused Q|K|V weight
        wo.append(norm(next(keys), (HIDDEN, HIDDEN)))
        w1.append(norm(next(keys), (HIDDEN, INTERMEDIATE)))
        w2.append(norm(next(keys), (INTERMEDIATE, HIDDEN)))
    L = NUM_LAYERS
    params.update({
        # layer weights stacked on a leading layer axis -> one kernel, static indexing
        "wqkv": jnp.stack(wqkv), "bqkv": jnp.zeros((L, 1, 3 * HIDDEN), jnp.float32),
        "wo": jnp.stack(wo), "bo": jnp.zeros((L, 1, HIDDEN), jnp.float32),
        "ln1_g": jnp.ones((L, 1, HIDDEN), jnp.float32),
        "ln1_b": jnp.zeros((L, 1, HIDDEN), jnp.float32),
        "w1": jnp.stack(w1), "b1": jnp.zeros((L, 1, INTERMEDIATE), jnp.float32),
        "w2": jnp.stack(w2), "b2": jnp.zeros((L, 1, HIDDEN), jnp.float32),
        "ln2_g": jnp.ones((L, 1, HIDDEN), jnp.float32),
        "ln2_b": jnp.zeros((L, 1, HIDDEN), jnp.float32),
    })
    return params


def _param_args(params):
    return (
        params["emb_ln_g"], params["emb_ln_b"],
        params["wqkv"], params["bqkv"], params["wo"], params["bo"],
        params["ln1_g"], params["ln1_b"],
        params["w1"], params["b1"], params["w2"], params["b2"],
        params["ln2_g"], params["ln2_b"],
        params["classify_w"], params["classify_b"],
    )


# --------------------------------- model forward -----------------------------------
def language_model_forward(params, x, mask=None, y=None):
    """Mirrors LanguageModel.forward: CE loss if y given, softmax(logits) otherwise."""
    b, s = x.shape
    if y is None:
        # inference branch: reference calls bert(x) with no attention mask
        mask = jnp.ones((b, s, s), jnp.int32)
    # additive extended-attention-mask bias built ONCE in the wrapper (glue)
    bias = (1.0 - mask.astype(jnp.float32)) * -10000.0           # (B, S, S)

    # embedding lookups are glue (gather); everything downstream is one Pallas kernel
    h0 = (
        params["word_emb"][x]
        + params["pos_emb"][:s][None, :, :]
        + params["type_emb"][0][None, None, :]
    ).reshape(b * s, HIDDEN)

    scratch = [pltpu.VMEM((TOKENS, HIDDEN), jnp.float32)]        # attention context

    if y is not None:
        loss = pl.pallas_call(
            _train_kernel,
            out_shape=jax.ShapeDtypeStruct((1, 1), jnp.float32),
            scratch_shapes=scratch,
        )(h0, bias, y.reshape(-1, 1).astype(jnp.int32), *_param_args(params))
        return loss[0, 0]

    probs = pl.pallas_call(
        _infer_kernel,
        out_shape=jax.ShapeDtypeStruct((TOKENS, VOCAB), jnp.float32),
        scratch_shapes=scratch,
    )(h0, bias, *_param_args(params))
    return probs.reshape(b, s, VOCAB)


@jax.jit
def train_step(params, x, mask, y):
    return language_model_forward(params, x, mask=mask, y=y)


@jax.jit
def infer_step(params, x):
    return language_model_forward(params, x)


# -------------------------------------- main ----------------------------------------
if __name__ == "__main__":
    key = jax.random.PRNGKey(0)
    pkey, xkey, ykey = jax.random.split(key, 3)
    params = init_params(pkey)

    x = jax.random.randint(xkey, (BATCH, SEQ), 0, VOCAB, dtype=jnp.int32)

    # SFT-style attention mask: prompt columns fully visible, answer part causal.
    prompt_len = SEQ // 2
    idx = jnp.arange(SEQ)
    causal = (idx[:, None] >= idx[None, :]).astype(jnp.int32)
    mask2d = jnp.where(idx[None, :] < prompt_len, 1, causal)
    mask = jnp.broadcast_to(mask2d, (BATCH, SEQ, SEQ)).astype(jnp.int32)

    # labels in [-1, VOCAB): -1 positions are ignored by the loss (ignore_index=-1)
    y = jax.random.randint(ykey, (BATCH, SEQ), -1, VOCAB, dtype=jnp.int32)

    loss = train_step(params, x, mask, y)        # training branch (fused fwd + CE)
    probs = infer_step(params, x)                # inference branch (fused fwd + softmax)
    jax.block_until_ready((loss, probs))

    assert loss.shape == ()
    assert probs.shape == (BATCH, SEQ, VOCAB)
    print("KERNEL_OK")
</pallas_src>

<mosaic_0001>
module attributes {stable_mosaic.version = 11 : i64} {
  func.func @_train_kernel(%arg0: memref<16x32xf32, #tpu.memory_space<vmem>>, %arg1: memref<2x8x8xf32, #tpu.memory_space<vmem>>, %arg2: memref<16x1xi32, #tpu.memory_space<vmem>>, %arg3: memref<1x32xf32, #tpu.memory_space<vmem>>, %arg4: memref<1x32xf32, #tpu.memory_space<vmem>>, %arg5: memref<2x32x96xf32, #tpu.memory_space<vmem>>, %arg6: memref<2x1x96xf32, #tpu.memory_space<vmem>>, %arg7: memref<2x32x32xf32, #tpu.memory_space<vmem>>, %arg8: memref<2x1x32xf32, #tpu.memory_space<vmem>>, %arg9: memref<2x1x32xf32, #tpu.memory_space<vmem>>, %arg10: memref<2x1x32xf32, #tpu.memory_space<vmem>>, %arg11: memref<2x32x64xf32, #tpu.memory_space<vmem>>, %arg12: memref<2x1x64xf32, #tpu.memory_space<vmem>>, %arg13: memref<2x64x32xf32, #tpu.memory_space<vmem>>, %arg14: memref<2x1x32xf32, #tpu.memory_space<vmem>>, %arg15: memref<2x1x32xf32, #tpu.memory_space<vmem>>, %arg16: memref<2x1x32xf32, #tpu.memory_space<vmem>>, %arg17: memref<32x64xf32, #tpu.memory_space<vmem>>, %arg18: memref<1x64xf32, #tpu.memory_space<vmem>>, %arg19: memref<1x1xf32, #tpu.memory_space<vmem>>, %arg20: memref<16x32xf32, #tpu.memory_space<vmem>>) attributes {dimension_semantics = [], scalar_prefetch = 0 : i64, scratch_operands = 1 : i64, tpu.core_type = #tpu.core_type<tc>} {
    %c0 = arith.constant 0 : index
    %c0_0 = arith.constant 0 : index
    %0 = vector.load %arg0[%c0, %c0_0] : memref<16x32xf32, #tpu.memory_space<vmem>>, vector<16x32xf32>
    %c0_1 = arith.constant 0 : index
    %c0_2 = arith.constant 0 : index
    %1 = vector.load %arg3[%c0_1, %c0_2] : memref<1x32xf32, #tpu.memory_space<vmem>>, vector<1x32xf32>
    %c0_3 = arith.constant 0 : index
    %c0_4 = arith.constant 0 : index
    %2 = vector.load %arg4[%c0_3, %c0_4] : memref<1x32xf32, #tpu.memory_space<vmem>>, vector<1x32xf32>
    %cst = arith.constant dense<0.000000e+00> : vector<16xf32>
    %3 = vector.multi_reduction <add>, %0, %cst [1] : vector<16x32xf32> to vector<16xf32>
    %4 = vector.shape_cast %3 : vector<16xf32> to vector<16x1xf32>
    %cst_5 = arith.constant 3.200000e+01 : f32
    %5 = vector.broadcast %cst_5 : f32 to vector<16x1xf32>
    %6 = arith.divf %4, %5 : vector<16x1xf32>
    %7 = vector.broadcast %6 : vector<16x1xf32> to vector<16x32xf32>
    %8 = arith.subf %0, %7 : vector<16x32xf32>
    %9 = arith.mulf %8, %8 : vector<16x32xf32>
    %cst_6 = arith.constant dense<0.000000e+00> : vector<16xf32>
    %10 = vector.multi_reduction <add>, %9, %cst_6 [1] : vector<16x32xf32> to vector<16xf32>
    %11 = vector.shape_cast %10 : vector<16xf32> to vector<16x1xf32>
    %cst_7 = arith.constant 3.200000e+01 : f32
    %12 = vector.broadcast %cst_7 : f32 to vector<16x1xf32>
    %13 = arith.divf %11, %12 : vector<16x1xf32>
    %14 = vector.broadcast %6 : vector<16x1xf32> to vector<16x32xf32>
    %15 = arith.subf %0, %14 : vector<16x32xf32>
    %cst_8 = arith.constant 9.99999996E-13 : f32
    %16 = vector.broadcast %cst_8 : f32 to vector<16x1xf32>
    %17 = arith.addf %13, %16 : vector<16x1xf32>
    %18 = math.rsqrt %17 : vector<16x1xf32>
    %19 = vector.broadcast %18 : vector<16x1xf32> to vector<16x32xf32>
    %20 = arith.mulf %15, %19 : vector<16x32xf32>
    %21 = vector.broadcast %1 : vector<1x32xf32> to vector<16x32xf32>
    %22 = arith.mulf %20, %21 : vector<16x32xf32>
    %23 = vector.broadcast %2 : vector<1x32xf32> to vector<16x32xf32>
    %24 = arith.addf %22, %23 : vector<16x32xf32>
    %c0_9 = arith.constant 0 : index
    %c0_10 = arith.constant 0 : index
    %c0_11 = arith.constant 0 : index
    %25 = vector.load %arg1[%c0_9, %c0_10, %c0_11] : memref<2x8x8xf32, #tpu.memory_space<vmem>>, vector<2x8x8xf32>
    %c0_12 = arith.constant 0 : index
    %c0_13 = arith.constant 0 : index
    %c0_14 = arith.constant 0 : index
    %26 = vector.load %arg5[%c0_12, %c0_13, %c0_14] : memref<2x32x96xf32, #tpu.memory_space<vmem>>, vector<1x32x96xf32>
    %27 = vector.shape_cast %26 : vector<1x32x96xf32> to vector<32x96xf32>
    %cst_15 = arith.constant dense<0.000000e+00> : vector<16x96xf32>
    %28 = tpu.matmul %24, %27, %cst_15 {dimension_numbers = #tpu.dot_dimension_numbers<[1], [0], [0], [1], [0, 0, 1, 1], [], []>} : vector<16x32xf32>, vector<32x96xf32>, vector<16x96xf32> -> vector<16x96xf32>
    %c0_16 = arith.constant 0 : index
    %c0_17 = arith.constant 0 : index
    %c0_18 = arith.constant 0 : index
    %29 = vector.load %arg6[%c0_16, %c0_17, %c0_18] : memref<2x1x96xf32, #tpu.memory_space<vmem>>, vector<1x1x96xf32>
    %30 = vector.shape_cast %29 : vector<1x1x96xf32> to vector<1x96xf32>
    %31 = vector.broadcast %30 : vector<1x96xf32> to vector<16x96xf32>
    %32 = arith.addf %28, %31 : vector<16x96xf32>
    %33 = vector.extract_strided_slice %32 {offsets = [0, 0], sizes = [16, 8], strides = [1, 1]} : vector<16x96xf32> to vector<16x8xf32>
    %34 = vector.shape_cast %33 : vector<16x8xf32> to vector<2x8x8xf32>
    %35 = vector.extract_strided_slice %32 {offsets = [0, 32], sizes = [16, 8], strides = [1, 1]} : vector<16x96xf32> to vector<16x8xf32>
    %36 = vector.shape_cast %35 : vector<16x8xf32> to vector<2x8x8xf32>
    %37 = vector.extract_strided_slice %32 {offsets = [0, 64], sizes = [16, 8], strides = [1, 1]} : vector<16x96xf32> to vector<16x8xf32>
    %38 = vector.shape_cast %37 : vector<16x8xf32> to vector<2x8x8xf32>
    "tpu.trace_start"() <{level = 10 : i32, message = "bqd,bkd->bqk"}> : () -> ()
    %cst_19 = arith.constant dense<0.000000e+00> : vector<2x8x8xf32>
    %39 = tpu.matmul %34, %36, %cst_19 {dimension_numbers = #tpu.dot_dimension_numbers<[2], [2], [1], [1], [0, 0, 0, 1, 1, 1], [0], [0]>} : vector<2x8x8xf32>, vector<2x8x8xf32>, vector<2x8x8xf32> -> vector<2x8x8xf32>
    "tpu.trace_stop"() : () -> ()
    %cst_20 = arith.constant 0.353553385 : f32
    %40 = vector.broadcast %cst_20 : f32 to vector<2x8x8xf32>
    %41 = arith.mulf %39, %40 : vector<2x8x8xf32>
    %42 = arith.addf %41, %25 : vector<2x8x8xf32>
    %cst_21 = arith.constant dense<0xFF800000> : vector<2x8xf32>
    %43 = vector.multi_reduction <maximumf>, %42, %cst_21 [2] : vector<2x8x8xf32> to vector<2x8xf32>
    %44 = vector.shape_cast %43 : vector<2x8xf32> to vector<2x8x1xf32>
    %45 = vector.broadcast %44 : vector<2x8x1xf32> to vector<2x8x8xf32>
    %46 = arith.subf %42, %45 : vector<2x8x8xf32>
    %47 = math.exp %46 : vector<2x8x8xf32>
    %cst_22 = arith.constant dense<0.000000e+00> : vector<2x8xf32>
    %48 = vector.multi_reduction <add>, %47, %cst_22 [2] : vector<2x8x8xf32> to vector<2x8xf32>
    %49 = vector.shape_cast %48 : vector<2x8xf32> to vector<2x8x1xf32>
    %50 = vector.broadcast %49 : vector<2x8x1xf32> to vector<2x8x8xf32>
    %51 = arith.divf %47, %50 : vector<2x8x8xf32>
    "tpu.trace_start"() <{level = 10 : i32, message = "bqk,bkd->bqd"}> : () -> ()
    %cst_23 = arith.constant dense<0.000000e+00> : vector<2x8x8xf32>
    %52 = tpu.matmul %51, %38, %cst_23 {dimension_numbers = #tpu.dot_dimension_numbers<[2], [1], [1], [2], [0, 0, 0, 1, 1, 2], [0], [0]>} : vector<2x8x8xf32>, vector<2x8x8xf32>, vector<2x8x8xf32> -> vector<2x8x8xf32>
    "tpu.trace_stop"() : () -> ()
    %53 = vector.shape_cast %52 : vector<2x8x8xf32> to vector<16x8xf32>
    %c0_24 = arith.constant 0 : index
    %c0_25 = arith.constant 0 : index
    %54 = vector.load %arg20[%c0_24, %c0_25] : memref<16x32xf32, #tpu.memory_space<vmem>>, vector<16x8xf32>
    tpu.vector_store %arg20[%c0_24, %c0_25], %53 {strides = array<i32>} : memref<16x32xf32, #tpu.memory_space<vmem>>, vector<16x8xf32>,
    %55 = vector.extract_strided_slice %32 {offsets = [0, 8], sizes = [16, 8], strides = [1, 1]} : vector<16x96xf32> to vector<16x8xf32>
    %56 = vector.shape_cast %55 : vector<16x8xf32> to vector<2x8x8xf32>
    %57 = vector.extract_strided_slice %32 {offsets = [0, 40], sizes = [16, 8], strides = [1, 1]} : vector<16x96xf32> to vector<16x8xf32>
    %58 = vector.shape_cast %57 : vector<16x8xf32> to vector<2x8x8xf32>
    %59 = vector.extract_strided_slice %32 {offsets = [0, 72], sizes = [16, 8], strides = [1, 1]} : vector<16x96xf32> to vector<16x8xf32>
    %60 = vector.shape_cast %59 : vector<16x8xf32> to vector<2x8x8xf32>
    "tpu.trace_start"() <{level = 10 : i32, message = "bqd,bkd->bqk"}> : () -> ()
    %cst_26 = arith.constant dense<0.000000e+00> : vector<2x8x8xf32>
    %61 = tpu.matmul %56, %58, %cst_26 {dimension_numbers = #tpu.dot_dimension_numbers<[2], [2], [1], [1], [0, 0, 0, 1, 1, 1], [0], [0]>} : vector<2x8x8xf32>, vector<2x8x8xf32>, vector<2x8x8xf32> -> vector<2x8x8xf32>
    "tpu.trace_stop"() : () -> ()
    %cst_27 = arith.constant 0.353553385 : f32
    %62 = vector.broadcast %cst_27 : f32 to vector<2x8x8xf32>
    %63 = arith.mulf %61, %62 : vector<2x8x8xf32>
    %64 = arith.addf %63, %25 : vector<2x8x8xf32>
    %cst_28 = arith.constant dense<0xFF800000> : vector<2x8xf32>
    %65 = vector.multi_reduction <maximumf>, %64, %cst_28 [2] : vector<2x8x8xf32> to vector<2x8xf32>
    %66 = vector.shape_cast %65 : vector<2x8xf32> to vector<2x8x1xf32>
    %67 = vector.broadcast %66 : vector<2x8x1xf32> to vector<2x8x8xf32>
    %68 = arith.subf %64, %67 : vector<2x8x8xf32>
    %69 = math.exp %68 : vector<2x8x8xf32>
    %cst_29 = arith.constant dense<0.000000e+00> : vector<2x8xf32>
    %70 = vector.multi_reduction <add>, %69, %cst_29 [2] : vector<2x8x8xf32> to vector<2x8xf32>
    %71 = vector.shape_cast %70 : vector<2x8xf32> to vector<2x8x1xf32>
    %72 = vector.broadcast %71 : vector<2x8x1xf32> to vector<2x8x8xf32>
    %73 = arith.divf %69, %72 : vector<2x8x8xf32>
    "tpu.trace_start"() <{level = 10 : i32, message = "bqk,bkd->bqd"}> : () -> ()
    %cst_30 = arith.constant dense<0.000000e+00> : vector<2x8x8xf32>
    %74 = tpu.matmul %73, %60, %cst_30 {dimension_numbers = #tpu.dot_dimension_numbers<[2], [1], [1], [2], [0, 0, 0, 1, 1, 2], [0], [0]>} : vector<2x8x8xf32>, vector<2x8x8xf32>, vector<2x8x8xf32> -> vector<2x8x8xf32>
    "tpu.trace_stop"() : () -> ()
    %75 = vector.shape_cast %74 : vector<2x8x8xf32> to vector<16x8xf32>
    %c0_31 = arith.constant 0 : index
    %c8 = arith.constant 8 : index
    %76 = vector.load %arg20[%c0_31, %c8] : memref<16x32xf32, #tpu.memory_space<vmem>>, vector<16x8xf32>
    tpu.vector_store %arg20[%c0_31, %c8], %75 {strides = array<i32>} : memref<16x32xf32, #tpu.memory_space<vmem>>, vector<16x8xf32>,
    %77 = vector.extract_strided_slice %32 {offsets = [0, 16], sizes = [16, 8], strides = [1, 1]} : vector<16x96xf32> to vector<16x8xf32>
    %78 = vector.shape_cast %77 : vector<16x8xf32> to vector<2x8x8xf32>
    %79 = vector.extract_strided_slice %32 {offsets = [0, 48], sizes = [16, 8], strides = [1, 1]} : vector<16x96xf32> to vector<16x8xf32>
    %80 = vector.shape_cast %79 : vector<16x8xf32> to vector<2x8x8xf32>
    %81 = vector.extract_strided_slice %32 {offsets = [0, 80], sizes = [16, 8], strides = [1, 1]} : vector<16x96xf32> to vector<16x8xf32>
    %82 = vector.shape_cast %81 : vector<16x8xf32> to vector<2x8x8xf32>
    "tpu.trace_start"() <{level = 10 : i32, message = "bqd,bkd->bqk"}> : () -> ()
    %cst_32 = arith.constant dense<0.000000e+00> : vector<2x8x8xf32>
    %83 = tpu.matmul %78, %80, %cst_32 {dimension_numbers = #tpu.dot_dimension_numbers<[2], [2], [1], [1], [0, 0, 0, 1, 1, 1], [0], [0]>} : vector<2x8x8xf32>, vector<2x8x8xf32>, vector<2x8x8xf32> -> vector<2x8x8xf32>
    "tpu.trace_stop"() : () -> ()
    %cst_33 = arith.constant 0.353553385 : f32
    %84 = vector.broadcast %cst_33 : f32 to vector<2x8x8xf32>
    %85 = arith.mulf %83, %84 : vector<2x8x8xf32>
    %86 = arith.addf %85, %25 : vector<2x8x8xf32>
    %cst_34 = arith.constant dense<0xFF800000> : vector<2x8xf32>
    %87 = vector.multi_reduction <maximumf>, %86, %cst_34 [2] : vector<2x8x8xf32> to vector<2x8xf32>
    %88 = vector.shape_cast %87 : vector<2x8xf32> to vector<2x8x1xf32>
    %89 = vector.broadcast %88 : vector<2x8x1xf32> to vector<2x8x8xf32>
    %90 = arith.subf %86, %89 : vector<2x8x8xf32>
    %91 = math.exp %90 : vector<2x8x8xf32>
    %cst_35 = arith.constant dense<0.000000e+00> : vector<2x8xf32>
    %92 = vector.multi_reduction <add>, %91, %cst_35 [2] : vector<2x8x8xf32> to vector<2x8xf32>
    %93 = vector.shape_cast %92 : vector<2x8xf32> to vector<2x8x1xf32>
    %94 = vector.broadcast %93 : vector<2x8x1xf32> to vector<2x8x8xf32>
    %95 = arith.divf %91, %94 : vector<2x8x8xf32>
    "tpu.trace_start"() <{level = 10 : i32, message = "bqk,bkd->bqd"}> : () -> ()
    %cst_36 = arith.constant dense<0.000000e+00> : vector<2x8x8xf32>
    %96 = tpu.matmul %95, %82, %cst_36 {dimension_numbers = #tpu.dot_dimension_numbers<[2], [1], [1], [2], [0, 0, 0, 1, 1, 2], [0], [0]>} : vector<2x8x8xf32>, vector<2x8x8xf32>, vector<2x8x8xf32> -> vector<2x8x8xf32>
    "tpu.trace_stop"() : () -> ()
    %97 = vector.shape_cast %96 : vector<2x8x8xf32> to vector<16x8xf32>
    %c0_37 = arith.constant 0 : index
    %c16 = arith.constant 16 : index
    %98 = vector.load %arg20[%c0_37, %c16] : memref<16x32xf32, #tpu.memory_space<vmem>>, vector<16x8xf32>
    tpu.vector_store %arg20[%c0_37, %c16], %97 {strides = array<i32>} : memref<16x32xf32, #tpu.memory_space<vmem>>, vector<16x8xf32>,
    %99 = vector.extract_strided_slice %32 {offsets = [0, 24], sizes = [16, 8], strides = [1, 1]} : vector<16x96xf32> to vector<16x8xf32>
    %100 = vector.shape_cast %99 : vector<16x8xf32> to vector<2x8x8xf32>
    %101 = vector.extract_strided_slice %32 {offsets = [0, 56], sizes = [16, 8], strides = [1, 1]} : vector<16x96xf32> to vector<16x8xf32>
    %102 = vector.shape_cast %101 : vector<16x8xf32> to vector<2x8x8xf32>
    %103 = vector.extract_strided_slice %32 {offsets = [0, 88], sizes = [16, 8], strides = [1, 1]} : vector<16x96xf32> to vector<16x8xf32>
    %104 = vector.shape_cast %103 : vector<16x8xf32> to vector<2x8x8xf32>
    "tpu.trace_start"() <{level = 10 : i32, message = "bqd,bkd->bqk"}> : () -> ()
    %cst_38 = arith.constant dense<0.000000e+00> : vector<2x8x8xf32>
    %105 = tpu.matmul %100, %102, %cst_38 {dimension_numbers = #tpu.dot_dimension_numbers<[2], [2], [1], [1], [0, 0, 0, 1, 1, 1], [0], [0]>} : vector<2x8x8xf32>, vector<2x8x8xf32>, vector<2x8x8xf32> -> vector<2x8x8xf32>
    "tpu.trace_stop"() : () -> ()
    %cst_39 = arith.constant 0.353553385 : f32
    %106 = vector.broadcast %cst_39 : f32 to vector<2x8x8xf32>
    %107 = arith.mulf %105, %106 : vector<2x8x8xf32>
    %108 = arith.addf %107, %25 : vector<2x8x8xf32>
    %cst_40 = arith.constant dense<0xFF800000> : vector<2x8xf32>
    %109 = vector.multi_reduction <maximumf>, %108, %cst_40 [2] : vector<2x8x8xf32> to vector<2x8xf32>
    %110 = vector.shape_cast %109 : vector<2x8xf32> to vector<2x8x1xf32>
    %111 = vector.broadcast %110 : vector<2x8x1xf32> to vector<2x8x8xf32>
    %112 = arith.subf %108, %111 : vector<2x8x8xf32>
    %113 = math.exp %112 : vector<2x8x8xf32>
    %cst_41 = arith.constant dense<0.000000e+00> : vector<2x8xf32>
    %114 = vector.multi_reduction <add>, %113, %cst_41 [2] : vector<2x8x8xf32> to vector<2x8xf32>
    %115 = vector.shape_cast %114 : vector<2x8xf32> to vector<2x8x1xf32>
    %116 = vector.broadcast %115 : vector<2x8x1xf32> to vector<2x8x8xf32>
    %117 = arith.divf %113, %116 : vector<2x8x8xf32>
    "tpu.trace_start"() <{level = 10 : i32, message = "bqk,bkd->bqd"}> : () -> ()
    %cst_42 = arith.constant dense<0.000000e+00> : vector<2x8x8xf32>
    %118 = tpu.matmul %117, %104, %cst_42 {dimension_numbers = #tpu.dot_dimension_numbers<[2], [1], [1], [2], [0, 0, 0, 1, 1, 2], [0], [0]>} : vector<2x8x8xf32>, vector<2x8x8xf32>, vector<2x8x8xf32> -> vector<2x8x8xf32>
    "tpu.trace_stop"() : () -> ()
    %119 = vector.shape_cast %118 : vector<2x8x8xf32> to vector<16x8xf32>
    %c0_43 = arith.constant 0 : index
    %c24 = arith.constant 24 : index
    %120 = vector.load %arg20[%c0_43, %c24] : memref<16x32xf32, #tpu.memory_space<vmem>>, vector<16x8xf32>
    tpu.vector_store %arg20[%c0_43, %c24], %119 {strides = array<i32>} : memref<16x32xf32, #tpu.memory_space<vmem>>, vector<16x8xf32>,
    %c0_44 = arith.constant 0 : index
    %c0_45 = arith.constant 0 : index
    %121 = vector.load %arg20[%c0_44, %c0_45] : memref<16x32xf32, #tpu.memory_space<vmem>>, vector<16x32xf32>
    %c0_46 = arith.constant 0 : index
    %c0_47 = arith.constant 0 : index
    %c0_48 = arith.constant 0 : index
    %122 = vector.load %arg7[%c0_46, %c0_47, %c0_48] : memref<2x32x32xf32, #tpu.memory_space<vmem>>, vector<1x32x32xf32>
    %123 = vector.shape_cast %122 : vector<1x32x32xf32> to vector<32x32xf32>
    %cst_49 = arith.constant dense<0.000000e+00> : vector<16x32xf32>
    %124 = tpu.matmul %121, %123, %cst_49 {dimension_numbers = #tpu.dot_dimension_numbers<[1], [0], [0], [1], [0, 0, 1, 1], [], []>} : vector<16x32xf32>, vector<32x32xf32>, vector<16x32xf32> -> vector<16x32xf32>
    %c0_50 = arith.constant 0 : index
    %c0_51 = arith.constant 0 : index
    %c0_52 = arith.constant 0 : index
    %125 = vector.load %arg8[%c0_50, %c0_51, %c0_52] : memref<2x1x32xf32, #tpu.memory_space<vmem>>, vector<1x1x32xf32>
    %126 = vector.shape_cast %125 : vector<1x1x32xf32> to vector<1x32xf32>
    %127 = vector.broadcast %126 : vector<1x32xf32> to vector<16x32xf32>
    %128 = arith.addf %124, %127 : vector<16x32xf32>
    %129 = arith.addf %128, %24 : vector<16x32xf32>
    %c0_53 = arith.constant 0 : index
    %c0_54 = arith.constant 0 : index
    %c0_55 = arith.constant 0 : index
    %130 = vector.load %arg9[%c0_53, %c0_54, %c0_55] : memref<2x1x32xf32, #tpu.memory_space<vmem>>, vector<1x1x32xf32>
    %131 = vector.shape_cast %130 : vector<1x1x32xf32> to vector<1x32xf32>
    %c0_56 = arith.constant 0 : index
    %c0_57 = arith.constant 0 : index
    %c0_58 = arith.constant 0 : index
    %132 = vector.load %arg10[%c0_56, %c0_57, %c0_58] : memref<2x1x32xf32, #tpu.memory_space<vmem>>, vector<1x1x32xf32>
    %133 = vector.shape_cast %132 : vector<1x1x32xf32> to vector<1x32xf32>
    %cst_59 = arith.constant dense<0.000000e+00> : vector<16xf32>
    %134 = vector.multi_reduction <add>, %129, %cst_59 [1] : vector<16x32xf32> to vector<16xf32>
    %135 = vector.shape_cast %134 : vector<16xf32> to vector<16x1xf32>
    %cst_60 = arith.constant 3.200000e+01 : f32
    %136 = vector.broadcast %cst_60 : f32 to vector<16x1xf32>
    %137 = arith.divf %135, %136 : vector<16x1xf32>
    %138 = vector.broadcast %137 : vector<16x1xf32> to vector<16x32xf32>
    %139 = arith.subf %129, %138 : vector<16x32xf32>
    %140 = arith.mulf %139, %139 : vector<16x32xf32>
    %cst_61 = arith.constant dense<0.000000e+00> : vector<16xf32>
    %141 = vector.multi_reduction <add>, %140, %cst_61 [1] : vector<16x32xf32> to vector<16xf32>
    %142 = vector.shape_cast %141 : vector<16xf32> to vector<16x1xf32>
    %cst_62 = arith.constant 3.200000e+01 : f32
    %143 = vector.broadcast %cst_62 : f32 to vector<16x1xf32>
    %144 = arith.divf %142, %143 : vector<16x1xf32>
    %145 = vector.broadcast %137 : vector<16x1xf32> to vector<16x32xf32>
    %146 = arith.subf %129, %145 : vector<16x32xf32>
    %cst_63 = arith.constant 9.99999996E-13 : f32
    %147 = vector.broadcast %cst_63 : f32 to vector<16x1xf32>
    %148 = arith.addf %144, %147 : vector<16x1xf32>
    %149 = math.rsqrt %148 : vector<16x1xf32>
    %150 = vector.broadcast %149 : vector<16x1xf32> to vector<16x32xf32>
    %151 = arith.mulf %146, %150 : vector<16x32xf32>
    %152 = vector.broadcast %131 : vector<1x32xf32> to vector<16x32xf32>
    %153 = arith.mulf %151, %152 : vector<16x32xf32>
    %154 = vector.broadcast %133 : vector<1x32xf32> to vector<16x32xf32>
    %155 = arith.addf %153, %154 : vector<16x32xf32>
    %c0_64 = arith.constant 0 : index
    %c0_65 = arith.constant 0 : index
    %c0_66 = arith.constant 0 : index
    %156 = vector.load %arg11[%c0_64, %c0_65, %c0_66] : memref<2x32x64xf32, #tpu.memory_space<vmem>>, vector<1x32x64xf32>
    %157 = vector.shape_cast %156 : vector<1x32x64xf32> to vector<32x64xf32>
    %cst_67 = arith.constant dense<0.000000e+00> : vector<16x64xf32>
    %158 = tpu.matmul %155, %157, %cst_67 {dimension_numbers = #tpu.dot_dimension_numbers<[1], [0], [0], [1], [0, 0, 1, 1], [], []>} : vector<16x32xf32>, vector<32x64xf32>, vector<16x64xf32> -> vector<16x64xf32>
    %c0_68 = arith.constant 0 : index
    %c0_69 = arith.constant 0 : index
    %c0_70 = arith.constant 0 : index
    %159 = vector.load %arg12[%c0_68, %c0_69, %c0_70] : memref<2x1x64xf32, #tpu.memory_space<vmem>>, vector<1x1x64xf32>
    %160 = vector.shape_cast %159 : vector<1x1x64xf32> to vector<1x64xf32>
    %161 = vector.broadcast %160 : vector<1x64xf32> to vector<16x64xf32>
    %162 = arith.addf %158, %161 : vector<16x64xf32>
    %163 = arith.mulf %162, %162 : vector<16x64xf32>
    %164 = arith.mulf %162, %163 : vector<16x64xf32>
    %cst_71 = arith.constant 4.471500e-02 : f32
    %165 = vector.broadcast %cst_71 : f32 to vector<16x64xf32>
    %166 = arith.mulf %165, %164 : vector<16x64xf32>
    %167 = arith.addf %162, %166 : vector<16x64xf32>
    %cst_72 = arith.constant 0.797884583 : f32
    %168 = vector.broadcast %cst_72 : f32 to vector<16x64xf32>
    %169 = arith.mulf %168, %167 : vector<16x64xf32>
    %170 = math.tanh %169 : vector<16x64xf32>
    %cst_73 = arith.constant 1.000000e+00 : f32
    %171 = vector.broadcast %cst_73 : f32 to vector<16x64xf32>
    %172 = arith.addf %171, %170 : vector<16x64xf32>
    %cst_74 = arith.constant 5.000000e-01 : f32
    %173 = vector.broadcast %cst_74 : f32 to vector<16x64xf32>
    %174 = arith.mulf %173, %172 : vector<16x64xf32>
    %175 = arith.mulf %162, %174 : vector<16x64xf32>
    %c0_75 = arith.constant 0 : index
    %c0_76 = arith.constant 0 : index
    %c0_77 = arith.constant 0 : index
    %176 = vector.load %arg13[%c0_75, %c0_76, %c0_77] : memref<2x64x32xf32, #tpu.memory_space<vmem>>, vector<1x64x32xf32>
    %177 = vector.shape_cast %176 : vector<1x64x32xf32> to vector<64x32xf32>
    %cst_78 = arith.constant dense<0.000000e+00> : vector<16x32xf32>
    %178 = tpu.matmul %175, %177, %cst_78 {dimension_numbers = #tpu.dot_dimension_numbers<[1], [0], [0], [1], [0, 0, 1, 1], [], []>} : vector<16x64xf32>, vector<64x32xf32>, vector<16x32xf32> -> vector<16x32xf32>
    %c0_79 = arith.constant 0 : index
    %c0_80 = arith.constant 0 : index
    %c0_81 = arith.constant 0 : index
    %179 = vector.load %arg14[%c0_79, %c0_80, %c0_81] : memref<2x1x32xf32, #tpu.memory_space<vmem>>, vector<1x1x32xf32>
    %180 = vector.shape_cast %179 : vector<1x1x32xf32> to vector<1x32xf32>
    %181 = vector.broadcast %180 : vector<1x32xf32> to vector<16x32xf32>
    %182 = arith.addf %178, %181 : vector<16x32xf32>
    %183 = arith.addf %182, %155 : vector<16x32xf32>
    %c0_82 = arith.constant 0 : index
    %c0_83 = arith.constant 0 : index
    %c0_84 = arith.constant 0 : index
    %184 = vector.load %arg15[%c0_82, %c0_83, %c0_84] : memref<2x1x32xf32, #tpu.memory_space<vmem>>, vector<1x1x32xf32>
    %185 = vector.shape_cast %184 : vector<1x1x32xf32> to vector<1x32xf32>
    %c0_85 = arith.constant 0 : index
    %c0_86 = arith.constant 0 : index
    %c0_87 = arith.constant 0 : index
    %186 = vector.load %arg16[%c0_85, %c0_86, %c0_87] : memref<2x1x32xf32, #tpu.memory_space<vmem>>, vector<1x1x32xf32>
    %187 = vector.shape_cast %186 : vector<1x1x32xf32> to vector<1x32xf32>
    %cst_88 = arith.constant dense<0.000000e+00> : vector<16xf32>
    %188 = vector.multi_reduction <add>, %183, %cst_88 [1] : vector<16x32xf32> to vector<16xf32>
    %189 = vector.shape_cast %188 : vector<16xf32> to vector<16x1xf32>
    %cst_89 = arith.constant 3.200000e+01 : f32
    %190 = vector.broadcast %cst_89 : f32 to vector<16x1xf32>
    %191 = arith.divf %189, %190 : vector<16x1xf32>
    %192 = vector.broadcast %191 : vector<16x1xf32> to vector<16x32xf32>
    %193 = arith.subf %183, %192 : vector<16x32xf32>
    %194 = arith.mulf %193, %193 : vector<16x32xf32>
    %cst_90 = arith.constant dense<0.000000e+00> : vector<16xf32>
    %195 = vector.multi_reduction <add>, %194, %cst_90 [1] : vector<16x32xf32> to vector<16xf32>
    %196 = vector.shape_cast %195 : vector<16xf32> to vector<16x1xf32>
    %cst_91 = arith.constant 3.200000e+01 : f32
    %197 = vector.broadcast %cst_91 : f32 to vector<16x1xf32>
    %198 = arith.divf %196, %197 : vector<16x1xf32>
    %199 = vector.broadcast %191 : vector<16x1xf32> to vector<16x32xf32>
    %200 = arith.subf %183, %199 : vector<16x32xf32>
    %cst_92 = arith.constant 9.99999996E-13 : f32
    %201 = vector.broadcast %cst_92 : f32 to vector<16x1xf32>
    %202 = arith.addf %198, %201 : vector<16x1xf32>
    %203 = math.rsqrt %202 : vector<16x1xf32>
    %204 = vector.broadcast %203 : vector<16x1xf32> to vector<16x32xf32>
    %205 = arith.mulf %200, %204 : vector<16x32xf32>
    %206 = vector.broadcast %185 : vector<1x32xf32> to vector<16x32xf32>
    %207 = arith.mulf %205, %206 : vector<16x32xf32>
    %208 = vector.broadcast %187 : vector<1x32xf32> to vector<16x32xf32>
    %209 = arith.addf %207, %208 : vector<16x32xf32>
    %c1 = arith.constant 1 : index
    %c0_93 = arith.constant 0 : index
    %c0_94 = arith.constant 0 : index
    %210 = vector.load %arg5[%c1, %c0_93, %c0_94] : memref<2x32x96xf32, #tpu.memory_space<vmem>>, vector<1x32x96xf32>
    %211 = vector.shape_cast %210 : vector<1x32x96xf32> to vector<32x96xf32>
    %cst_95 = arith.constant dense<0.000000e+00> : vector<16x96xf32>
    %212 = tpu.matmul %209, %211, %cst_95 {dimension_numbers = #tpu.dot_dimension_numbers<[1], [0], [0], [1], [0, 0, 1, 1], [], []>} : vector<16x32xf32>, vector<32x96xf32>, vector<16x96xf32> -> vector<16x96xf32>
    %c1_96 = arith.constant 1 : index
    %c0_97 = arith.constant 0 : index
    %c0_98 = arith.constant 0 : index
    %213 = vector.load %arg6[%c1_96, %c0_97, %c0_98] : memref<2x1x96xf32, #tpu.memory_space<vmem>>, vector<1x1x96xf32>
    %214 = vector.shape_cast %213 : vector<1x1x96xf32> to vector<1x96xf32>
    %215 = vector.broadcast %214 : vector<1x96xf32> to vector<16x96xf32>
    %216 = arith.addf %212, %215 : vector<16x96xf32>
    %217 = vector.extract_strided_slice %216 {offsets = [0, 0], sizes = [16, 8], strides = [1, 1]} : vector<16x96xf32> to vector<16x8xf32>
    %218 = vector.shape_cast %217 : vector<16x8xf32> to vector<2x8x8xf32>
    %219 = vector.extract_strided_slice %216 {offsets = [0, 32], sizes = [16, 8], strides = [1, 1]} : vector<16x96xf32> to vector<16x8xf32>
    %220 = vector.shape_cast %219 : vector<16x8xf32> to vector<2x8x8xf32>
    %221 = vector.extract_strided_slice %216 {offsets = [0, 64], sizes = [16, 8], strides = [1, 1]} : vector<16x96xf32> to vector<16x8xf32>
    %222 = vector.shape_cast %221 : vector<16x8xf32> to vector<2x8x8xf32>
    "tpu.trace_start"() <{level = 10 : i32, message = "bqd,bkd->bqk"}> : () -> ()
    %cst_99 = arith.constant dense<0.000000e+00> : vector<2x8x8xf32>
    %223 = tpu.matmul %218, %220, %cst_99 {dimension_numbers = #tpu.dot_dimension_numbers<[2], [2], [1], [1], [0, 0, 0, 1, 1, 1], [0], [0]>} : vector<2x8x8xf32>, vector<2x8x8xf32>, vector<2x8x8xf32> -> vector<2x8x8xf32>
    "tpu.trace_stop"() : () -> ()
    %cst_100 = arith.constant 0.353553385 : f32
    %224 = vector.broadcast %cst_100 : f32 to vector<2x8x8xf32>
    %225 = arith.mulf %223, %224 : vector<2x8x8xf32>
    %226 = arith.addf %225, %25 : vector<2x8x8xf32>
    %cst_101 = arith.constant dense<0xFF800000> : vector<2x8xf32>
    %227 = vector.multi_reduction <maximumf>, %226, %cst_101 [2] : vector<2x8x8xf32> to vector<2x8xf32>
    %228 = vector.shape_cast %227 : vector<2x8xf32> to vector<2x8x1xf32>
    %229 = vector.broadcast %228 : vector<2x8x1xf32> to vector<2x8x8xf32>
    %230 = arith.subf %226, %229 : vector<2x8x8xf32>
    %231 = math.exp %230 : vector<2x8x8xf32>
    %cst_102 = arith.constant dense<0.000000e+00> : vector<2x8xf32>
    %232 = vector.multi_reduction <add>, %231, %cst_102 [2] : vector<2x8x8xf32> to vector<2x8xf32>
    %233 = vector.shape_cast %232 : vector<2x8xf32> to vector<2x8x1xf32>
    %234 = vector.broadcast %233 : vector<2x8x1xf32> to vector<2x8x8xf32>
    %235 = arith.divf %231, %234 : vector<2x8x8xf32>
    "tpu.trace_start"() <{level = 10 : i32, message = "bqk,bkd->bqd"}> : () -> ()
    %cst_103 = arith.constant dense<0.000000e+00> : vector<2x8x8xf32>
    %236 = tpu.matmul %235, %222, %cst_103 {dimension_numbers = #tpu.dot_dimension_numbers<[2], [1], [1], [2], [0, 0, 0, 1, 1, 2], [0], [0]>} : vector<2x8x8xf32>, vector<2x8x8xf32>, vector<2x8x8xf32> -> vector<2x8x8xf32>
    "tpu.trace_stop"() : () -> ()
    %237 = vector.shape_cast %236 : vector<2x8x8xf32> to vector<16x8xf32>
    %c0_104 = arith.constant 0 : index
    %c0_105 = arith.constant 0 : index
    %238 = vector.load %arg20[%c0_104, %c0_105] : memref<16x32xf32, #tpu.memory_space<vmem>>, vector<16x8xf32>
    tpu.vector_store %arg20[%c0_104, %c0_105], %237 {strides = array<i32>} : memref<16x32xf32, #tpu.memory_space<vmem>>, vector<16x8xf32>,
    %239 = vector.extract_strided_slice %216 {offsets = [0, 8], sizes = [16, 8], strides = [1, 1]} : vector<16x96xf32> to vector<16x8xf32>
    %240 = vector.shape_cast %239 : vector<16x8xf32> to vector<2x8x8xf32>
    %241 = vector.extract_strided_slice %216 {offsets = [0, 40], sizes = [16, 8], strides = [1, 1]} : vector<16x96xf32> to vector<16x8xf32>
    %242 = vector.shape_cast %241 : vector<16x8xf32> to vector<2x8x8xf32>
    %243 = vector.extract_strided_slice %216 {offsets = [0, 72], sizes = [16, 8], strides = [1, 1]} : vector<16x96xf32> to vector<16x8xf32>
    %244 = vector.shape_cast %243 : vector<16x8xf32> to vector<2x8x8xf32>
    "tpu.trace_start"() <{level = 10 : i32, message = "bqd,bkd->bqk"}> : () -> ()
    %cst_106 = arith.constant dense<0.000000e+00> : vector<2x8x8xf32>
    %245 = tpu.matmul %240, %242, %cst_106 {dimension_numbers = #tpu.dot_dimension_numbers<[2], [2], [1], [1], [0, 0, 0, 1, 1, 1], [0], [0]>} : vector<2x8x8xf32>, vector<2x8x8xf32>, vector<2x8x8xf32> -> vector<2x8x8xf32>
    "tpu.trace_stop"() : () -> ()
    %cst_107 = arith.constant 0.353553385 : f32
    %246 = vector.broadcast %cst_107 : f32 to vector<2x8x8xf32>
    %247 = arith.mulf %245, %246 : vector<2x8x8xf32>
    %248 = arith.addf %247, %25 : vector<2x8x8xf32>
    %cst_108 = arith.constant dense<0xFF800000> : vector<2x8xf32>
    %249 = vector.multi_reduction <maximumf>, %248, %cst_108 [2] : vector<2x8x8xf32> to vector<2x8xf32>
    %250 = vector.shape_cast %249 : vector<2x8xf32> to vector<2x8x1xf32>
    %251 = vector.broadcast %250 : vector<2x8x1xf32> to vector<2x8x8xf32>
    %252 = arith.subf %248, %251 : vector<2x8x8xf32>
    %253 = math.exp %252 : vector<2x8x8xf32>
    %cst_109 = arith.constant dense<0.000000e+00> : vector<2x8xf32>
    %254 = vector.multi_reduction <add>, %253, %cst_109 [2] : vector<2x8x8xf32> to vector<2x8xf32>
    %255 = vector.shape_cast %254 : vector<2x8xf32> to vector<2x8x1xf32>
    %256 = vector.broadcast %255 : vector<2x8x1xf32> to vector<2x8x8xf32>
    %257 = arith.divf %253, %256 : vector<2x8x8xf32>
    "tpu.trace_start"() <{level = 10 : i32, message = "bqk,bkd->bqd"}> : () -> ()
    %cst_110 = arith.constant dense<0.000000e+00> : vector<2x8x8xf32>
    %258 = tpu.matmul %257, %244, %cst_110 {dimension_numbers = #tpu.dot_dimension_numbers<[2], [1], [1], [2], [0, 0, 0, 1, 1, 2], [0], [0]>} : vector<2x8x8xf32>, vector<2x8x8xf32>, vector<2x8x8xf32> -> vector<2x8x8xf32>
    "tpu.trace_stop"() : () -> ()
    %259 = vector.shape_cast %258 : vector<2x8x8xf32> to vector<16x8xf32>
    %c0_111 = arith.constant 0 : index
    %c8_112 = arith.constant 8 : index
    %260 = vector.load %arg20[%c0_111, %c8_112] : memref<16x32xf32, #tpu.memory_space<vmem>>, vector<16x8xf32>
    tpu.vector_store %arg20[%c0_111, %c8_112], %259 {strides = array<i32>} : memref<16x32xf32, #tpu.memory_space<vmem>>, vector<16x8xf32>,
    %261 = vector.extract_strided_slice %216 {offsets = [0, 16], sizes = [16, 8], strides = [1, 1]} : vector<16x96xf32> to vector<16x8xf32>
    %262 = vector.shape_cast %261 : vector<16x8xf32> to vector<2x8x8xf32>
    %263 = vector.extract_strided_slice %216 {offsets = [0, 48], sizes = [16, 8], strides = [1, 1]} : vector<16x96xf32> to vector<16x8xf32>
    %264 = vector.shape_cast %263 : vector<16x8xf32> to vector<2x8x8xf32>
    %265 = vector.extract_strided_slice %216 {offsets = [0, 80], sizes = [16, 8], strides = [1, 1]} : vector<16x96xf32> to vector<16x8xf32>
    %266 = vector.shape_cast %265 : vector<16x8xf32> to vector<2x8x8xf32>
    "tpu.trace_start"() <{level = 10 : i32, message = "bqd,bkd->bqk"}> : () -> ()
    %cst_113 = arith.constant dense<0.000000e+00> : vector<2x8x8xf32>
    %267 = tpu.matmul %262, %264, %cst_113 {dimension_numbers = #tpu.dot_dimension_numbers<[2], [2], [1], [1], [0, 0, 0, 1, 1, 1], [0], [0]>} : vector<2x8x8xf32>, vector<2x8x8xf32>, vector<2x8x8xf32> -> vector<2x8x8xf32>
    "tpu.trace_stop"() : () -> ()
    %cst_114 = arith.constant 0.353553385 : f32
    %268 = vector.broadcast %cst_114 : f32 to vector<2x8x8xf32>
    %269 = arith.mulf %267, %268 : vector<2x8x8xf32>
    %270 = arith.addf %269, %25 : vector<2x8x8xf32>
    %cst_115 = arith.constant dense<0xFF800000> : vector<2x8xf32>
    %271 = vector.multi_reduction <maximumf>, %270, %cst_115 [2] : vector<2x8x8xf32> to vector<2x8xf32>
    %272 = vector.shape_cast %271 : vector<2x8xf32> to vector<2x8x1xf32>
    %273 = vector.broadcast %272 : vector<2x8x1xf32> to vector<2x8x8xf32>
    %274 = arith.subf %270, %273 : vector<2x8x8xf32>
    %275 = math.exp %274 : vector<2x8x8xf32>
    %cst_116 = arith.constant dense<0.000000e+00> : vector<2x8xf32>
    %276 = vector.multi_reduction <add>, %275, %cst_116 [2] : vector<2x8x8xf32> to vector<2x8xf32>
    %277 = vector.shape_cast %276 : vector<2x8xf32> to vector<2x8x1xf32>
    %278 = vector.broadcast %277 : vector<2x8x1xf32> to vector<2x8x8xf32>
    %279 = arith.divf %275, %278 : vector<2x8x8xf32>
    "tpu.trace_start"() <{level = 10 : i32, message = "bqk,bkd->bqd"}> : () -> ()
    %cst_117 = arith.constant dense<0.000000e+00> : vector<2x8x8xf32>
    %280 = tpu.matmul %279, %266, %cst_117 {dimension_numbers = #tpu.dot_dimension_numbers<[2], [1], [1], [2], [0, 0, 0, 1, 1, 2], [0], [0]>} : vector<2x8x8xf32>, vector<2x8x8xf32>, vector<2x8x8xf32> -> vector<2x8x8xf32>
    "tpu.trace_stop"() : () -> ()
    %281 = vector.shape_cast %280 : vector<2x8x8xf32> to vector<16x8xf32>
    %c0_118 = arith.constant 0 : index
    %c16_119 = arith.constant 16 : index
    %282 = vector.load %arg20[%c0_118, %c16_119] : memref<16x32xf32, #tpu.memory_space<vmem>>, vector<16x8xf32>
    tpu.vector_store %arg20[%c0_118, %c16_119], %281 {strides = array<i32>} : memref<16x32xf32, #tpu.memory_space<vmem>>, vector<16x8xf32>,
    %283 = vector.extract_strided_slice %216 {offsets = [0, 24], sizes = [16, 8], strides = [1, 1]} : vector<16x96xf32> to vector<16x8xf32>
    %284 = vector.shape_cast %283 : vector<16x8xf32> to vector<2x8x8xf32>
    %285 = vector.extract_strided_slice %216 {offsets = [0, 56], sizes = [16, 8], strides = [1, 1]} : vector<16x96xf32> to vector<16x8xf32>
    %286 = vector.shape_cast %285 : vector<16x8xf32> to vector<2x8x8xf32>
    %287 = vector.extract_strided_slice %216 {offsets = [0, 88], sizes = [16, 8], strides = [1, 1]} : vector<16x96xf32> to vector<16x8xf32>
    %288 = vector.shape_cast %287 : vector<16x8xf32> to vector<2x8x8xf32>
    "tpu.trace_start"() <{level = 10 : i32, message = "bqd,bkd->bqk"}> : () -> ()
    %cst_120 = arith.constant dense<0.000000e+00> : vector<2x8x8xf32>
    %289 = tpu.matmul %284, %286, %cst_120 {dimension_numbers = #tpu.dot_dimension_numbers<[2], [2], [1], [1], [0, 0, 0, 1, 1, 1], [0], [0]>} : vector<2x8x8xf32>, vector<2x8x8xf32>, vector<2x8x8xf32> -> vector<2x8x8xf32>
    "tpu.trace_stop"() : () -> ()
    %cst_121 = arith.constant 0.353553385 : f32
    %290 = vector.broadcast %cst_121 : f32 to vector<2x8x8xf32>
    %291 = arith.mulf %289, %290 : vector<2x8x8xf32>
    %292 = arith.addf %291, %25 : vector<2x8x8xf32>
    %cst_122 = arith.constant dense<0xFF800000> : vector<2x8xf32>
    %293 = vector.multi_reduction <maximumf>, %292, %cst_122 [2] : vector<2x8x8xf32> to vector<2x8xf32>
    %294 = vector.shape_cast %293 : vector<2x8xf32> to vector<2x8x1xf32>
    %295 = vector.broadcast %294 : vector<2x8x1xf32> to vector<2x8x8xf32>
    %296 = arith.subf %292, %295 : vector<2x8x8xf32>
    %297 = math.exp %296 : vector<2x8x8xf32>
    %cst_123 = arith.constant dense<0.000000e+00> : vector<2x8xf32>
    %298 = vector.multi_reduction <add>, %297, %cst_123 [2] : vector<2x8x8xf32> to vector<2x8xf32>
    %299 = vector.shape_cast %298 : vector<2x8xf32> to vector<2x8x1xf32>
    %300 = vector.broadcast %299 : vector<2x8x1xf32> to vector<2x8x8xf32>
    %301 = arith.divf %297, %300 : vector<2x8x8xf32>
    "tpu.trace_start"() <{level = 10 : i32, message = "bqk,bkd->bqd"}> : () -> ()
    %cst_124 = arith.constant dense<0.000000e+00> : vector<2x8x8xf32>
    %302 = tpu.matmul %301, %288, %cst_124 {dimension_numbers = #tpu.dot_dimension_numbers<[2], [1], [1], [2], [0, 0, 0, 1, 1, 2], [0], [0]>} : vector<2x8x8xf32>, vector<2x8x8xf32>, vector<2x8x8xf32> -> vector<2x8x8xf32>
    "tpu.trace_stop"() : () -> ()
    %303 = vector.shape_cast %302 : vector<2x8x8xf32> to vector<16x8xf32>
    %c0_125 = arith.constant 0 : index
    %c24_126 = arith.constant 24 : index
    %304 = vector.load %arg20[%c0_125, %c24_126] : memref<16x32xf32, #tpu.memory_space<vmem>>, vector<16x8xf32>
    tpu.vector_store %arg20[%c0_125, %c24_126], %303 {strides = array<i32>} : memref<16x32xf32, #tpu.memory_space<vmem>>, vector<16x8xf32>,
    %c0_127 = arith.constant 0 : index
    %c0_128 = arith.constant 0 : index
    %305 = vector.load %arg20[%c0_127, %c0_128] : memref<16x32xf32, #tpu.memory_space<vmem>>, vector<16x32xf32>
    %c1_129 = arith.constant 1 : index
    %c0_130 = arith.constant 0 : index
    %c0_131 = arith.constant 0 : index
    %306 = vector.load %arg7[%c1_129, %c0_130, %c0_131] : memref<2x32x32xf32, #tpu.memory_space<vmem>>, vector<1x32x32xf32>
    %307 = vector.shape_cast %306 : vector<1x32x32xf32> to vector<32x32xf32>
    %cst_132 = arith.constant dense<0.000000e+00> : vector<16x32xf32>
    %308 = tpu.matmul %305, %307, %cst_132 {dimension_numbers = #tpu.dot_dimension_numbers<[1], [0], [0], [1], [0, 0, 1, 1], [], []>} : vector<16x32xf32>, vector<32x32xf32>, vector<16x32xf32> -> vector<16x32xf32>
    %c1_133 = arith.constant 1 : index
    %c0_134 = arith.constant 0 : index
    %c0_135 = arith.constant 0 : index
    %309 = vector.load %arg8[%c1_133, %c0_134, %c0_135] : memref<2x1x32xf32, #tpu.memory_space<vmem>>, vector<1x1x32xf32>
    %310 = vector.shape_cast %309 : vector<1x1x32xf32> to vector<1x32xf32>
    %311 = vector.broadcast %310 : vector<1x32xf32> to vector<16x32xf32>
    %312 = arith.addf %308, %311 : vector<16x32xf32>
    %313 = arith.addf %312, %209 : vector<16x32xf32>
    %c1_136 = arith.constant 1 : index
    %c0_137 = arith.constant 0 : index
    %c0_138 = arith.constant 0 : index
    %314 = vector.load %arg9[%c1_136, %c0_137, %c0_138] : memref<2x1x32xf32, #tpu.memory_space<vmem>>, vector<1x1x32xf32>
    %315 = vector.shape_cast %314 : vector<1x1x32xf32> to vector<1x32xf32>
    %c1_139 = arith.constant 1 : index
    %c0_140 = arith.constant 0 : index
    %c0_141 = arith.constant 0 : index
    %316 = vector.load %arg10[%c1_139, %c0_140, %c0_141] : memref<2x1x32xf32, #tpu.memory_space<vmem>>, vector<1x1x32xf32>
    %317 = vector.shape_cast %316 : vector<1x1x32xf32> to vector<1x32xf32>
    %cst_142 = arith.constant dense<0.000000e+00> : vector<16xf32>
    %318 = vector.multi_reduction <add>, %313, %cst_142 [1] : vector<16x32xf32> to vector<16xf32>
    %319 = vector.shape_cast %318 : vector<16xf32> to vector<16x1xf32>
    %cst_143 = arith.constant 3.200000e+01 : f32
    %320 = vector.broadcast %cst_143 : f32 to vector<16x1xf32>
    %321 = arith.divf %319, %320 : vector<16x1xf32>
    %322 = vector.broadcast %321 : vector<16x1xf32> to vector<16x32xf32>
    %323 = arith.subf %313, %322 : vector<16x32xf32>
    %324 = arith.mulf %323, %323 : vector<16x32xf32>
    %cst_144 = arith.constant dense<0.000000e+00> : vector<16xf32>
    %325 = vector.multi_reduction <add>, %324, %cst_144 [1] : vector<16x32xf32> to vector<16xf32>
    %326 = vector.shape_cast %325 : vector<16xf32> to vector<16x1xf32>
    %cst_145 = arith.constant 3.200000e+01 : f32
    %327 = vector.broadcast %cst_145 : f32 to vector<16x1xf32>
    %328 = arith.divf %326, %327 : vector<16x1xf32>
    %329 = vector.broadcast %321 : vector<16x1xf32> to vector<16x32xf32>
    %330 = arith.subf %313, %329 : vector<16x32xf32>
    %cst_146 = arith.constant 9.99999996E-13 : f32
    %331 = vector.broadcast %cst_146 : f32 to vector<16x1xf32>
    %332 = arith.addf %328, %331 : vector<16x1xf32>
    %333 = math.rsqrt %332 : vector<16x1xf32>
    %334 = vector.broadcast %333 : vector<16x1xf32> to vector<16x32xf32>
    %335 = arith.mulf %330, %334 : vector<16x32xf32>
    %336 = vector.broadcast %315 : vector<1x32xf32> to vector<16x32xf32>
    %337 = arith.mulf %335, %336 : vector<16x32xf32>
    %338 = vector.broadcast %317 : vector<1x32xf32> to vector<16x32xf32>
    %339 = arith.addf %337, %338 : vector<16x32xf32>
    %c1_147 = arith.constant 1 : index
    %c0_148 = arith.constant 0 : index
    %c0_149 = arith.constant 0 : index
    %340 = vector.load %arg11[%c1_147, %c0_148, %c0_149] : memref<2x32x64xf32, #tpu.memory_space<vmem>>, vector<1x32x64xf32>
    %341 = vector.shape_cast %340 : vector<1x32x64xf32> to vector<32x64xf32>
    %cst_150 = arith.constant dense<0.000000e+00> : vector<16x64xf32>
    %342 = tpu.matmul %339, %341, %cst_150 {dimension_numbers = #tpu.dot_dimension_numbers<[1], [0], [0], [1], [0, 0, 1, 1], [], []>} : vector<16x32xf32>, vector<32x64xf32>, vector<16x64xf32> -> vector<16x64xf32>
    %c1_151 = arith.constant 1 : index
    %c0_152 = arith.constant 0 : index
    %c0_153 = arith.constant 0 : index
    %343 = vector.load %arg12[%c1_151, %c0_152, %c0_153] : memref<2x1x64xf32, #tpu.memory_space<vmem>>, vector<1x1x64xf32>
    %344 = vector.shape_cast %343 : vector<1x1x64xf32> to vector<1x64xf32>
    %345 = vector.broadcast %344 : vector<1x64xf32> to vector<16x64xf32>
    %346 = arith.addf %342, %345 : vector<16x64xf32>
    %347 = arith.mulf %346, %346 : vector<16x64xf32>
    %348 = arith.mulf %346, %347 : vector<16x64xf32>
    %cst_154 = arith.constant 4.471500e-02 : f32
    %349 = vector.broadcast %cst_154 : f32 to vector<16x64xf32>
    %350 = arith.mulf %349, %348 : vector<16x64xf32>
    %351 = arith.addf %346, %350 : vector<16x64xf32>
    %cst_155 = arith.constant 0.797884583 : f32
    %352 = vector.broadcast %cst_155 : f32 to vector<16x64xf32>
    %353 = arith.mulf %352, %351 : vector<16x64xf32>
    %354 = math.tanh %353 : vector<16x64xf32>
    %cst_156 = arith.constant 1.000000e+00 : f32
    %355 = vector.broadcast %cst_156 : f32 to vector<16x64xf32>
    %356 = arith.addf %355, %354 : vector<16x64xf32>
    %cst_157 = arith.constant 5.000000e-01 : f32
    %357 = vector.broadcast %cst_157 : f32 to vector<16x64xf32>
    %358 = arith.mulf %357, %356 : vector<16x64xf32>
    %359 = arith.mulf %346, %358 : vector<16x64xf32>
    %c1_158 = arith.constant 1 : index
    %c0_159 = arith.constant 0 : index
    %c0_160 = arith.constant 0 : index
    %360 = vector.load %arg13[%c1_158, %c0_159, %c0_160] : memref<2x64x32xf32, #tpu.memory_space<vmem>>, vector<1x64x32xf32>
    %361 = vector.shape_cast %360 : vector<1x64x32xf32> to vector<64x32xf32>
    %cst_161 = arith.constant dense<0.000000e+00> : vector<16x32xf32>
    %362 = tpu.matmul %359, %361, %cst_161 {dimension_numbers = #tpu.dot_dimension_numbers<[1], [0], [0], [1], [0, 0, 1, 1], [], []>} : vector<16x64xf32>, vector<64x32xf32>, vector<16x32xf32> -> vector<16x32xf32>
    %c1_162 = arith.constant 1 : index
    %c0_163 = arith.constant 0 : index
    %c0_164 = arith.constant 0 : index
    %363 = vector.load %arg14[%c1_162, %c0_163, %c0_164] : memref<2x1x32xf32, #tpu.memory_space<vmem>>, vector<1x1x32xf32>
    %364 = vector.shape_cast %363 : vector<1x1x32xf32> to vector<1x32xf32>
    %365 = vector.broadcast %364 : vector<1x32xf32> to vector<16x32xf32>
    %366 = arith.addf %362, %365 : vector<16x32xf32>
    %367 = arith.addf %366, %339 : vector<16x32xf32>
    %c1_165 = arith.constant 1 : index
    %c0_166 = arith.constant 0 : index
    %c0_167 = arith.constant 0 : index
    %368 = vector.load %arg15[%c1_165, %c0_166, %c0_167] : memref<2x1x32xf32, #tpu.memory_space<vmem>>, vector<1x1x32xf32>
    %369 = vector.shape_cast %368 : vector<1x1x32xf32> to vector<1x32xf32>
    %c1_168 = arith.constant 1 : index
    %c0_169 = arith.constant 0 : index
    %c0_170 = arith.constant 0 : index
    %370 = vector.load %arg16[%c1_168, %c0_169, %c0_170] : memref<2x1x32xf32, #tpu.memory_space<vmem>>, vector<1x1x32xf32>
    %371 = vector.shape_cast %370 : vector<1x1x32xf32> to vector<1x32xf32>
    %cst_171 = arith.constant dense<0.000000e+00> : vector<16xf32>
    %372 = vector.multi_reduction <add>, %367, %cst_171 [1] : vector<16x32xf32> to vector<16xf32>
    %373 = vector.shape_cast %372 : vector<16xf32> to vector<16x1xf32>
    %cst_172 = arith.constant 3.200000e+01 : f32
    %374 = vector.broadcast %cst_172 : f32 to vector<16x1xf32>
    %375 = arith.divf %373, %374 : vector<16x1xf32>
    %376 = vector.broadcast %375 : vector<16x1xf32> to vector<16x32xf32>
    %377 = arith.subf %367, %376 : vector<16x32xf32>
    %378 = arith.mulf %377, %377 : vector<16x32xf32>
    %cst_173 = arith.constant dense<0.000000e+00> : vector<16xf32>
    %379 = vector.multi_reduction <add>, %378, %cst_173 [1] : vector<16x32xf32> to vector<16xf32>
    %380 = vector.shape_cast %379 : vector<16xf32> to vector<16x1xf32>
    %cst_174 = arith.constant 3.200000e+01 : f32
    %381 = vector.broadcast %cst_174 : f32 to vector<16x1xf32>
    %382 = arith.divf %380, %381 : vector<16x1xf32>
    %383 = vector.broadcast %375 : vector<16x1xf32> to vector<16x32xf32>
    %384 = arith.subf %367, %383 : vector<16x32xf32>
    %cst_175 = arith.constant 9.99999996E-13 : f32
    %385 = vector.broadcast %cst_175 : f32 to vector<16x1xf32>
    %386 = arith.addf %382, %385 : vector<16x1xf32>
    %387 = math.rsqrt %386 : vector<16x1xf32>
    %388 = vector.broadcast %387 : vector<16x1xf32> to vector<16x32xf32>
    %389 = arith.mulf %384, %388 : vector<16x32xf32>
    %390 = vector.broadcast %369 : vector<1x32xf32> to vector<16x32xf32>
    %391 = arith.mulf %389, %390 : vector<16x32xf32>
    %392 = vector.broadcast %371 : vector<1x32xf32> to vector<16x32xf32>
    %393 = arith.addf %391, %392 : vector<16x32xf32>
    %c0_176 = arith.constant 0 : index
    %c0_177 = arith.constant 0 : index
    %394 = vector.load %arg17[%c0_176, %c0_177] : memref<32x64xf32, #tpu.memory_space<vmem>>, vector<32x64xf32>
    %cst_178 = arith.constant dense<0.000000e+00> : vector<16x64xf32>
    %395 = tpu.matmul %393, %394, %cst_178 {dimension_numbers = #tpu.dot_dimension_numbers<[1], [0], [0], [1], [0, 0, 1, 1], [], []>} : vector<16x32xf32>, vector<32x64xf32>, vector<16x64xf32> -> vector<16x64xf32>
    %c0_179 = arith.constant 0 : index
    %c0_180 = arith.constant 0 : index
    %396 = vector.load %arg18[%c0_179, %c0_180] : memref<1x64xf32, #tpu.memory_space<vmem>>, vector<1x64xf32>
    %397 = vector.broadcast %396 : vector<1x64xf32> to vector<16x64xf32>
    %398 = arith.addf %395, %397 : vector<16x64xf32>
    %c0_181 = arith.constant 0 : index
    %c0_182 = arith.constant 0 : index
    %399 = vector.load %arg2[%c0_181, %c0_182] : memref<16x1xi32, #tpu.memory_space<vmem>>, vector<16x1xi32>
    %cst_183 = arith.constant dense<0xFF800000> : vector<16xf32>
    %400 = vector.multi_reduction <maximumf>, %398, %cst_183 [1] : vector<16x64xf32> to vector<16xf32>
    %401 = vector.shape_cast %400 : vector<16xf32> to vector<16x1xf32>
    %402 = vector.broadcast %401 : vector<16x1xf32> to vector<16x64xf32>
    %403 = arith.subf %398, %402 : vector<16x64xf32>
    %404 = math.exp %403 : vector<16x64xf32>
    %cst_184 = arith.constant dense<0.000000e+00> : vector<16xf32>
    %405 = vector.multi_reduction <add>, %404, %cst_184 [1] : vector<16x64xf32> to vector<16xf32>
    %406 = vector.shape_cast %405 : vector<16xf32> to vector<16x1xf32>
    %407 = math.log %406 : vector<16x1xf32>
    %408 = arith.addf %407, %401 : vector<16x1xf32>
    %409 = tpu.iota {dimensions = array<i32: 1>} : vector<16x64xi32>
    %410 = vector.broadcast %399 : vector<16x1xi32> to vector<16x64xi32>
    %411 = arith.cmpi eq, %409, %410 : vector<16x64xi32>
    %412 = arith.extui %411 : vector<16x64xi1> to vector<16x64xi32>
    %413 = arith.sitofp %412 : vector<16x64xi32> to vector<16x64xf32>
    %414 = arith.mulf %398, %413 : vector<16x64xf32>
    %cst_185 = arith.constant dense<0.000000e+00> : vector<16xf32>
    %415 = vector.multi_reduction <add>, %414, %cst_185 [1] : vector<16x64xf32> to vector<16xf32>
    %416 = vector.shape_cast %415 : vector<16xf32> to vector<16x1xf32>
    %417 = arith.subf %416, %408 : vector<16x1xf32>
    %c-1_i32 = arith.constant -1 : i32
    %418 = vector.broadcast %c-1_i32 : i32 to vector<16x1xi32>
    %419 = arith.cmpi ne, %399, %418 : vector<16x1xi32>
    %420 = arith.extui %419 : vector<16x1xi1> to vector<16x1xi32>
    %421 = arith.sitofp %420 : vector<16x1xi32> to vector<16x1xf32>
    %cst_186 = arith.constant 0.000000e+00 : f32
    %422 = vector.broadcast %cst_186 : f32 to vector<16x1xf32>
    %423 = arith.subf %422, %417 : vector<16x1xf32>
    %424 = arith.mulf %423, %421 : vector<16x1xf32>
    %425 = vector.shape_cast %424 : vector<16x1xf32> to vector<1x16x1xf32>
    %cst_187 = arith.constant dense<0.000000e+00> : vector<1xf32>
    %426 = vector.multi_reduction <add>, %425, %cst_187 [1, 2] : vector<1x16x1xf32> to vector<1xf32>
    %427 = vector.shape_cast %426 : vector<1xf32> to vector<1x1x1xf32>
    %428 = vector.extract %427[0, 0, 0] : f32 from vector<1x1x1xf32>
    %429 = vector.shape_cast %421 : vector<16x1xf32> to vector<1x16x1xf32>
    %cst_188 = arith.constant dense<0.000000e+00> : vector<1xf32>
    %430 = vector.multi_reduction <add>, %429, %cst_188 [1, 2] : vector<1x16x1xf32> to vector<1xf32>
    %431 = vector.shape_cast %430 : vector<1xf32> to vector<1x1x1xf32>
    %432 = vector.extract %431[0, 0, 0] : f32 from vector<1x1x1xf32>
    %433 = arith.divf %428, %432 : f32
    %434 = vector.broadcast %433 : f32 to vector<1x1xf32>
    %c0_189 = arith.constant 0 : index
    %c0_190 = arith.constant 0 : index
    %435 = vector.load %arg19[%c0_189, %c0_190] : memref<1x1xf32, #tpu.memory_space<vmem>>, vector<1x1xf32>
    tpu.vector_store %arg19[%c0_189, %c0_190], %434 {strides = array<i32>} : memref<1x1xf32, #tpu.memory_space<vmem>>, vector<1x1xf32>,
    return
  }
}

</mosaic_0001>

<llo_original>
// kernel: train_step.1
$region0: #{train_step.1}
  #allocation0 [shape = 'u32[]', space=smem, size = 0x4, offset = 0x4, fixed_abs, tag = 'smem constant byte address 0x4 - core index']
  #allocation1 [shape = 'u32[144,128]{1,0:T(1,128)}', space=vmem, size = 0x12000, scoped, tag = 'internal scratch']
  #allocation2 [shape = 'f32[16,32]{1,0:T(8,128)}', space=vmem, size = 0x2000, scoped, tag = 'scratch operand']
  %s0 = inlined_call_operand.vmem [shape: f32[16,32], index: 0, kind: input, shape index: {}]
  %s1 = inlined_call_operand.vmem [shape: f32[2,8,8], index: 1, kind: input, shape index: {}]
  %s2 = inlined_call_operand.vmem [shape: s32[16,1], index: 2, kind: input, shape index: {}]
  %s3 = inlined_call_operand.vmem [shape: f32[1,32], index: 3, kind: input, shape index: {}]
  %s4 = inlined_call_operand.vmem [shape: f32[1,32], index: 4, kind: input, shape index: {}]
  %s5 = inlined_call_operand.vmem [shape: f32[2,32,96], index: 5, kind: input, shape index: {}]
  %s6 = inlined_call_operand.vmem [shape: f32[2,1,96], index: 6, kind: input, shape index: {}]
  %s7 = inlined_call_operand.vmem [shape: f32[2,32,32], index: 7, kind: input, shape index: {}]
  %s8 = inlined_call_operand.vmem [shape: f32[2,1,32], index: 8, kind: input, shape index: {}]
  %s9 = inlined_call_operand.vmem [shape: f32[2,1,32], index: 9, kind: input, shape index: {}]
  %s10 = inlined_call_operand.vmem [shape: f32[2,1,32], index: 10, kind: input, shape index: {}]
  %s11 = inlined_call_operand.vmem [shape: f32[2,32,64], index: 11, kind: input, shape index: {}]
  %s12 = inlined_call_operand.vmem [shape: f32[2,1,64], index: 12, kind: input, shape index: {}]
  %s13 = inlined_call_operand.vmem [shape: f32[2,64,32], index: 13, kind: input, shape index: {}]
  %s14 = inlined_call_operand.vmem [shape: f32[2,1,32], index: 14, kind: input, shape index: {}]
  %s15 = inlined_call_operand.vmem [shape: f32[2,1,32], index: 15, kind: input, shape index: {}]
  %s16 = inlined_call_operand.vmem [shape: f32[2,1,32], index: 16, kind: input, shape index: {}]
  %s17 = inlined_call_operand.vmem [shape: f32[32,64], index: 17, kind: input, shape index: {}]
  %s18 = inlined_call_operand.vmem [shape: f32[1,64], index: 18, kind: input, shape index: {}]
  %s19 = inlined_call_operand.hbm [shape: f32[1,1], index: 19, kind: output, shape index: {}]
  %s20 = sld [smem:[#allocation0]]
  $region86: #{train_step.1} parent=0
    _
  %s22 = ssub.s32 1, %s20
  %s23 = scalar_select 0, %s22, %s20
  $region1: #{train_step.1} parent=0
    #allocation3 [shape = 'u8[512]{0}', space=vmem, size = 0x400, scoped, tag = 'output window, operand 0, single buffered']
    #allocation4 [shape = 's32[1]{0}', space=sflag, size = 0x4, scoped, tag = 'scoped memory for train_step.1']
    %24 = vsyncpa [#allocation4], 0
    // Predicated region
    $region2: #{train_step.1} parent=1 // pred_check
      _
    $region3: #{train_step.1} parent=1 // pred_check_branch
      %26 = sbr.rel (0) target = $region5
    $region4: #{train_step.1} parent=1 // pred_region
      _
    $region5: #{train_step.1} parent=1 // pred_fallthru
      _
    // Predicated region
    $region6: #{train_step.1} parent=1 // pred_check
      _
    $region7: #{train_step.1} parent=1 // pred_check_branch
      %28 = sbr.rel (0) target = $region9
    $region8: #{train_step.1} parent=1 // pred_region
      _
    $region9: #{train_step.1} parent=1 // pred_fallthru
      _
    // Predicated region
    $region10: #{train_step.1} parent=1 // pred_check
      _
    $region11: #{train_step.1} parent=1 // pred_check_branch
      %30 = sbr.rel (0) target = $region13
    $region12: #{train_step.1} parent=1 // pred_region
      _
    $region13: #{train_step.1} parent=1 // pred_fallthru
      _
    // Predicated region
    $region14: #{train_step.1} parent=1 // pred_check
      _
    $region15: #{train_step.1} parent=1 // pred_check_branch
      %32 = sbr.rel (0) target = $region17
    $region16: #{train_step.1} parent=1 // pred_region
      _
    $region17: #{train_step.1} parent=1 // pred_fallthru
      _
    // Predicated region
    $region18: #{train_step.1} parent=1 // pred_check
      _
    $region19: #{train_step.1} parent=1 // pred_check_branch
      %34 = sbr.rel (0) target = $region21
    $region20: #{train_step.1} parent=1 // pred_region
      _
    $region21: #{train_step.1} parent=1 // pred_fallthru
      _
    // Predicated region
    $region22: #{train_step.1} parent=1 // pred_check
      _
    $region23: #{train_step.1} parent=1 // pred_check_branch
      %36 = sbr.rel (0) target = $region25
    $region24: #{train_step.1} parent=1 // pred_region
      _
    $region25: #{train_step.1} parent=1 // pred_fallthru
      _
    // Predicated region
    $region26: #{train_step.1} parent=1 // pred_check
      _
    $region27: #{train_step.1} parent=1 // pred_check_branch
      %38 = sbr.rel (0) target = $region29
    $region28: #{train_step.1} parent=1 // pred_region
      _
    $region29: #{train_step.1} parent=1 // pred_fallthru
      _
    // Predicated region
    $region30: #{train_step.1} parent=1 // pred_check
      _
    $region31: #{train_step.1} parent=1 // pred_check_branch
      %40 = sbr.rel (0) target = $region33
    $region32: #{train_step.1} parent=1 // pred_region
      _
    $region33: #{train_step.1} parent=1 // pred_fallthru
      _
    // Predicated region
    $region34: #{train_step.1} parent=1 // pred_check
      _
    $region35: #{train_step.1} parent=1 // pred_check_branch
      %42 = sbr.rel (0) target = $region37
    $region36: #{train_step.1} parent=1 // pred_region
      _
    $region37: #{train_step.1} parent=1 // pred_fallthru
      _
    // Predicated region
    $region38: #{train_step.1} parent=1 // pred_check
      _
    $region39: #{train_step.1} parent=1 // pred_check_branch
      %44 = sbr.rel (0) target = $region41
    $region40: #{train_step.1} parent=1 // pred_region
      _
    $region41: #{train_step.1} parent=1 // pred_fallthru
      _
    // Predicated region
    $region42: #{train_step.1} parent=1 // pred_check
      _
    $region43: #{train_step.1} parent=1 // pred_check_branch
      %46 = sbr.rel (0) target = $region45
    $region44: #{train_step.1} parent=1 // pred_region
      _
    $region45: #{train_step.1} parent=1 // pred_fallthru
      _
    // Predicated region
    $region46: #{train_step.1} parent=1 // pred_check
      _
    $region47: #{train_step.1} parent=1 // pred_check_branch
      %48 = sbr.rel (0) target = $region49
    $region48: #{train_step.1} parent=1 // pred_region
      _
    $region49: #{train_step.1} parent=1 // pred_fallthru
      _
    // Predicated region
    $region50: #{train_step.1} parent=1 // pred_check
      _
    $region51: #{train_step.1} parent=1 // pred_check_branch
      %50 = sbr.rel (0) target = $region53
    $region52: #{train_step.1} parent=1 // pred_region
      _
    $region53: #{train_step.1} parent=1 // pred_fallthru
      _
    // Predicated region
    $region54: #{train_step.1} parent=1 // pred_check
      _
    $region55: #{train_step.1} parent=1 // pred_check_branch
      %52 = sbr.rel (0) target = $region57
    $region56: #{train_step.1} parent=1 // pred_region
      _
    $region57: #{train_step.1} parent=1 // pred_fallthru
      _
    // Predicated region
    $region58: #{train_step.1} parent=1 // pred_check
      _
    $region59: #{train_step.1} parent=1 // pred_check_branch
      %54 = sbr.rel (0) target = $region61
    $region60: #{train_step.1} parent=1 // pred_region
      _
    $region61: #{train_step.1} parent=1 // pred_fallthru
      _
    // Predicated region
    $region62: #{train_step.1} parent=1 // pred_check
      _
    $region63: #{train_step.1} parent=1 // pred_check_branch
      %56 = sbr.rel (0) target = $region65
    $region64: #{train_step.1} parent=1 // pred_region
      _
    $region65: #{train_step.1} parent=1 // pred_fallthru
      _
    // Predicated region
    $region66: #{train_step.1} parent=1 // pred_check
      _
    $region67: #{train_step.1} parent=1 // pred_check_branch
      %58 = sbr.rel (0) target = $region69
    $region68: #{train_step.1} parent=1 // pred_region
      _
    $region69: #{train_step.1} parent=1 // pred_fallthru
      _
    // Predicated region
    $region70: #{train_step.1} parent=1 // pred_check
      _
    $region71: #{train_step.1} parent=1 // pred_check_branch
      %60 = sbr.rel (0) target = $region73
    $region72: #{train_step.1} parent=1 // pred_region
      _
    $region73: #{train_step.1} parent=1 // pred_fallthru
      _
    // Predicated region
    $region74: #{train_step.1} parent=1 // pred_check
      _
    $region75: #{train_step.1} parent=1 // pred_check_branch
      %62 = sbr.rel (0) target = $region77
    $region76: #{train_step.1} parent=1 // pred_region
      _
    $region77: #{train_step.1} parent=1 // pred_fallthru
      _
    %v63 = vld [vmem:[%s0] sm:$0xff]
    %v64 = vld [vmem:[%s0 + $0x8] sm:$0xff]
    %v65 = vld [vmem:[%s3] sm:$0x1]
    %v66 = vld [vmem:[%s4] sm:$0x1]
    %vm67 = vcmask 261120
    %v68 = vsel %vm67, %v63, 0.0
    %69 = vadd.xlane.f32.xlu0 %v68
    %v70 = vpop.xlane.xlu0 %69
    %v71 = vsel %vm67, %v64, 0.0
    %72 = vadd.xlane.f32.xlu0 %v71
    %v73 = vpop.xlane.xlu0 %72
    %v74 = vrcp.pop 32.0
    %v75 = vmul.f32 %v70, %v74
    %v76 = vmul.f32 %v73, %v74
    %v77 = vsub.f32 %v63, %v75
    %v78 = vsub.f32 %v64, %v76
    %v79 = vmul.f32 %v77, %v77
    %v80 = vmul.f32 %v78, %v78
    %v81 = vsel %vm67, %v79, 0.0
    %82 = vadd.xlane.f32.xlu0 %v81
    %v83 = vpop.xlane.xlu0 %82
    %v84 = vsel %vm67, %v80, 0.0
    %85 = vadd.xlane.f32.xlu0 %v84
    %v86 = vpop.xlane.xlu0 %85
    %v87 = vmul.f32 %v83, %v74
    %v88 = vmul.f32 %v86, %v74
    %v89 = vadd.f32 %v87, 1e-12
    %v90 = vadd.f32 %v88, 1e-12
    %v91 = vrsqrt.pop %v89
    %v92 = vrsqrt.pop %v90
    %v93 = vmul.f32 %v77, %v91
    %v94 = vmul.f32 %v78, %v92
    %v96 = vlaneseq
    %v97 = vshrl.u32 %v96, 7
    %v98 = vsub.s32 0, %v97
    %v99 = vrot.slane %v65, %v98
    %v101 = vmul.f32 %v93, %v99
    %v102 = vmul.f32 %v94, %v99
    %v104 = vlaneseq
    %v105 = vshrl.u32 %v104, 7
    %v106 = vsub.s32 0, %v105
    %v107 = vrot.slane %v66, %v106
    %v109 = vadd.f32 %v101, %v107
    %v110 = vadd.f32 %v102, %v107
    %v111 = vld [vmem:[%s1] sm:$0xff]
    %v112 = vld [vmem:[%s1 + $0x8] sm:$0xff]
    %v113 = vld [vmem:[%s5] sm:$0xff]
    %v114 = vld [vmem:[%s5 + $0x8] sm:$0xff]
    %v115 = vld [vmem:[%s5 + $0x10] sm:$0xff]
    %v116 = vld [vmem:[%s5 + $0x18] sm:$0xff]
    %v117 = vld [vmem:[%s6] sm:$0x1]
    %v119 = vlaneseq
    %v120 = vshrl.u32 %v119, 7
    %v121 = vsub.s32 0, %v120
    %v122 = vrot.slane %v117, %v121
    %v125 = vsel %vm67, %v109, 0
    %v128 = vsel %vm67, %v110, 0
    %130 = vmatprep.subr.mxu0 0.0
    %131 = vmatpush1.msra.mxu0 0.0
    %132 = vmatprep.subr.mxu0 0.0
    %133 = vmatpush1.msra.mxu0 0.0
    %134 = vmatprep.subr.mxu0 0.0
    %135 = vmatpush1.msra.mxu0 0.0
    %136 = vmatprep.subr.mxu0 0.0
    %137 = vmatpush1.msra.mxu0 0.0
    %138 = vmatprep.subr.mxu0 0.0
    %139 = vmatpush1.msra.mxu0 0.0
    %140 = vmatprep.subr.mxu0 0.0
    %141 = vmatpush1.msra.mxu0 0.0
    %142 = vmatprep.subr.mxu0 0.0
    %143 = vmatpush1.msra.mxu0 0.0
    %144 = vmatprep.subr.mxu0 0.0
    %145 = vmatpush1.msra.mxu0 0.0
    %146 = vmatprep.subr.mxu0 0.0
    %147 = vmatpush1.msra.mxu0 0.0
    %148 = vmatprep.subr.mxu0 0.0
    %149 = vmatpush1.msra.mxu0 0.0
    %150 = vmatprep.subr.mxu0 0.0
    %151 = vmatpush1.msra.mxu0 0.0
    %152 = vmatprep.subr.mxu0 0.0
    %153 = vmatpush1.msra.mxu0 0.0
    %154 = vmatprep.subr.mxu0 0.0
    %155 = vmatpush1.msra.mxu0 %v116
    %156 = vmatprep.subr.mxu0 0.0
    %157 = vmatpush1.msra.mxu0 %v115
    %158 = vmatprep.subr.mxu0 0.0
    %159 = vmatpush1.msra.mxu0 %v114
    %160 = vmatprep.subr.mxu0 0.0
    %161 = vmatpush1.msra.mxu0 %v113
    %162 = vmatprep.subr.mxu0 0.0
    %163 = vmatpush2.msra.mxu0 0.0
    %164 = vmatprep.subr.mxu0 0.0
    %165 = vmatpush2.msra.mxu0 0.0
    %166 = vmatprep.subr.mxu0 0.0
    %167 = vmatpush2.msra.mxu0 0.0
    %168 = vmatprep.subr.mxu0 0.0
    %169 = vmatpush2.msra.mxu0 0.0
    %170 = vmatprep.subr.mxu0 0.0
    %171 = vmatpush2.msra.mxu0 0.0
    %172 = vmatprep.subr.mxu0 0.0
    %173 = vmatpush2.msra.mxu0 0.0
    %174 = vmatprep.subr.mxu0 0.0
    %175 = vmatpush2.msra.mxu0 0.0
    %176 = vmatprep.subr.mxu0 0.0
    %177 = vmatpush2.msra.mxu0 0.0
    %178 = vmatprep.subr.mxu0 0.0
    %179 = vmatpush2.msra.mxu0 0.0
    %180 = vmatprep.subr.mxu0 0.0
    %181 = vmatpush2.msra.mxu0 0.0
    %182 = vmatprep.subr.mxu0 0.0
    %183 = vmatpush2.msra.mxu0 0.0
    %184 = vmatprep.subr.mxu0 0.0
    %185 = vmatpush2.msra.mxu0 0.0
    %186 = vmatprep.subr.mxu0 0.0
    %187 = vmatpush2.msra.mxu0 0.0
    %188 = vmatprep.subr.mxu0 0.0
    %189 = vmatpush2.msra.mxu0 0.0
    %190 = vmatprep.subr.mxu0 0.0
    %191 = vmatpush2.msra.mxu0 0.0
    %192 = vmatprep.subr.mxu0 0.0
    %193 = vmatpush2.msra.mxu0 0.0
    %194 = vmatprep.mubr.f32.mxu0 0.0
    %195 = vmatmul.mubr.f32.gmra.mxu0 %v125
    %v196 = vpop.f32.mrf.mxu0
    %v197 = vadd.f32 %v122, %v196
    %v198 = vpop.f32.mrf.mxu0
    %199 = vmatprep.mubr.f32.mxu0 0.0
    %200 = vmatmul.mubr.f32.gmra.mxu0 %v128
    %v201 = vpop.f32.mrf.mxu0
    %v202 = vadd.f32 %v122, %v201
    %v203 = vpop.f32.mrf.mxu0
    %204 = vdwg.mxu0
    %206 = vrot.lane.b32.xlu0 %v197, 96
    %v207 = vpop.permute.xlu0 %206
    %vm208 = vcmask 64512
    %v209 = vsel %vm208, %v197, 0
    %v211 = vsel %vm208, %v207, 0
    %213 = vmatprep.subr.mxu0 0.0
    %214 = vmatpush1.xpose.msra.mxu0 0.0
    %215 = vmatprep.subr.mxu0 0.0
    %216 = vmatpush1.xpose.msra.mxu0 0.0
    %217 = vmatprep.subr.mxu0 0.0
    %218 = vmatpush1.xpose.msra.mxu0 0.0
    %219 = vmatprep.subr.mxu0 0.0
    %220 = vmatpush1.xpose.msra.mxu0 0.0
    %221 = vmatprep.subr.mxu0 0.0
    %222 = vmatpush1.xpose.msra.mxu0 0.0
    %223 = vmatprep.subr.mxu0 0.0
    %224 = vmatpush1.xpose.msra.mxu0 0.0
    %225 = vmatprep.subr.mxu0 0.0
    %226 = vmatpush1.xpose.msra.mxu0 0.0
    %227 = vmatprep.subr.mxu0 0.0
    %228 = vmatpush1.xpose.msra.mxu0 0.0
    %229 = vmatprep.subr.mxu0 0.0
    %230 = vmatpush1.xpose.msra.mxu0 0.0
    %231 = vmatprep.subr.mxu0 0.0
    %232 = vmatpush1.xpose.msra.mxu0 0.0
    %233 = vmatprep.subr.mxu0 0.0
    %234 = vmatpush1.xpose.msra.mxu0 0.0
    %235 = vmatprep.subr.mxu0 0.0
    %236 = vmatpush1.xpose.msra.mxu0 0.0
    %237 = vmatprep.subr.mxu0 0.0
    %238 = vmatpush1.xpose.msra.mxu0 0.0
    %239 = vmatprep.subr.mxu0 0.0
    %240 = vmatpush1.xpose.msra.mxu0 0.0
    %241 = vmatprep.subr.mxu0 0.0
    %242 = vmatpush1.xpose.msra.mxu0 0.0
    %243 = vmatprep.subr.mxu0 0.0
    %244 = vmatpush1.xpose.msra.mxu0 %v211
    %245 = vmatprep.subr.mxu0 0.0
    %246 = vmatpush2.xpose.msra.mxu0 0.0
    %247 = vmatprep.subr.mxu0 0.0
    %248 = vmatpush2.xpose.msra.mxu0 0.0
    %249 = vmatprep.subr.mxu0 0.0
    %250 = vmatpush2.xpose.msra.mxu0 0.0
    %251 = vmatprep.subr.mxu0 0.0
    %252 = vmatpush2.xpose.msra.mxu0 0.0
    %253 = vmatprep.subr.mxu0 0.0
    %254 = vmatpush2.xpose.msra.mxu0 0.0
    %255 = vmatprep.subr.mxu0 0.0
    %256 = vmatpush2.xpose.msra.mxu0 0.0
    %257 = vmatprep.subr.mxu0 0.0
    %258 = vmatpush2.xpose.msra.mxu0 0.0
    %259 = vmatprep.subr.mxu0 0.0
    %260 = vmatpush2.xpose.msra.mxu0 0.0
    %261 = vmatprep.subr.mxu0 0.0
    %262 = vmatpush2.xpose.msra.mxu0 0.0
    %263 = vmatprep.subr.mxu0 0.0
    %264 = vmatpush2.xpose.msra.mxu0 0.0
    %265 = vmatprep.subr.mxu0 0.0
    %266 = vmatpush2.xpose.msra.mxu0 0.0
    %267 = vmatprep.subr.mxu0 0.0
    %268 = vmatpush2.xpose.msra.mxu0 0.0
    %269 = vmatprep.subr.mxu0 0.0
    %270 = vmatpush2.xpose.msra.mxu0 0.0
    %271 = vmatprep.subr.mxu0 0.0
    %272 = vmatpush2.xpose.msra.mxu0 0.0
    %273 = vmatprep.subr.mxu0 0.0
    %274 = vmatpush2.xpose.msra.mxu0 0.0
    %275 = vmatprep.subr.mxu0 0.0
    %276 = vmatpush2.xpose.msra.mxu0 0.0
    %277 = vmatprep.mubr.f32.mxu0 0.0
    %278 = vmatmul.mubr.f32.gmra.mxu0 %v209
    %v279 = vpop.f32.mrf.mxu0
    %v280 = vadd.f32 0.0, %v279
    %v281 = vpop.f32.mrf.mxu0
    %282 = vdwg.mxu0
    %284 = vrot.lane.b32.xlu0 %v202, 96
    %v285 = vpop.permute.xlu0 %284
    %v286 = vsel %vm208, %v202, 0
    %v288 = vsel %vm208, %v285, 0
    %290 = vmatprep.subr.mxu0 0.0
    %291 = vmatpush1.xpose.msra.mxu0 0.0
    %292 = vmatprep.subr.mxu0 0.0
    %293 = vmatpush1.xpose.msra.mxu0 0.0
    %294 = vmatprep.subr.mxu0 0.0
    %295 = vmatpush1.xpose.msra.mxu0 0.0
    %296 = vmatprep.subr.mxu0 0.0
    %297 = vmatpush1.xpose.msra.mxu0 0.0
    %298 = vmatprep.subr.mxu0 0.0
    %299 = vmatpush1.xpose.msra.mxu0 0.0
    %300 = vmatprep.subr.mxu0 0.0
    %301 = vmatpush1.xpose.msra.mxu0 0.0
    %302 = vmatprep.subr.mxu0 0.0
    %303 = vmatpush1.xpose.msra.mxu0 0.0
    %304 = vmatprep.subr.mxu0 0.0
    %305 = vmatpush1.xpose.msra.mxu0 0.0
    %306 = vmatprep.subr.mxu0 0.0
    %307 = vmatpush1.xpose.msra.mxu0 0.0
    %308 = vmatprep.subr.mxu0 0.0
    %309 = vmatpush1.xpose.msra.mxu0 0.0
    %310 = vmatprep.subr.mxu0 0.0
    %311 = vmatpush1.xpose.msra.mxu0 0.0
    %312 = vmatprep.subr.mxu0 0.0
    %313 = vmatpush1.xpose.msra.mxu0 0.0
    %314 = vmatprep.subr.mxu0 0.0
    %315 = vmatpush1.xpose.msra.mxu0 0.0
    %316 = vmatprep.subr.mxu0 0.0
    %317 = vmatpush1.xpose.msra.mxu0 0.0
    %318 = vmatprep.subr.mxu0 0.0
    %319 = vmatpush1.xpose.msra.mxu0 0.0
    %320 = vmatprep.subr.mxu0 0.0
    %321 = vmatpush1.xpose.msra.mxu0 %v288
    %322 = vmatprep.subr.mxu0 0.0
    %323 = vmatpush2.xpose.msra.mxu0 0.0
    %324 = vmatprep.subr.mxu0 0.0
    %325 = vmatpush2.xpose.msra.mxu0 0.0
    %326 = vmatprep.subr.mxu0 0.0
    %327 = vmatpush2.xpose.msra.mxu0 0.0
    %328 = vmatprep.subr.mxu0 0.0
    %329 = vmatpush2.xpose.msra.mxu0 0.0
    %330 = vmatprep.subr.mxu0 0.0
    %331 = vmatpush2.xpose.msra.mxu0 0.0
    %332 = vmatprep.subr.mxu0 0.0
    %333 = vmatpush2.xpose.msra.mxu0 0.0
    %334 = vmatprep.subr.mxu0 0.0
    %335 = vmatpush2.xpose.msra.mxu0 0.0
    %336 = vmatprep.subr.mxu0 0.0
    %337 = vmatpush2.xpose.msra.mxu0 0.0
    %338 = vmatprep.subr.mxu0 0.0
    %339 = vmatpush2.xpose.msra.mxu0 0.0
    %340 = vmatprep.subr.mxu0 0.0
    %341 = vmatpush2.xpose.msra.mxu0 0.0
    %342 = vmatprep.subr.mxu0 0.0
    %343 = vmatpush2.xpose.msra.mxu0 0.0
    %344 = vmatprep.subr.mxu0 0.0
    %345 = vmatpush2.xpose.msra.mxu0 0.0
    %346 = vmatprep.subr.mxu0 0.0
    %347 = vmatpush2.xpose.msra.mxu0 0.0
    %348 = vmatprep.subr.mxu0 0.0
    %349 = vmatpush2.xpose.msra.mxu0 0.0
    %350 = vmatprep.subr.mxu0 0.0
    %351 = vmatpush2.xpose.msra.mxu0 0.0
    %352 = vmatprep.subr.mxu0 0.0
    %353 = vmatpush2.xpose.msra.mxu0 0.0
    %354 = vmatprep.mubr.f32.mxu0 0.0
    %355 = vmatmul.mubr.f32.gmra.mxu0 %v286
    %v356 = vpop.f32.mrf.mxu0
    %v357 = vadd.f32 0.0, %v356
    %v358 = vpop.f32.mrf.mxu0
    %359 = vdwg.mxu0
    %v360 = vmul.f32 %v280, 0.35355338
    %v361 = vmul.f32 %v357, 0.35355338
    %v362 = vadd.f32 %v360, %v111
    %v363 = vadd.f32 %v361, %v112
    %v364 = vsel %vm208, %v362, -inf
    %365 = vmax.xlane.f32.xlu0 %v364
    %v366 = vpop.xlane.xlu0 %365
    %v367 = vsel %vm208, %v363, -inf
    %368 = vmax.xlane.f32.xlu0 %v367
    %v369 = vpop.xlane.xlu0 %368
    %v370 = vsub.f32 %v362, %v366
    %v371 = vsub.f32 %v363, %v369
    %v372 = vmul.f32 %v370, 1.442695
    %v373 = vpow.pop %v372
    %v374 = vmul.f32 %v371, 1.442695
    %v375 = vpow.pop %v374
    %v376 = vsel %vm208, %v373, 0.0
    %377 = vadd.xlane.f32.xlu0 %v376
    %v378 = vpop.xlane.xlu0 %377
    %v379 = vsel %vm208, %v375, 0.0
    %380 = vadd.xlane.f32.xlu0 %v379
    %v381 = vpop.xlane.xlu0 %380
    %v382 = vrcp.pop %v378
    %v383 = vmul.f32 %v373, %v382
    %v384 = vrcp.pop %v381
    %v385 = vmul.f32 %v375, %v384
    %386 = vrot.lane.b32.xlu0 %v197, 64
    %v387 = vpop.permute.xlu0 %386
    %v390 = vsel %vm208, %v383, 0
    %392 = vmatprep.subr.mxu0 0.0
    %393 = vmatpush1.msra.mxu0 0.0
    %394 = vmatprep.subr.mxu0 0.0
    %395 = vmatpush1.msra.mxu0 0.0
    %396 = vmatprep.subr.mxu0 0.0
    %397 = vmatpush1.msra.mxu0 0.0
    %398 = vmatprep.subr.mxu0 0.0
    %399 = vmatpush1.msra.mxu0 0.0
    %400 = vmatprep.subr.mxu0 0.0
    %401 = vmatpush1.msra.mxu0 0.0
    %402 = vmatprep.subr.mxu0 0.0
    %403 = vmatpush1.msra.mxu0 0.0
    %404 = vmatprep.subr.mxu0 0.0
    %405 = vmatpush1.msra.mxu0 0.0
    %406 = vmatprep.subr.mxu0 0.0
    %407 = vmatpush1.msra.mxu0 0.0
    %408 = vmatprep.subr.mxu0 0.0
    %409 = vmatpush1.msra.mxu0 0.0
    %410 = vmatprep.subr.mxu0 0.0
    %411 = vmatpush1.msra.mxu0 0.0
    %412 = vmatprep.subr.mxu0 0.0
    %413 = vmatpush1.msra.mxu0 0.0
    %414 = vmatprep.subr.mxu0 0.0
    %415 = vmatpush1.msra.mxu0 0.0
    %416 = vmatprep.subr.mxu0 0.0
    %417 = vmatpush1.msra.mxu0 0.0
    %418 = vmatprep.subr.mxu0 0.0
    %419 = vmatpush1.msra.mxu0 0.0
    %420 = vmatprep.subr.mxu0 0.0
    %421 = vmatpush1.msra.mxu0 0.0
    %422 = vmatprep.subr.mxu0 0.0
    %423 = vmatpush1.msra.mxu0 %v387
    %424 = vmatprep.subr.mxu0 0.0
    %425 = vmatpush2.msra.mxu0 0.0
    %426 = vmatprep.subr.mxu0 0.0
    %427 = vmatpush2.msra.mxu0 0.0
    %428 = vmatprep.subr.mxu0 0.0
    %429 = vmatpush2.msra.mxu0 0.0
    %430 = vmatprep.subr.mxu0 0.0
    %431 = vmatpush2.msra.mxu0 0.0
    %432 = vmatprep.subr.mxu0 0.0
    %433 = vmatpush2.msra.mxu0 0.0
    %434 = vmatprep.subr.mxu0 0.0
    %435 = vmatpush2.msra.mxu0 0.0
    %436 = vmatprep.subr.mxu0 0.0
    %437 = vmatpush2.msra.mxu0 0.0
    %438 = vmatprep.subr.mxu0 0.0
    %439 = vmatpush2.msra.mxu0 0.0
    %440 = vmatprep.subr.mxu0 0.0
    %441 = vmatpush2.msra.mxu0 0.0
    %442 = vmatprep.subr.mxu0 0.0
    %443 = vmatpush2.msra.mxu0 0.0
    %444 = vmatprep.subr.mxu0 0.0
    %445 = vmatpush2.msra.mxu0 0.0
    %446 = vmatprep.subr.mxu0 0.0
    %447 = vmatpush2.msra.mxu0 0.0
    %448 = vmatprep.subr.mxu0 0.0
    %449 = vmatpush2.msra.mxu0 0.0
    %450 = vmatprep.subr.mxu0 0.0
    %451 = vmatpush2.msra.mxu0 0.0
    %452 = vmatprep.subr.mxu0 0.0
    %453 = vmatpush2.msra.mxu0 0.0
    %454 = vmatprep.subr.mxu0 0.0
    %455 = vmatpush2.msra.mxu0 0.0
    %456 = vmatprep.mubr.f32.mxu0 0.0
    %457 = vmatmul.mubr.f32.gmra.mxu0 %v390
    %v458 = vpop.f32.mrf.mxu0
    %v459 = vadd.f32 0.0, %v458
    %v460 = vpop.f32.mrf.mxu0
    %461 = vdwg.mxu0
    %462 = vrot.lane.b32.xlu0 %v202, 64
    %v463 = vpop.permute.xlu0 %462
    %v466 = vsel %vm208, %v385, 0
    %468 = vmatprep.subr.mxu0 0.0
    %469 = vmatpush1.msra.mxu0 0.0
    %470 = vmatprep.subr.mxu0 0.0
    %471 = vmatpush1.msra.mxu0 0.0
    %472 = vmatprep.subr.mxu0 0.0
    %473 = vmatpush1.msra.mxu0 0.0
    %474 = vmatprep.subr.mxu0 0.0
    %475 = vmatpush1.msra.mxu0 0.0
    %476 = vmatprep.subr.mxu0 0.0
    %477 = vmatpush1.msra.mxu0 0.0
    %478 = vmatprep.subr.mxu0 0.0
    %479 = vmatpush1.msra.mxu0 0.0
    %480 = vmatprep.subr.mxu0 0.0
    %481 = vmatpush1.msra.mxu0 0.0
    %482 = vmatprep.subr.mxu0 0.0
    %483 = vmatpush1.msra.mxu0 0.0
    %484 = vmatprep.subr.mxu0 0.0
    %485 = vmatpush1.msra.mxu0 0.0
    %486 = vmatprep.subr.mxu0 0.0
    %487 = vmatpush1.msra.mxu0 0.0
    %488 = vmatprep.subr.mxu0 0.0
    %489 = vmatpush1.msra.mxu0 0.0
    %490 = vmatprep.subr.mxu0 0.0
    %491 = vmatpush1.msra.mxu0 0.0
    %492 = vmatprep.subr.mxu0 0.0
    %493 = vmatpush1.msra.mxu0 0.0
    %494 = vmatprep.subr.mxu0 0.0
    %495 = vmatpush1.msra.mxu0 0.0
    %496 = vmatprep.subr.mxu0 0.0
    %497 = vmatpush1.msra.mxu0 0.0
    %498 = vmatprep.subr.mxu0 0.0
    %499 = vmatpush1.msra.mxu0 %v463
    %500 = vmatprep.subr.mxu0 0.0
    %501 = vmatpush2.msra.mxu0 0.0
    %502 = vmatprep.subr.mxu0 0.0
    %503 = vmatpush2.msra.mxu0 0.0
    %504 = vmatprep.subr.mxu0 0.0
    %505 = vmatpush2.msra.mxu0 0.0
    %506 = vmatprep.subr.mxu0 0.0
    %507 = vmatpush2.msra.mxu0 0.0
    %508 = vmatprep.subr.mxu0 0.0
    %509 = vmatpush2.msra.mxu0 0.0
    %510 = vmatprep.subr.mxu0 0.0
    %511 = vmatpush2.msra.mxu0 0.0
    %512 = vmatprep.subr.mxu0 0.0
    %513 = vmatpush2.msra.mxu0 0.0
    %514 = vmatprep.subr.mxu0 0.0
    %515 = vmatpush2.msra.mxu0 0.0
    %516 = vmatprep.subr.mxu0 0.0
    %517 = vmatpush2.msra.mxu0 0.0
    %518 = vmatprep.subr.mxu0 0.0
    %519 = vmatpush2.msra.mxu0 0.0
    %520 = vmatprep.subr.mxu0 0.0
    %521 = vmatpush2.msra.mxu0 0.0
    %522 = vmatprep.subr.mxu0 0.0
    %523 = vmatpush2.msra.mxu0 0.0
    %524 = vmatprep.subr.mxu0 0.0
    %525 = vmatpush2.msra.mxu0 0.0
    %526 = vmatprep.subr.mxu0 0.0
    %527 = vmatpush2.msra.mxu0 0.0
    %528 = vmatprep.subr.mxu0 0.0
    %529 = vmatpush2.msra.mxu0 0.0
    %530 = vmatprep.subr.mxu0 0.0
    %531 = vmatpush2.msra.mxu0 0.0
    %532 = vmatprep.mubr.f32.mxu0 0.0
    %533 = vmatmul.mubr.f32.gmra.mxu0 %v466
    %v534 = vpop.f32.mrf.mxu0
    %v535 = vadd.f32 0.0, %v534
    %v536 = vpop.f32.mrf.mxu0
    %537 = vdwg.mxu0
    %538 = vst.msk [vmem:[#allocation2] sm:$0xff] %vm208, %v459
    %539 = vst.msk [vmem:[#allocation2 + $0x8] sm:$0xff] %vm208, %v535
    %540 = vrot.lane.b32.xlu0 %v197, 120
    %v541 = vpop.permute.xlu0 %540
    %542 = vrot.lane.b32.xlu0 %v197, 88
    %v543 = vpop.permute.xlu0 %542
    %v544 = vsel %vm208, %v541, 0
    %v546 = vsel %vm208, %v543, 0
    %548 = vmatprep.subr.mxu0 0.0
    %549 = vmatpush1.xpose.msra.mxu0 0.0
    %550 = vmatprep.subr.mxu0 0.0
    %551 = vmatpush1.xpose.msra.mxu0 0.0
    %552 = vmatprep.subr.mxu0 0.0
    %553 = vmatpush1.xpose.msra.mxu0 0.0
    %554 = vmatprep.subr.mxu0 0.0
    %555 = vmatpush1.xpose.msra.mxu0 0.0
    %556 = vmatprep.subr.mxu0 0.0
    %557 = vmatpush1.xpose.msra.mxu0 0.0
    %558 = vmatprep.subr.mxu0 0.0
    %559 = vmatpush1.xpose.msra.mxu0 0.0
    %560 = vmatprep.subr.mxu0 0.0
    %561 = vmatpush1.xpose.msra.mxu0 0.0
    %562 = vmatprep.subr.mxu0 0.0
    %563 = vmatpush1.xpose.msra.mxu0 0.0
    %564 = vmatprep.subr.mxu0 0.0
    %565 = vmatpush1.xpose.msra.mxu0 0.0
    %566 = vmatprep.subr.mxu0 0.0
    %567 = vmatpush1.xpose.msra.mxu0 0.0
    %568 = vmatprep.subr.mxu0 0.0
    %569 = vmatpush1.xpose.msra.mxu0 0.0
    %570 = vmatprep.subr.mxu0 0.0
    %571 = vmatpush1.xpose.msra.mxu0 0.0
    %572 = vmatprep.subr.mxu0 0.0
    %573 = vmatpush1.xpose.msra.mxu0 0.0
    %574 = vmatprep.subr.mxu0 0.0
    %575 = vmatpush1.xpose.msra.mxu0 0.0
    %576 = vmatprep.subr.mxu0 0.0
    %577 = vmatpush1.xpose.msra.mxu0 0.0
    %578 = vmatprep.subr.mxu0 0.0
    %579 = vmatpush1.xpose.msra.mxu0 %v546
    %580 = vmatprep.subr.mxu0 0.0
    %581 = vmatpush2.xpose.msra.mxu0 0.0
    %582 = vmatprep.subr.mxu0 0.0
    %583 = vmatpush2.xpose.msra.mxu0 0.0
    %584 = vmatprep.subr.mxu0 0.0
    %585 = vmatpush2.xpose.msra.mxu0 0.0
    %586 = vmatprep.subr.mxu0 0.0
    %587 = vmatpush2.xpose.msra.mxu0 0.0
    %588 = vmatprep.subr.mxu0 0.0
    %589 = vmatpush2.xpose.msra.mxu0 0.0
    %590 = vmatprep.subr.mxu0 0.0
    %591 = vmatpush2.xpose.msra.mxu0 0.0
    %592 = vmatprep.subr.mxu0 0.0
    %593 = vmatpush2.xpose.msra.mxu0 0.0
    %594 = vmatprep.subr.mxu0 0.0
    %595 = vmatpush2.xpose.msra.mxu0 0.0
    %596 = vmatprep.subr.mxu0 0.0
    %597 = vmatpush2.xpose.msra.mxu0 0.0
    %598 = vmatprep.subr.mxu0 0.0
    %599 = vmatpush2.xpose.msra.mxu0 0.0
    %600 = vmatprep.subr.mxu0 0.0
    %601 = vmatpush2.xpose.msra.mxu0 0.0
    %602 = vmatprep.subr.mxu0 0.0
    %603 = vmatpush2.xpose.msra.mxu0 0.0
    %604 = vmatprep.subr.mxu0 0.0
    %605 = vmatpush2.xpose.msra.mxu0 0.0
    %606 = vmatprep.subr.mxu0 0.0
    %607 = vmatpush2.xpose.msra.mxu0 0.0
    %608 = vmatprep.subr.mxu0 0.0
    %609 = vmatpush2.xpose.msra.mxu0 0.0
    %610 = vmatprep.subr.mxu0 0.0
    %611 = vmatpush2.xpose.msra.mxu0 0.0
    %612 = vmatprep.mubr.f32.mxu0 0.0
    %613 = vmatmul.mubr.f32.gmra.mxu0 %v544
    %v614 = vpop.f32.mrf.mxu0
    %v615 = vadd.f32 0.0, %v614
    %v616 = vpop.f32.mrf.mxu0
    %617 = vdwg.mxu0
    %618 = vrot.lane.b32.xlu0 %v202, 120
    %v619 = vpop.permute.xlu0 %618
    %620 = vrot.lane.b32.xlu0 %v202, 88
    %v621 = vpop.permute.xlu0 %620
    %v622 = vsel %vm208, %v619, 0
    %v624 = vsel %vm208, %v621, 0
    %626 = vmatprep.subr.mxu0 0.0
    %627 = vmatpush1.xpose.msra.mxu0 0.0
    %628 = vmatprep.subr.mxu0 0.0
    %629 = vmatpush1.xpose.msra.mxu0 0.0
    %630 = vmatprep.subr.mxu0 0.0
    %631 = vmatpush1.xpose.msra.mxu0 0.0
    %632 = vmatprep.subr.mxu0 0.0
    %633 = vmatpush1.xpose.msra.mxu0 0.0
    %634 = vmatprep.subr.mxu0 0.0
    %635 = vmatpush1.xpose.msra.mxu0 0.0
    %636 = vmatprep.subr.mxu0 0.0
    %637 = vmatpush1.xpose.msra.mxu0 0.0
    %638 = vmatprep.subr.mxu0 0.0
    %639 = vmatpush1.xpose.msra.mxu0 0.0
    %640 = vmatprep.subr.mxu0 0.0
    %641 = vmatpush1.xpose.msra.mxu0 0.0
    %642 = vmatprep.subr.mxu0 0.0
    %643 = vmatpush1.xpose.msra.mxu0 0.0
    %644 = vmatprep.subr.mxu0 0.0
    %645 = vmatpush1.xpose.msra.mxu0 0.0
    %646 = vmatprep.subr.mxu0 0.0
    %647 = vmatpush1.xpose.msra.mxu0 0.0
    %648 = vmatprep.subr.mxu0 0.0
    %649 = vmatpush1.xpose.msra.mxu0 0.0
    %650 = vmatprep.subr.mxu0 0.0
    %651 = vmatpush1.xpose.msra.mxu0 0.0
    %652 = vmatprep.subr.mxu0 0.0
    %653 = vmatpush1.xpose.msra.mxu0 0.0
    %654 = vmatprep.subr.mxu0 0.0
    %655 = vmatpush1.xpose.msra.mxu0 0.0
    %656 = vmatprep.subr.mxu0 0.0
    %657 = vmatpush1.xpose.msra.mxu0 %v624
    %658 = vmatprep.subr.mxu0 0.0
    %659 = vmatpush2.xpose.msra.mxu0 0.0
    %660 = vmatprep.subr.mxu0 0.0
    %661 = vmatpush2.xpose.msra.mxu0 0.0
    %662 = vmatprep.subr.mxu0 0.0
    %663 = vmatpush2.xpose.msra.mxu0 0.0
    %664 = vmatprep.subr.mxu0 0.0
    %665 = vmatpush2.xpose.msra.mxu0 0.0
    %666 = vmatprep.subr.mxu0 0.0
    %667 = vmatpush2.xpose.msra.mxu0 0.0
    %668 = vmatprep.subr.mxu0 0.0
    %669 = vmatpush2.xpose.msra.mxu0 0.0
    %670 = vmatprep.subr.mxu0 0.0
    %671 = vmatpush2.xpose.msra.mxu0 0.0
    %672 = vmatprep.subr.mxu0 0.0
    %673 = vmatpush2.xpose.msra.mxu0 0.0
    %674 = vmatprep.subr.mxu0 0.0
    %675 = vmatpush2.xpose.msra.mxu0 0.0
    %676 = vmatprep.subr.mxu0 0.0
    %677 = vmatpush2.xpose.msra.mxu0 0.0
    %678 = vmatprep.subr.mxu0 0.0
    %679 = vmatpush2.xpose.msra.mxu0 0.0
    %680 = vmatprep.subr.mxu0 0.0
    %681 = vmatpush2.xpose.msra.mxu0 0.0
    %682 = vmatprep.subr.mxu0 0.0
    %683 = vmatpush2.xpose.msra.mxu0 0.0
    %684 = vmatprep.subr.mxu0 0.0
    %685 = vmatpush2.xpose.msra.mxu0 0.0
    %686 = vmatprep.subr.mxu0 0.0
    %687 = vmatpush2.xpose.msra.mxu0 0.0
    %688 = vmatprep.subr.mxu0 0.0
    %689 = vmatpush2.xpose.msra.mxu0 0.0
    %690 = vmatprep.mubr.f32.mxu0 0.0
    %691 = vmatmul.mubr.f32.gmra.mxu0 %v622
    %v692 = vpop.f32.mrf.mxu0
    %v693 = vadd.f32 0.0, %v692
    %v694 = vpop.f32.mrf.mxu0
    %695 = vdwg.mxu0
    %v696 = vmul.f32 %v615, 0.35355338
    %v697 = vmul.f32 %v693, 0.35355338
    %v698 = vadd.f32 %v696, %v111
    %v699 = vadd.f32 %v697, %v112
    %v700 = vsel %vm208, %v698, -inf
    %701 = vmax.xlane.f32.xlu0 %v700
    %v702 = vpop.xlane.xlu0 %701
    %v703 = vsel %vm208, %v699, -inf
    %704 = vmax.xlane.f32.xlu0 %v703
    %v705 = vpop.xlane.xlu0 %704
    %v706 = vsub.f32 %v698, %v702
    %v707 = vsub.f32 %v699, %v705
    %v708 = vmul.f32 %v706, 1.442695
    %v709 = vpow.pop %v708
    %v710 = vmul.f32 %v707, 1.442695
    %v711 = vpow.pop %v710
    %v712 = vsel %vm208, %v709, 0.0
    %713 = vadd.xlane.f32.xlu0 %v712
    %v714 = vpop.xlane.xlu0 %713
    %v715 = vsel %vm208, %v711, 0.0
    %716 = vadd.xlane.f32.xlu0 %v715
    %v717 = vpop.xlane.xlu0 %716
    %v718 = vrcp.pop %v714
    %v719 = vmul.f32 %v709, %v718
    %v720 = vrcp.pop %v717
    %v721 = vmul.f32 %v711, %v720
    %722 = vrot.lane.b32.xlu0 %v197, 56
    %v723 = vpop.permute.xlu0 %722
    %v726 = vsel %vm208, %v719, 0
    %728 = vmatprep.subr.mxu0 0.0
    %729 = vmatpush1.msra.mxu0 0.0
    %730 = vmatprep.subr.mxu0 0.0
    %731 = vmatpush1.msra.mxu0 0.0
    %732 = vmatprep.subr.mxu0 0.0
    %733 = vmatpush1.msra.mxu0 0.0
    %734 = vmatprep.subr.mxu0 0.0
    %735 = vmatpush1.msra.mxu0 0.0
    %736 = vmatprep.subr.mxu0 0.0
    %737 = vmatpush1.msra.mxu0 0.0
    %738 = vmatprep.subr.mxu0 0.0
    %739 = vmatpush1.msra.mxu0 0.0
    %740 = vmatprep.subr.mxu0 0.0
    %741 = vmatpush1.msra.mxu0 0.0
    %742 = vmatprep.subr.mxu0 0.0
    %743 = vmatpush1.msra.mxu0 0.0
    %744 = vmatprep.subr.mxu0 0.0
    %745 = vmatpush1.msra.mxu0 0.0
    %746 = vmatprep.subr.mxu0 0.0
    %747 = vmatpush1.msra.mxu0 0.0
    %748 = vmatprep.subr.mxu0 0.0
    %749 = vmatpush1.msra.mxu0 0.0
    %750 = vmatprep.subr.mxu0 0.0
    %751 = vmatpush1.msra.mxu0 0.0
    %752 = vmatprep.subr.mxu0 0.0
    %753 = vmatpush1.msra.mxu0 0.0
    %754 = vmatprep.subr.mxu0 0.0
    %755 = vmatpush1.msra.mxu0 0.0
    %756 = vmatprep.subr.mxu0 0.0
    %757 = vmatpush1.msra.mxu0 0.0
    %758 = vmatprep.subr.mxu0 0.0
    %759 = vmatpush1.msra.mxu0 %v723
    %760 = vmatprep.subr.mxu0 0.0
    %761 = vmatpush2.msra.mxu0 0.0
    %762 = vmatprep.subr.mxu0 0.0
    %763 = vmatpush2.msra.mxu0 0.0
    %764 = vmatprep.subr.mxu0 0.0
    %765 = vmatpush2.msra.mxu0 0.0
    %766 = vmatprep.subr.mxu0 0.0
    %767 = vmatpush2.msra.mxu0 0.0
    %768 = vmatprep.subr.mxu0 0.0
    %769 = vmatpush2.msra.mxu0 0.0
    %770 = vmatprep.subr.mxu0 0.0
    %771 = vmatpush2.msra.mxu0 0.0
    %772 = vmatprep.subr.mxu0 0.0
    %773 = vmatpush2.msra.mxu0 0.0
    %774 = vmatprep.subr.mxu0 0.0
    %775 = vmatpush2.msra.mxu0 0.0
    %776 = vmatprep.subr.mxu0 0.0
    %777 = vmatpush2.msra.mxu0 0.0
    %778 = vmatprep.subr.mxu0 0.0
    %779 = vmatpush2.msra.mxu0 0.0
    %780 = vmatprep.subr.mxu0 0.0
    %781 = vmatpush2.msra.mxu0 0.0
    %782 = vmatprep.subr.mxu0 0.0
    %783 = vmatpush2.msra.mxu0 0.0
    %784 = vmatprep.subr.mxu0 0.0
    %785 = vmatpush2.msra.mxu0 0.0
    %786 = vmatprep.subr.mxu0 0.0
    %787 = vmatpush2.msra.mxu0 0.0
    %788 = vmatprep.subr.mxu0 0.0
    %789 = vmatpush2.msra.mxu0 0.0
    %790 = vmatprep.subr.mxu0 0.0
    %791 = vmatpush2.msra.mxu0 0.0
    %792 = vmatprep.mubr.f32.mxu0 0.0
    %793 = vmatmul.mubr.f32.gmra.mxu0 %v726
    %v794 = vpop.f32.mrf.mxu0
    %v795 = vadd.f32 0.0, %v794
    %v796 = vpop.f32.mrf.mxu0
    %797 = vdwg.mxu0
    %798 = vrot.lane.b32.xlu0 %v202, 56
    %v799 = vpop.permute.xlu0 %798
    %v802 = vsel %vm208, %v721, 0
    %804 = vmatprep.subr.mxu0 0.0
    %805 = vmatpush1.msra.mxu0 0.0
    %806 = vmatprep.subr.mxu0 0.0
    %807 = vmatpush1.msra.mxu0 0.0
    %808 = vmatprep.subr.mxu0 0.0
    %809 = vmatpush1.msra.mxu0 0.0
    %810 = vmatprep.subr.mxu0 0.0
    %811 = vmatpush1.msra.mxu0 0.0
    %812 = vmatprep.subr.mxu0 0.0
    %813 = vmatpush1.msra.mxu0 0.0
    %814 = vmatprep.subr.mxu0 0.0
    %815 = vmatpush1.msra.mxu0 0.0
    %816 = vmatprep.subr.mxu0 0.0
    %817 = vmatpush1.msra.mxu0 0.0
    %818 = vmatprep.subr.mxu0 0.0
    %819 = vmatpush1.msra.mxu0 0.0
    %820 = vmatprep.subr.mxu0 0.0
    %821 = vmatpush1.msra.mxu0 0.0
    %822 = vmatprep.subr.mxu0 0.0
    %823 = vmatpush1.msra.mxu0 0.0
    %824 = vmatprep.subr.mxu0 0.0
    %825 = vmatpush1.msra.mxu0 0.0
    %826 = vmatprep.subr.mxu0 0.0
    %827 = vmatpush1.msra.mxu0 0.0
    %828 = vmatprep.subr.mxu0 0.0
    %829 = vmatpush1.msra.mxu0 0.0
    %830 = vmatprep.subr.mxu0 0.0
    %831 = vmatpush1.msra.mxu0 0.0
    %832 = vmatprep.subr.mxu0 0.0
    %833 = vmatpush1.msra.mxu0 0.0
    %834 = vmatprep.subr.mxu0 0.0
    %835 = vmatpush1.msra.mxu0 %v799
    %836 = vmatprep.subr.mxu0 0.0
    %837 = vmatpush2.msra.mxu0 0.0
    %838 = vmatprep.subr.mxu0 0.0
    %839 = vmatpush2.msra.mxu0 0.0
    %840 = vmatprep.subr.mxu0 0.0
    %841 = vmatpush2.msra.mxu0 0.0
    %842 = vmatprep.subr.mxu0 0.0
    %843 = vmatpush2.msra.mxu0 0.0
    %844 = vmatprep.subr.mxu0 0.0
    %845 = vmatpush2.msra.mxu0 0.0
    %846 = vmatprep.subr.mxu0 0.0
    %847 = vmatpush2.msra.mxu0 0.0
    %848 = vmatprep.subr.mxu0 0.0
    %849 = vmatpush2.msra.mxu0 0.0
    %850 = vmatprep.subr.mxu0 0.0
    %851 = vmatpush2.msra.mxu0 0.0
    %852 = vmatprep.subr.mxu0 0.0
    %853 = vmatpush2.msra.mxu0 0.0
    %854 = vmatprep.subr.mxu0 0.0
    %855 = vmatpush2.msra.mxu0 0.0
    %856 = vmatprep.subr.mxu0 0.0
    %857 = vmatpush2.msra.mxu0 0.0
    %858 = vmatprep.subr.mxu0 0.0
    %859 = vmatpush2.msra.mxu0 0.0
    %860 = vmatprep.subr.mxu0 0.0
    %861 = vmatpush2.msra.mxu0 0.0
    %862 = vmatprep.subr.mxu0 0.0
    %863 = vmatpush2.msra.mxu0 0.0
    %864 = vmatprep.subr.mxu0 0.0
    %865 = vmatpush2.msra.mxu0 0.0
    %866 = vmatprep.subr.mxu0 0.0
    %867 = vmatpush2.msra.mxu0 0.0
    %868 = vmatprep.mubr.f32.mxu0 0.0
    %869 = vmatmul.mubr.f32.gmra.mxu0 %v802
    %v870 = vpop.f32.mrf.mxu0
    %v871 = vadd.f32 0.0, %v870
    %v872 = vpop.f32.mrf.mxu0
    %873 = vdwg.mxu0
    %876 = vrot.lane.b32.xlu0 %v795, 8
    %v877 = vpop.permute.xlu0 %876
    %878 = vrot.lane.b32.xlu0 %v871, 8
    %v879 = vpop.permute.xlu0 %878
    %vm882 = vcmask 130112
    %883 = vst.msk [vmem:[#allocation2] sm:$0xff] %vm882, %v877
    %884 = vst.msk [vmem:[#allocation2 + $0x8] sm:$0xff] %vm882, %v879
    %885 = vrot.lane.b32.xlu0 %v197, 112
    %v886 = vpop.permute.xlu0 %885
    %887 = vrot.lane.b32.xlu0 %v197, 80
    %v888 = vpop.permute.xlu0 %887
    %v889 = vsel %vm208, %v886, 0
    %v891 = vsel %vm208, %v888, 0
    %893 = vmatprep.subr.mxu0 0.0
    %894 = vmatpush1.xpose.msra.mxu0 0.0
    %895 = vmatprep.subr.mxu0 0.0
    %896 = vmatpush1.xpose.msra.mxu0 0.0
    %897 = vmatprep.subr.mxu0 0.0
    %898 = vmatpush1.xpose.msra.mxu0 0.0
    %899 = vmatprep.subr.mxu0 0.0
    %900 = vmatpush1.xpose.msra.mxu0 0.0
    %901 = vmatprep.subr.mxu0 0.0
    %902 = vmatpush1.xpose.msra.mxu0 0.0
    %903 = vmatprep.subr.mxu0 0.0
    %904 = vmatpush1.xpose.msra.mxu0 0.0
    %905 = vmatprep.subr.mxu0 0.0
    %906 = vmatpush1.xpose.msra.mxu0 0.0
    %907 = vmatprep.subr.mxu0 0.0
    %908 = vmatpush1.xpose.msra.mxu0 0.0
    %909 = vmatprep.subr.mxu0 0.0
    %910 = vmatpush1.xpose.msra.mxu0 0.0
    %911 = vmatprep.subr.mxu0 0.0
    %912 = vmatpush1.xpose.msra.mxu0 0.0
    %913 = vmatprep.subr.mxu0 0.0
    %914 = vmatpush1.xpose.msra.mxu0 0.0
    %915 = vmatprep.subr.mxu0 0.0
    %916 = vmatpush1.xpose.msra.mxu0 0.0
    %917 = vmatprep.subr.mxu0 0.0
    %918 = vmatpush1.xpose.msra.mxu0 0.0
    %919 = vmatprep.subr.mxu0 0.0
    %920 = vmatpush1.xpose.msra.mxu0 0.0
    %921 = vmatprep.subr.mxu0 0.0
    %922 = vmatpush1.xpose.msra.mxu0 0.0
    %923 = vmatprep.subr.mxu0 0.0
    %924 = vmatpush1.xpose.msra.mxu0 %v891
    %925 = vmatprep.subr.mxu0 0.0
    %926 = vmatpush2.xpose.msra.mxu0 0.0
    %927 = vmatprep.subr.mxu0 0.0
    %928 = vmatpush2.xpose.msra.mxu0 0.0
    %929 = vmatprep.subr.mxu0 0.0
    %930 = vmatpush2.xpose.msra.mxu0 0.0
    %931 = vmatprep.subr.mxu0 0.0
    %932 = vmatpush2.xpose.msra.mxu0 0.0
    %933 = vmatprep.subr.mxu0 0.0
    %934 = vmatpush2.xpose.msra.mxu0 0.0
    %935 = vmatprep.subr.mxu0 0.0
    %936 = vmatpush2.xpose.msra.mxu0 0.0
    %937 = vmatprep.subr.mxu0 0.0
    %938 = vmatpush2.xpose.msra.mxu0 0.0
    %939 = vmatprep.subr.mxu0 0.0
    %940 = vmatpush2.xpose.msra.mxu0 0.0
    %941 = vmatprep.subr.mxu0 0.0
    %942 = vmatpush2.xpose.msra.mxu0 0.0
    %943 = vmatprep.subr.mxu0 0.0
    %944 = vmatpush2.xpose.msra.mxu0 0.0
    %945 = vmatprep.subr.mxu0 0.0
    %946 = vmatpush2.xpose.msra.mxu0 0.0
    %947 = vmatprep.subr.mxu0 0.0
    %948 = vmatpush2.xpose.msra.mxu0 0.0
    %949 = vmatprep.subr.mxu0 0.0
    %950 = vmatpush2.xpose.msra.mxu0 0.0
    %951 = vmatprep.subr.mxu0 0.0
    %952 = vmatpush2.xpose.msra.mxu0 0.0
    %953 = vmatprep.subr.mxu0 0.0
    %954 = vmatpush2.xpose.msra.mxu0 0.0
    %955 = vmatprep.subr.mxu0 0.0
    %956 = vmatpush2.xpose.msra.mxu0 0.0
    %957 = vmatprep.mubr.f32.mxu0 0.0
    %958 = vmatmul.mubr.f32.gmra.mxu0 %v889
    %v959 = vpop.f32.mrf.mxu0
    %v960 = vadd.f32 0.0, %v959
    %v961 = vpop.f32.mrf.mxu0
    %962 = vdwg.mxu0
    %963 = vrot.lane.b32.xlu0 %v202, 112
    %v964 = vpop.permute.xlu0 %963
    %965 = vrot.lane.b32.xlu0 %v202, 80
    %v966 = vpop.permute.xlu0 %965
    %v967 = vsel %vm208, %v964, 0
    %v969 = vsel %vm208, %v966, 0
    %971 = vmatprep.subr.mxu0 0.0
    %972 = vmatpush1.xpose.msra.mxu0 0.0
    %973 = vmatprep.subr.mxu0 0.0
    %974 = vmatpush1.xpose.msra.mxu0 0.0
    %975 = vmatprep.subr.mxu0 0.0
    %976 = vmatpush1.xpose.msra.mxu0 0.0
    %977 = vmatprep.subr.mxu0 0.0
    %978 = vmatpush1.xpose.msra.mxu0 0.0
    %979 = vmatprep.subr.mxu0 0.0
    %980 = vmatpush1.xpose.msra.mxu0 0.0
    %981 = vmatprep.subr.mxu0 0.0
    %982 = vmatpush1.xpose.msra.mxu0 0.0
    %983 = vmatprep.subr.mxu0 0.0
    %984 = vmatpush1.xpose.msra.mxu0 0.0
    %985 = vmatprep.subr.mxu0 0.0
    %986 = vmatpush1.xpose.msra.mxu0 0.0
    %987 = vmatprep.subr.mxu0 0.0
    %988 = vmatpush1.xpose.msra.mxu0 0.0
    %989 = vmatprep.subr.mxu0 0.0
    %990 = vmatpush1.xpose.msra.mxu0 0.0
    %991 = vmatprep.subr.mxu0 0.0
    %992 = vmatpush1.xpose.msra.mxu0 0.0
    %993 = vmatprep.subr.mxu0 0.0
    %994 = vmatpush1.xpose.msra.mxu0 0.0
    %995 = vmatprep.subr.mxu0 0.0
    %996 = vmatpush1.xpose.msra.mxu0 0.0
    %997 = vmatprep.subr.mxu0 0.0
    %998 = vmatpush1.xpose.msra.mxu0 0.0
    %999 = vmatprep.subr.mxu0 0.0
    %1000 = vmatpush1.xpose.msra.mxu0 0.0
    %1001 = vmatprep.subr.mxu0 0.0
    %1002 = vmatpush1.xpose.msra.mxu0 %v969
    %1003 = vmatprep.subr.mxu0 0.0
    %1004 = vmatpush2.xpose.msra.mxu0 0.0
    %1005 = vmatprep.subr.mxu0 0.0
    %1006 = vmatpush2.xpose.msra.mxu0 0.0
    %1007 = vmatprep.subr.mxu0 0.0
    %1008 = vmatpush2.xpose.msra.mxu0 0.0
    %1009 = vmatprep.subr.mxu0 0.0
    %1010 = vmatpush2.xpose.msra.mxu0 0.0
    %1011 = vmatprep.subr.mxu0 0.0
    %1012 = vmatpush2.xpose.msra.mxu0 0.0
    %1013 = vmatprep.subr.mxu0 0.0
    %1014 = vmatpush2.xpose.msra.mxu0 0.0
    %1015 = vmatprep.subr.mxu0 0.0
    %1016 = vmatpush2.xpose.msra.mxu0 0.0
    %1017 = vmatprep.subr.mxu0 0.0
    %1018 = vmatpush2.xpose.msra.mxu0 0.0
    %1019 = vmatprep.subr.mxu0 0.0
    %1020 = vmatpush2.xpose.msra.mxu0 0.0
    %1021 = vmatprep.subr.mxu0 0.0
    %1022 = vmatpush2.xpose.msra.mxu0 0.0
    %1023 = vmatprep.subr.mxu0 0.0
    %1024 = vmatpush2.xpose.msra.mxu0 0.0
    %1025 = vmatprep.subr.mxu0 0.0
    %1026 = vmatpush2.xpose.msra.mxu0 0.0
    %1027 = vmatprep.subr.mxu0 0.0
    %1028 = vmatpush2.xpose.msra.mxu0 0.0
    %1029 = vmatprep.subr.mxu0 0.0
    %1030 = vmatpush2.xpose.msra.mxu0 0.0
    %1031 = vmatprep.subr.mxu0 0.0
    %1032 = vmatpush2.xpose.msra.mxu0 0.0
    %1033 = vmatprep.subr.mxu0 0.0
    %1034 = vmatpush2.xpose.msra.mxu0 0.0
    %1035 = vmatprep.mubr.f32.mxu0 0.0
    %1036 = vmatmul.mubr.f32.gmra.mxu0 %v967
    %v1037 = vpop.f32.mrf.mxu0
    %v1038 = vadd.f32 0.0, %v1037
    %v1039 = vpop.f32.mrf.mxu0
    %1040 = vdwg.mxu0
    %v1041 = vmul.f32 %v960, 0.35355338
    %v1042 = vmul.f32 %v1038, 0.35355338
    %v1043 = vadd.f32 %v1041, %v111
    %v1044 = vadd.f32 %v1042, %v112
    %v1045 = vsel %vm208, %v1043, -inf
    %1046 = vmax.xlane.f32.xlu0 %v1045
    %v1047 = vpop.xlane.xlu0 %1046
    %v1048 = vsel %vm208, %v1044, -inf
    %1049 = vmax.xlane.f32.xlu0 %v1048
    %v1050 = vpop.xlane.xlu0 %1049
    %v1051 = vsub.f32 %v1043, %v1047
    %v1052 = vsub.f32 %v1044, %v1050
    %v1053 = vmul.f32 %v1051, 1.442695
    %v1054 = vpow.pop %v1053
    %v1055 = vmul.f32 %v1052, 1.442695
    %v1056 = vpow.pop %v1055
    %v1057 = vsel %vm208, %v1054, 0.0
    %1058 = vadd.xlane.f32.xlu0 %v1057
    %v1059 = vpop.xlane.xlu0 %1058
    %v1060 = vsel %vm208, %v1056, 0.0
    %1061 = vadd.xlane.f32.xlu0 %v1060
    %v1062 = vpop.xlane.xlu0 %1061
    %v1063 = vrcp.pop %v1059
    %v1064 = vmul.f32 %v1054, %v1063
    %v1065 = vrcp.pop %v1062
    %v1066 = vmul.f32 %v1056, %v1065
    %1067 = vrot.lane.b32.xlu0 %v197, 48
    %v1068 = vpop.permute.xlu0 %1067
    %v1071 = vsel %vm208, %v1064, 0
    %1073 = vmatprep.subr.mxu0 0.0
    %1074 = vmatpush1.msra.mxu0 0.0
    %1075 = vmatprep.subr.mxu0 0.0
    %1076 = vmatpush1.msra.mxu0 0.0
    %1077 = vmatprep.subr.mxu0 0.0
    %1078 = vmatpush1.msra.mxu0 0.0
    %1079 = vmatprep.subr.mxu0 0.0
    %1080 = vmatpush1.msra.mxu0 0.0
    %1081 = vmatprep.subr.mxu0 0.0
    %1082 = vmatpush1.msra.mxu0 0.0
    %1083 = vmatprep.subr.mxu0 0.0
    %1084 = vmatpush1.msra.mxu0 0.0
    %1085 = vmatprep.subr.mxu0 0.0
    %1086 = vmatpush1.msra.mxu0 0.0
    %1087 = vmatprep.subr.mxu0 0.0
    %1088 = vmatpush1.msra.mxu0 0.0
    %1089 = vmatprep.subr.mxu0 0.0
    %1090 = vmatpush1.msra.mxu0 0.0
    %1091 = vmatprep.subr.mxu0 0.0
    %1092 = vmatpush1.msra.mxu0 0.0
    %1093 = vmatprep.subr.mxu0 0.0
    %1094 = vmatpush1.msra.mxu0 0.0
    %1095 = vmatprep.subr.mxu0 0.0
    %1096 = vmatpush1.msra.mxu0 0.0
    %1097 = vmatprep.subr.mxu0 0.0
    %1098 = vmatpush1.msra.mxu0 0.0
    %1099 = vmatprep.subr.mxu0 0.0
    %1100 = vmatpush1.msra.mxu0 0.0
    %1101 = vmatprep.subr.mxu0 0.0
    %1102 = vmatpush1.msra.mxu0 0.0
    %1103 = vmatprep.subr.mxu0 0.0
    %1104 = vmatpush1.msra.mxu0 %v1068
    %1105 = vmatprep.subr.mxu0 0.0
    %1106 = vmatpush2.msra.mxu0 0.0
    %1107 = vmatprep.subr.mxu0 0.0
    %1108 = vmatpush2.msra.mxu0 0.0
    %1109 = vmatprep.subr.mxu0 0.0
    %1110 = vmatpush2.msra.mxu0 0.0
    %1111 = vmatprep.subr.mxu0 0.0
    %1112 = vmatpush2.msra.mxu0 0.0
    %1113 = vmatprep.subr.mxu0 0.0
    %1114 = vmatpush2.msra.mxu0 0.0
    %1115 = vmatprep.subr.mxu0 0.0
    %1116 = vmatpush2.msra.mxu0 0.0
    %1117 = vmatprep.subr.mxu0 0.0
    %1118 = vmatpush2.msra.mxu0 0.0
    %1119 = vmatprep.subr.mxu0 0.0
    %1120 = vmatpush2.msra.mxu0 0.0
    %1121 = vmatprep.subr.mxu0 0.0
    %1122 = vmatpush2.msra.mxu0 0.0
    %1123 = vmatprep.subr.mxu0 0.0
    %1124 = vmatpush2.msra.mxu0 0.0
    %1125 = vmatprep.subr.mxu0 0.0
    %1126 = vmatpush2.msra.mxu0 0.0
    %1127 = vmatprep.subr.mxu0 0.0
    %1128 = vmatpush2.msra.mxu0 0.0
    %1129 = vmatprep.subr.mxu0 0.0
    %1130 = vmatpush2.msra.mxu0 0.0
    %1131 = vmatprep.subr.mxu0 0.0
    %1132 = vmatpush2.msra.mxu0 0.0
    %1133 = vmatprep.subr.mxu0 0.0
    %1134 = vmatpush2.msra.mxu0 0.0
    %1135 = vmatprep.subr.mxu0 0.0
    %1136 = vmatpush2.msra.mxu0 0.0
    %1137 = vmatprep.mubr.f32.mxu0 0.0
    %1138 = vmatmul.mubr.f32.gmra.mxu0 %v1071
    %v1139 = vpop.f32.mrf.mxu0
    %v1140 = vadd.f32 0.0, %v1139
    %v1141 = vpop.f32.mrf.mxu0
    %1142 = vdwg.mxu0
    %1143 = vrot.lane.b32.xlu0 %v202, 48
    %v1144 = vpop.permute.xlu0 %1143
    %v1147 = vsel %vm208, %v1066, 0
    %1149 = vmatprep.subr.mxu0 0.0
    %1150 = vmatpush1.msra.mxu0 0.0
    %1151 = vmatprep.subr.mxu0 0.0
    %1152 = vmatpush1.msra.mxu0 0.0
    %1153 = vmatprep.subr.mxu0 0.0
    %1154 = vmatpush1.msra.mxu0 0.0
    %1155 = vmatprep.subr.mxu0 0.0
    %1156 = vmatpush1.msra.mxu0 0.0
    %1157 = vmatprep.subr.mxu0 0.0
    %1158 = vmatpush1.msra.mxu0 0.0
    %1159 = vmatprep.subr.mxu0 0.0
    %1160 = vmatpush1.msra.mxu0 0.0
    %1161 = vmatprep.subr.mxu0 0.0
    %1162 = vmatpush1.msra.mxu0 0.0
    %1163 = vmatprep.subr.mxu0 0.0
    %1164 = vmatpush1.msra.mxu0 0.0
    %1165 = vmatprep.subr.mxu0 0.0
    %1166 = vmatpush1.msra.mxu0 0.0
    %1167 = vmatprep.subr.mxu0 0.0
    %1168 = vmatpush1.msra.mxu0 0.0
    %1169 = vmatprep.subr.mxu0 0.0
    %1170 = vmatpush1.msra.mxu0 0.0
    %1171 = vmatprep.subr.mxu0 0.0
    %1172 = vmatpush1.msra.mxu0 0.0
    %1173 = vmatprep.subr.mxu0 0.0
    %1174 = vmatpush1.msra.mxu0 0.0
    %1175 = vmatprep.subr.mxu0 0.0
    %1176 = vmatpush1.msra.mxu0 0.0
    %1177 = vmatprep.subr.mxu0 0.0
    %1178 = vmatpush1.msra.mxu0 0.0
    %1179 = vmatprep.subr.mxu0 0.0
    %1180 = vmatpush1.msra.mxu0 %v1144
    %1181 = vmatprep.subr.mxu0 0.0
    %1182 = vmatpush2.msra.mxu0 0.0
    %1183 = vmatprep.subr.mxu0 0.0
    %1184 = vmatpush2.msra.mxu0 0.0
    %1185 = vmatprep.subr.mxu0 0.0
    %1186 = vmatpush2.msra.mxu0 0.0
    %1187 = vmatprep.subr.mxu0 0.0
    %1188 = vmatpush2.msra.mxu0 0.0
    %1189 = vmatprep.subr.mxu0 0.0
    %1190 = vmatpush2.msra.mxu0 0.0
    %1191 = vmatprep.subr.mxu0 0.0
    %1192 = vmatpush2.msra.mxu0 0.0
    %1193 = vmatprep.subr.mxu0 0.0
    %1194 = vmatpush2.msra.mxu0 0.0
    %1195 = vmatprep.subr.mxu0 0.0
    %1196 = vmatpush2.msra.mxu0 0.0
    %1197 = vmatprep.subr.mxu0 0.0
    %1198 = vmatpush2.msra.mxu0 0.0
    %1199 = vmatprep.subr.mxu0 0.0
    %1200 = vmatpush2.msra.mxu0 0.0
    %1201 = vmatprep.subr.mxu0 0.0
    %1202 = vmatpush2.msra.mxu0 0.0
    %1203 = vmatprep.subr.mxu0 0.0
    %1204 = vmatpush2.msra.mxu0 0.0
    %1205 = vmatprep.subr.mxu0 0.0
    %1206 = vmatpush2.msra.mxu0 0.0
    %1207 = vmatprep.subr.mxu0 0.0
    %1208 = vmatpush2.msra.mxu0 0.0
    %1209 = vmatprep.subr.mxu0 0.0
    %1210 = vmatpush2.msra.mxu0 0.0
    %1211 = vmatprep.subr.mxu0 0.0
    %1212 = vmatpush2.msra.mxu0 0.0
    %1213 = vmatprep.mubr.f32.mxu0 0.0
    %1214 = vmatmul.mubr.f32.gmra.mxu0 %v1147
    %v1215 = vpop.f32.mrf.mxu0
    %v1216 = vadd.f32 0.0, %v1215
    %v1217 = vpop.f32.mrf.mxu0
    %1218 = vdwg.mxu0
    %1221 = vrot.lane.b32.xlu0 %v1140, 16
    %v1222 = vpop.permute.xlu0 %1221
    %1223 = vrot.lane.b32.xlu0 %v1216, 16
    %v1224 = vpop.permute.xlu0 %1223
    %vm1227 = vcmask 195712
    %1228 = vst.msk [vmem:[#allocation2] sm:$0xff] %vm1227, %v1222
    %1229 = vst.msk [vmem:[#allocation2 + $0x8] sm:$0xff] %vm1227, %v1224
    %1230 = vrot.lane.b32.xlu0 %v197, 104
    %v1231 = vpop.permute.xlu0 %1230
    %1232 = vrot.lane.b32.xlu0 %v197, 72
    %v1233 = vpop.permute.xlu0 %1232
    %v1234 = vsel %vm208, %v1231, 0
    %v1236 = vsel %vm208, %v1233, 0
    %1238 = vmatprep.subr.mxu0 0.0
    %1239 = vmatpush1.xpose.msra.mxu0 0.0
    %1240 = vmatprep.subr.mxu0 0.0
    %1241 = vmatpush1.xpose.msra.mxu0 0.0
    %1242 = vmatprep.subr.mxu0 0.0
    %1243 = vmatpush1.xpose.msra.mxu0 0.0
    %1244 = vmatprep.subr.mxu0 0.0
    %1245 = vmatpush1.xpose.msra.mxu0 0.0
    %1246 = vmatprep.subr.mxu0 0.0
    %1247 = vmatpush1.xpose.msra.mxu0 0.0
    %1248 = vmatprep.subr.mxu0 0.0
    %1249 = vmatpush1.xpose.msra.mxu0 0.0
    %1250 = vmatprep.subr.mxu0 0.0
    %1251 = vmatpush1.xpose.msra.mxu0 0.0
    %1252 = vmatprep.subr.mxu0 0.0
    %1253 = vmatpush1.xpose.msra.mxu0 0.0
    %1254 = vmatprep.subr.mxu0 0.0
    %1255 = vmatpush1.xpose.msra.mxu0 0.0
    %1256 = vmatprep.subr.mxu0 0.0
    %1257 = vmatpush1.xpose.msra.mxu0 0.0
    %1258 = vmatprep.subr.mxu0 0.0
    %1259 = vmatpush1.xpose.msra.mxu0 0.0
    %1260 = vmatprep.subr.mxu0 0.0
    %1261 = vmatpush1.xpose.msra.mxu0 0.0
    %1262 = vmatprep.subr.mxu0 0.0
    %1263 = vmatpush1.xpose.msra.mxu0 0.0
    %1264 = vmatprep.subr.mxu0 0.0
    %1265 = vmatpush1.xpose.msra.mxu0 0.0
    %1266 = vmatprep.subr.mxu0 0.0
    %1267 = vmatpush1.xpose.msra.mxu0 0.0
    %1268 = vmatprep.subr.mxu0 0.0
    %1269 = vmatpush1.xpose.msra.mxu0 %v1236
    %1270 = vmatprep.subr.mxu0 0.0
    %1271 = vmatpush2.xpose.msra.mxu0 0.0
    %1272 = vmatprep.subr.mxu0 0.0
    %1273 = vmatpush2.xpose.msra.mxu0 0.0
    %1274 = vmatprep.subr.mxu0 0.0
    %1275 = vmatpush2.xpose.msra.mxu0 0.0
    %1276 = vmatprep.subr.mxu0 0.0
    %1277 = vmatpush2.xpose.msra.mxu0 0.0
    %1278 = vmatprep.subr.mxu0 0.0
    %1279 = vmatpush2.xpose.msra.mxu0 0.0
    %1280 = vmatprep.subr.mxu0 0.0
    %1281 = vmatpush2.xpose.msra.mxu0 0.0
    %1282 = vmatprep.subr.mxu0 0.0
    %1283 = vmatpush2.xpose.msra.mxu0 0.0
    %1284 = vmatprep.subr.mxu0 0.0
    %1285 = vmatpush2.xpose.msra.mxu0 0.0
    %1286 = vmatprep.subr.mxu0 0.0
    %1287 = vmatpush2.xpose.msra.mxu0 0.0
    %1288 = vmatprep.subr.mxu0 0.0
    %1289 = vmatpush2.xpose.msra.mxu0 0.0
    %1290 = vmatprep.subr.mxu0 0.0
    %1291 = vmatpush2.xpose.msra.mxu0 0.0
    %1292 = vmatprep.subr.mxu0 0.0
    %1293 = vmatpush2.xpose.msra.mxu0 0.0
    %1294 = vmatprep.subr.mxu0 0.0
    %1295 = vmatpush2.xpose.msra.mxu0 0.0
    %1296 = vmatprep.subr.mxu0 0.0
    %1297 = vmatpush2.xpose.msra.mxu0 0.0
    %1298 = vmatprep.subr.mxu0 0.0
    %1299 = vmatpush2.xpose.msra.mxu0 0.0
    %1300 = vmatprep.subr.mxu0 0.0
    %1301 = vmatpush2.xpose.msra.mxu0 0.0
    %1302 = vmatprep.mubr.f32.mxu0 0.0
    %1303 = vmatmul.mubr.f32.gmra.mxu0 %v1234
    %v1304 = vpop.f32.mrf.mxu0
    %v1305 = vadd.f32 0.0, %v1304
    %v1306 = vpop.f32.mrf.mxu0
    %1307 = vdwg.mxu0
    %1308 = vrot.lane.b32.xlu0 %v202, 104
    %v1309 = vpop.permute.xlu0 %1308
    %1310 = vrot.lane.b32.xlu0 %v202, 72
    %v1311 = vpop.permute.xlu0 %1310
    %v1312 = vsel %vm208, %v1309, 0
    %v1314 = vsel %vm208, %v1311, 0
    %1316 = vmatprep.subr.mxu0 0.0
    %1317 = vmatpush1.xpose.msra.mxu0 0.0
    %1318 = vmatprep.subr.mxu0 0.0
    %1319 = vmatpush1.xpose.msra.mxu0 0.0
    %1320 = vmatprep.subr.mxu0 0.0
    %1321 = vmatpush1.xpose.msra.mxu0 0.0
    %1322 = vmatprep.subr.mxu0 0.0
    %1323 = vmatpush1.xpose.msra.mxu0 0.0
    %1324 = vmatprep.subr.mxu0 0.0
    %1325 = vmatpush1.xpose.msra.mxu0 0.0
    %1326 = vmatprep.subr.mxu0 0.0
    %1327 = vmatpush1.xpose.msra.mxu0 0.0
    %1328 = vmatprep.subr.mxu0 0.0
    %1329 = vmatpush1.xpose.msra.mxu0 0.0
    %1330 = vmatprep.subr.mxu0 0.0
    %1331 = vmatpush1.xpose.msra.mxu0 0.0
    %1332 = vmatprep.subr.mxu0 0.0
    %1333 = vmatpush1.xpose.msra.mxu0 0.0
    %1334 = vmatprep.subr.mxu0 0.0
    %1335 = vmatpush1.xpose.msra.mxu0 0.0
    %1336 = vmatprep.subr.mxu0 0.0
    %1337 = vmatpush1.xpose.msra.mxu0 0.0
    %1338 = vmatprep.subr.mxu0 0.0
    %1339 = vmatpush1.xpose.msra.mxu0 0.0
    %1340 = vmatprep.subr.mxu0 0.0
    %1341 = vmatpush1.xpose.msra.mxu0 0.0
    %1342 = vmatprep.subr.mxu0 0.0
    %1343 = vmatpush1.xpose.msra.mxu0 0.0
    %1344 = vmatprep.subr.mxu0 0.0
    %1345 = vmatpush1.xpose.msra.mxu0 0.0
    %1346 = vmatprep.subr.mxu0 0.0
    %1347 = vmatpush1.xpose.msra.mxu0 %v1314
    %1348 = vmatprep.subr.mxu0 0.0
    %1349 = vmatpush2.xpose.msra.mxu0 0.0
    %1350 = vmatprep.subr.mxu0 0.0
    %1351 = vmatpush2.xpose.msra.mxu0 0.0
    %1352 = vmatprep.subr.mxu0 0.0
    %1353 = vmatpush2.xpose.msra.mxu0 0.0
    %1354 = vmatprep.subr.mxu0 0.0
    %1355 = vmatpush2.xpose.msra.mxu0 0.0
    %1356 = vmatprep.subr.mxu0 0.0
    %1357 = vmatpush2.xpose.msra.mxu0 0.0
    %1358 = vmatprep.subr.mxu0 0.0
    %1359 = vmatpush2.xpose.msra.mxu0 0.0
    %1360 = vmatprep.subr.mxu0 0.0
    %1361 = vmatpush2.xpose.msra.mxu0 0.0
    %1362 = vmatprep.subr.mxu0 0.0
    %1363 = vmatpush2.xpose.msra.mxu0 0.0
    %1364 = vmatprep.subr.mxu0 0.0
    %1365 = vmatpush2.xpose.msra.mxu0 0.0
    %1366 = vmatprep.subr.mxu0 0.0
    %1367 = vmatpush2.xpose.msra.mxu0 0.0
    %1368 = vmatprep.subr.mxu0 0.0
    %1369 = vmatpush2.xpose.msra.mxu0 0.0
    %1370 = vmatprep.subr.mxu0 0.0
    %1371 = vmatpush2.xpose.msra.mxu0 0.0
    %1372 = vmatprep.subr.mxu0 0.0
    %1373 = vmatpush2.xpose.msra.mxu0 0.0
    %1374 = vmatprep.subr.mxu0 0.0
    %1375 = vmatpush2.xpose.msra.mxu0 0.0
    %1376 = vmatprep.subr.mxu0 0.0
    %1377 = vmatpush2.xpose.msra.mxu0 0.0
    %1378 = vmatprep.subr.mxu0 0.0
    %1379 = vmatpush2.xpose.msra.mxu0 0.0
    %1380 = vmatprep.mubr.f32.mxu0 0.0
    %1381 = vmatmul.mubr.f32.gmra.mxu0 %v1312
    %v1382 = vpop.f32.mrf.mxu0
    %v1383 = vadd.f32 0.0, %v1382
    %v1384 = vpop.f32.mrf.mxu0
    %1385 = vdwg.mxu0
    %v1386 = vmul.f32 %v1305, 0.35355338
    %v1387 = vmul.f32 %v1383, 0.35355338
    %v1388 = vadd.f32 %v1386, %v111
    %v1389 = vadd.f32 %v1387, %v112
    %v1390 = vsel %vm208, %v1388, -inf
    %1391 = vmax.xlane.f32.xlu0 %v1390
    %v1392 = vpop.xlane.xlu0 %1391
    %v1393 = vsel %vm208, %v1389, -inf
    %1394 = vmax.xlane.f32.xlu0 %v1393
    %v1395 = vpop.xlane.xlu0 %1394
    %v1396 = vsub.f32 %v1388, %v1392
    %v1397 = vsub.f32 %v1389, %v1395
    %v1398 = vmul.f32 %v1396, 1.442695
    %v1399 = vpow.pop %v1398
    %v1400 = vmul.f32 %v1397, 1.442695
    %v1401 = vpow.pop %v1400
    %v1402 = vsel %vm208, %v1399, 0.0
    %1403 = vadd.xlane.f32.xlu0 %v1402
    %v1404 = vpop.xlane.xlu0 %1403
    %v1405 = vsel %vm208, %v1401, 0.0
    %1406 = vadd.xlane.f32.xlu0 %v1405
    %v1407 = vpop.xlane.xlu0 %1406
    %v1408 = vrcp.pop %v1404
    %v1409 = vmul.f32 %v1399, %v1408
    %v1410 = vrcp.pop %v1407
    %v1411 = vmul.f32 %v1401, %v1410
    %1412 = vrot.lane.b32.xlu0 %v197, 40
    %v1413 = vpop.permute.xlu0 %1412
    %v1416 = vsel %vm208, %v1409, 0
    %1418 = vmatprep.subr.mxu0 0.0
    %1419 = vmatpush1.msra.mxu0 0.0
    %1420 = vmatprep.subr.mxu0 0.0
    %1421 = vmatpush1.msra.mxu0 0.0
    %1422 = vmatprep.subr.mxu0 0.0
    %1423 = vmatpush1.msra.mxu0 0.0
    %1424 = vmatprep.subr.mxu0 0.0
    %1425 = vmatpush1.msra.mxu0 0.0
    %1426 = vmatprep.subr.mxu0 0.0
    %1427 = vmatpush1.msra.mxu0 0.0
    %1428 = vmatprep.subr.mxu0 0.0
    %1429 = vmatpush1.msra.mxu0 0.0
    %1430 = vmatprep.subr.mxu0 0.0
    %1431 = vmatpush1.msra.mxu0 0.0
    %1432 = vmatprep.subr.mxu0 0.0
    %1433 = vmatpush1.msra.mxu0 0.0
    %1434 = vmatprep.subr.mxu0 0.0
    %1435 = vmatpush1.msra.mxu0 0.0
    %1436 = vmatprep.subr.mxu0 0.0
    %1437 = vmatpush1.msra.mxu0 0.0
    %1438 = vmatprep.subr.mxu0 0.0
    %1439 = vmatpush1.msra.mxu0 0.0
    %1440 = vmatprep.subr.mxu0 0.0
    %1441 = vmatpush1.msra.mxu0 0.0
    %1442 = vmatprep.subr.mxu0 0.0
    %1443 = vmatpush1.msra.mxu0 0.0
    %1444 = vmatprep.subr.mxu0 0.0
    %1445 = vmatpush1.msra.mxu0 0.0
    %1446 = vmatprep.subr.mxu0 0.0
    %1447 = vmatpush1.msra.mxu0 0.0
    %1448 = vmatprep.subr.mxu0 0.0
    %1449 = vmatpush1.msra.mxu0 %v1413
    %1450 = vmatprep.subr.mxu0 0.0
    %1451 = vmatpush2.msra.mxu0 0.0
    %1452 = vmatprep.subr.mxu0 0.0
    %1453 = vmatpush2.msra.mxu0 0.0
    %1454 = vmatprep.subr.mxu0 0.0
    %1455 = vmatpush2.msra.mxu0 0.0
    %1456 = vmatprep.subr.mxu0 0.0
    %1457 = vmatpush2.msra.mxu0 0.0
    %1458 = vmatprep.subr.mxu0 0.0
    %1459 = vmatpush2.msra.mxu0 0.0
    %1460 = vmatprep.subr.mxu0 0.0
    %1461 = vmatpush2.msra.mxu0 0.0
    %1462 = vmatprep.subr.mxu0 0.0
    %1463 = vmatpush2.msra.mxu0 0.0
    %1464 = vmatprep.subr.mxu0 0.0
    %1465 = vmatpush2.msra.mxu0 0.0
    %1466 = vmatprep.subr.mxu0 0.0
    %1467 = vmatpush2.msra.mxu0 0.0
    %1468 = vmatprep.subr.mxu0 0.0
    %1469 = vmatpush2.msra.mxu0 0.0
    %1470 = vmatprep.subr.mxu0 0.0
    %1471 = vmatpush2.msra.mxu0 0.0
    %1472 = vmatprep.subr.mxu0 0.0
    %1473 = vmatpush2.msra.mxu0 0.0
    %1474 = vmatprep.subr.mxu0 0.0
    %1475 = vmatpush2.msra.mxu0 0.0
    %1476 = vmatprep.subr.mxu0 0.0
    %1477 = vmatpush2.msra.mxu0 0.0
    %1478 = vmatprep.subr.mxu0 0.0
    %1479 = vmatpush2.msra.mxu0 0.0
    %1480 = vmatprep.subr.mxu0 0.0
    %1481 = vmatpush2.msra.mxu0 0.0
    %1482 = vmatprep.mubr.f32.mxu0 0.0
    %1483 = vmatmul.mubr.f32.gmra.mxu0 %v1416
    %v1484 = vpop.f32.mrf.mxu0
    %v1485 = vadd.f32 0.0, %v1484
    %v1486 = vpop.f32.mrf.mxu0
    %1487 = vdwg.mxu0
    %1488 = vrot.lane.b32.xlu0 %v202, 40
    %v1489 = vpop.permute.xlu0 %1488
    %v1492 = vsel %vm208, %v1411, 0
    %1494 = vmatprep.subr.mxu0 0.0
    %1495 = vmatpush1.msra.mxu0 0.0
    %1496 = vmatprep.subr.mxu0 0.0
    %1497 = vmatpush1.msra.mxu0 0.0
    %1498 = vmatprep.subr.mxu0 0.0
    %1499 = vmatpush1.msra.mxu0 0.0
    %1500 = vmatprep.subr.mxu0 0.0
    %1501 = vmatpush1.msra.mxu0 0.0
    %1502 = vmatprep.subr.mxu0 0.0
    %1503 = vmatpush1.msra.mxu0 0.0
    %1504 = vmatprep.subr.mxu0 0.0
    %1505 = vmatpush1.msra.mxu0 0.0
    %1506 = vmatprep.subr.mxu0 0.0
    %1507 = vmatpush1.msra.mxu0 0.0
    %1508 = vmatprep.subr.mxu0 0.0
    %1509 = vmatpush1.msra.mxu0 0.0
    %1510 = vmatprep.subr.mxu0 0.0
    %1511 = vmatpush1.msra.mxu0 0.0
    %1512 = vmatprep.subr.mxu0 0.0
    %1513 = vmatpush1.msra.mxu0 0.0
    %1514 = vmatprep.subr.mxu0 0.0
    %1515 = vmatpush1.msra.mxu0 0.0
    %1516 = vmatprep.subr.mxu0 0.0
    %1517 = vmatpush1.msra.mxu0 0.0
    %1518 = vmatprep.subr.mxu0 0.0
    %1519 = vmatpush1.msra.mxu0 0.0
    %1520 = vmatprep.subr.mxu0 0.0
    %1521 = vmatpush1.msra.mxu0 0.0
    %1522 = vmatprep.subr.mxu0 0.0
    %1523 = vmatpush1.msra.mxu0 0.0
    %1524 = vmatprep.subr.mxu0 0.0
    %1525 = vmatpush1.msra.mxu0 %v1489
    %1526 = vmatprep.subr.mxu0 0.0
    %1527 = vmatpush2.msra.mxu0 0.0
    %1528 = vmatprep.subr.mxu0 0.0
    %1529 = vmatpush2.msra.mxu0 0.0
    %1530 = vmatprep.subr.mxu0 0.0
    %1531 = vmatpush2.msra.mxu0 0.0
    %1532 = vmatprep.subr.mxu0 0.0
    %1533 = vmatpush2.msra.mxu0 0.0
    %1534 = vmatprep.subr.mxu0 0.0
    %1535 = vmatpush2.msra.mxu0 0.0
    %1536 = vmatprep.subr.mxu0 0.0
    %1537 = vmatpush2.msra.mxu0 0.0
    %1538 = vmatprep.subr.mxu0 0.0
    %1539 = vmatpush2.msra.mxu0 0.0
    %1540 = vmatprep.subr.mxu0 0.0
    %1541 = vmatpush2.msra.mxu0 0.0
    %1542 = vmatprep.subr.mxu0 0.0
    %1543 = vmatpush2.msra.mxu0 0.0
    %1544 = vmatprep.subr.mxu0 0.0
    %1545 = vmatpush2.msra.mxu0 0.0
    %1546 = vmatprep.subr.mxu0 0.0
    %1547 = vmatpush2.msra.mxu0 0.0
    %1548 = vmatprep.subr.mxu0 0.0
    %1549 = vmatpush2.msra.mxu0 0.0
    %1550 = vmatprep.subr.mxu0 0.0
    %1551 = vmatpush2.msra.mxu0 0.0
    %1552 = vmatprep.subr.mxu0 0.0
    %1553 = vmatpush2.msra.mxu0 0.0
    %1554 = vmatprep.subr.mxu0 0.0
    %1555 = vmatpush2.msra.mxu0 0.0
    %1556 = vmatprep.subr.mxu0 0.0
    %1557 = vmatpush2.msra.mxu0 0.0
    %1558 = vmatprep.mubr.f32.mxu0 0.0
    %1559 = vmatmul.mubr.f32.gmra.mxu0 %v1492
    %v1560 = vpop.f32.mrf.mxu0
    %v1561 = vadd.f32 0.0, %v1560
    %v1562 = vpop.f32.mrf.mxu0
    %1563 = vdwg.mxu0
    %1566 = vrot.lane.b32.xlu0 %v1485, 24
    %v1567 = vpop.permute.xlu0 %1566
    %1568 = vrot.lane.b32.xlu0 %v1561, 24
    %v1569 = vpop.permute.xlu0 %1568
    %vm1572 = vcmask 261312
    %1573 = vst.msk [vmem:[#allocation2] sm:$0xff] %vm1572, %v1567
    %1574 = vst.msk [vmem:[#allocation2 + $0x8] sm:$0xff] %vm1572, %v1569
    %v1575 = vld [vmem:[#allocation2] sm:$0xff]
    %v1576 = vld [vmem:[#allocation2 + $0x8] sm:$0xff]
    %v1577 = vld [vmem:[%s7] sm:$0xff]
    %v1578 = vld [vmem:[%s7 + $0x8] sm:$0xff]
    %v1579 = vld [vmem:[%s7 + $0x10] sm:$0xff]
    %v1580 = vld [vmem:[%s7 + $0x18] sm:$0xff]
    %v1581 = vld [vmem:[%s8] sm:$0x1]
    %v1583 = vlaneseq
    %v1584 = vshrl.u32 %v1583, 7
    %v1585 = vsub.s32 0, %v1584
    %v1586 = vrot.slane %v1581, %v1585
    %v1589 = vsel %vm67, %v1575, 0
    %v1592 = vsel %vm67, %v1576, 0
    %1594 = vmatprep.subr.mxu0 0.0
    %1595 = vmatpush1.msra.mxu0 0.0
    %1596 = vmatprep.subr.mxu0 0.0
    %1597 = vmatpush1.msra.mxu0 0.0
    %1598 = vmatprep.subr.mxu0 0.0
    %1599 = vmatpush1.msra.mxu0 0.0
    %1600 = vmatprep.subr.mxu0 0.0
    %1601 = vmatpush1.msra.mxu0 0.0
    %1602 = vmatprep.subr.mxu0 0.0
    %1603 = vmatpush1.msra.mxu0 0.0
    %1604 = vmatprep.subr.mxu0 0.0
    %1605 = vmatpush1.msra.mxu0 0.0
    %1606 = vmatprep.subr.mxu0 0.0
    %1607 = vmatpush1.msra.mxu0 0.0
    %1608 = vmatprep.subr.mxu0 0.0
    %1609 = vmatpush1.msra.mxu0 0.0
    %1610 = vmatprep.subr.mxu0 0.0
    %1611 = vmatpush1.msra.mxu0 0.0
    %1612 = vmatprep.subr.mxu0 0.0
    %1613 = vmatpush1.msra.mxu0 0.0
    %1614 = vmatprep.subr.mxu0 0.0
    %1615 = vmatpush1.msra.mxu0 0.0
    %1616 = vmatprep.subr.mxu0 0.0
    %1617 = vmatpush1.msra.mxu0 0.0
    %1618 = vmatprep.subr.mxu0 0.0
    %1619 = vmatpush1.msra.mxu0 %v1580
    %1620 = vmatprep.subr.mxu0 0.0
    %1621 = vmatpush1.msra.mxu0 %v1579
    %1622 = vmatprep.subr.mxu0 0.0
    %1623 = vmatpush1.msra.mxu0 %v1578
    %1624 = vmatprep.subr.mxu0 0.0
    %1625 = vmatpush1.msra.mxu0 %v1577
    %1626 = vmatprep.subr.mxu0 0.0
    %1627 = vmatpush2.msra.mxu0 0.0
    %1628 = vmatprep.subr.mxu0 0.0
    %1629 = vmatpush2.msra.mxu0 0.0
    %1630 = vmatprep.subr.mxu0 0.0
    %1631 = vmatpush2.msra.mxu0 0.0
    %1632 = vmatprep.subr.mxu0 0.0
    %1633 = vmatpush2.msra.mxu0 0.0
    %1634 = vmatprep.subr.mxu0 0.0
    %1635 = vmatpush2.msra.mxu0 0.0
    %1636 = vmatprep.subr.mxu0 0.0
    %1637 = vmatpush2.msra.mxu0 0.0
    %1638 = vmatprep.subr.mxu0 0.0
    %1639 = vmatpush2.msra.mxu0 0.0
    %1640 = vmatprep.subr.mxu0 0.0
    %1641 = vmatpush2.msra.mxu0 0.0
    %1642 = vmatprep.subr.mxu0 0.0
    %1643 = vmatpush2.msra.mxu0 0.0
    %1644 = vmatprep.subr.mxu0 0.0
    %1645 = vmatpush2.msra.mxu0 0.0
    %1646 = vmatprep.subr.mxu0 0.0
    %1647 = vmatpush2.msra.mxu0 0.0
    %1648 = vmatprep.subr.mxu0 0.0
    %1649 = vmatpush2.msra.mxu0 0.0
    %1650 = vmatprep.subr.mxu0 0.0
    %1651 = vmatpush2.msra.mxu0 0.0
    %1652 = vmatprep.subr.mxu0 0.0
    %1653 = vmatpush2.msra.mxu0 0.0
    %1654 = vmatprep.subr.mxu0 0.0
    %1655 = vmatpush2.msra.mxu0 0.0
    %1656 = vmatprep.subr.mxu0 0.0
    %1657 = vmatpush2.msra.mxu0 0.0
    %1658 = vmatprep.mubr.f32.mxu0 0.0
    %1659 = vmatmul.mubr.f32.gmra.mxu0 %v1589
    %v1660 = vpop.f32.mrf.mxu0
    %v1661 = vadd.f32 %v1586, %v1660
    %v1662 = vpop.f32.mrf.mxu0
    %1663 = vmatprep.mubr.f32.mxu0 0.0
    %1664 = vmatmul.mubr.f32.gmra.mxu0 %v1592
    %v1665 = vpop.f32.mrf.mxu0
    %v1666 = vadd.f32 %v1586, %v1665
    %v1667 = vpop.f32.mrf.mxu0
    %1668 = vdwg.mxu0
    %v1669 = vadd.f32 %v1661, %v109
    %v1670 = vadd.f32 %v1666, %v110
    %v1671 = vld [vmem:[%s9] sm:$0x1]
    %v1672 = vld [vmem:[%s10] sm:$0x1]
    %v1673 = vsel %vm67, %v1669, 0.0
    %1674 = vadd.xlane.f32.xlu0 %v1673
    %v1675 = vpop.xlane.xlu0 %1674
    %v1676 = vsel %vm67, %v1670, 0.0
    %1677 = vadd.xlane.f32.xlu0 %v1676
    %v1678 = vpop.xlane.xlu0 %1677
    %v1679 = vmul.f32 %v1675, %v74
    %v1680 = vmul.f32 %v1678, %v74
    %v1681 = vsub.f32 %v1669, %v1679
    %v1682 = vsub.f32 %v1670, %v1680
    %v1683 = vmul.f32 %v1681, %v1681
    %v1684 = vmul.f32 %v1682, %v1682
    %v1685 = vsel %vm67, %v1683, 0.0
    %1686 = vadd.xlane.f32.xlu0 %v1685
    %v1687 = vpop.xlane.xlu0 %1686
    %v1688 = vsel %vm67, %v1684, 0.0
    %1689 = vadd.xlane.f32.xlu0 %v1688
    %v1690 = vpop.xlane.xlu0 %1689
    %v1691 = vmul.f32 %v1687, %v74
    %v1692 = vmul.f32 %v1690, %v74
    %v1693 = vadd.f32 %v1691, 1e-12
    %v1694 = vadd.f32 %v1692, 1e-12
    %v1695 = vrsqrt.pop %v1693
    %v1696 = vrsqrt.pop %v1694
    %v1697 = vmul.f32 %v1681, %v1695
    %v1698 = vmul.f32 %v1682, %v1696
    %v1700 = vlaneseq
    %v1701 = vshrl.u32 %v1700, 7
    %v1702 = vsub.s32 0, %v1701
    %v1703 = vrot.slane %v1671, %v1702
    %v1705 = vmul.f32 %v1697, %v1703
    %v1706 = vmul.f32 %v1698, %v1703
    %v1708 = vlaneseq
    %v1709 = vshrl.u32 %v1708, 7
    %v1710 = vsub.s32 0, %v1709
    %v1711 = vrot.slane %v1672, %v1710
    %v1713 = vadd.f32 %v1705, %v1711
    %v1714 = vadd.f32 %v1706, %v1711
    %v1715 = vld [vmem:[%s11] sm:$0xff]
    %v1716 = vld [vmem:[%s11 + $0x8] sm:$0xff]
    %v1717 = vld [vmem:[%s11 + $0x10] sm:$0xff]
    %v1718 = vld [vmem:[%s11 + $0x18] sm:$0xff]
    %v1719 = vld [vmem:[%s12] sm:$0x1]
    %v1721 = vlaneseq
    %v1722 = vshrl.u32 %v1721, 7
    %v1723 = vsub.s32 0, %v1722
    %v1724 = vrot.slane %v1719, %v1723
    %v1727 = vsel %vm67, %v1713, 0
    %v1730 = vsel %vm67, %v1714, 0
    %1732 = vmatprep.subr.mxu0 0.0
    %1733 = vmatpush1.msra.mxu0 0.0
    %1734 = vmatprep.subr.mxu0 0.0
    %1735 = vmatpush1.msra.mxu0 0.0
    %1736 = vmatprep.subr.mxu0 0.0
    %1737 = vmatpush1.msra.mxu0 0.0
    %1738 = vmatprep.subr.mxu0 0.0
    %1739 = vmatpush1.msra.mxu0 0.0
    %1740 = vmatprep.subr.mxu0 0.0
    %1741 = vmatpush1.msra.mxu0 0.0
    %1742 = vmatprep.subr.mxu0 0.0
    %1743 = vmatpush1.msra.mxu0 0.0
    %1744 = vmatprep.subr.mxu0 0.0
    %1745 = vmatpush1.msra.mxu0 0.0
    %1746 = vmatprep.subr.mxu0 0.0
    %1747 = vmatpush1.msra.mxu0 0.0
    %1748 = vmatprep.subr.mxu0 0.0
    %1749 = vmatpush1.msra.mxu0 0.0
    %1750 = vmatprep.subr.mxu0 0.0
    %1751 = vmatpush1.msra.mxu0 0.0
    %1752 = vmatprep.subr.mxu0 0.0
    %1753 = vmatpush1.msra.mxu0 0.0
    %1754 = vmatprep.subr.mxu0 0.0
    %1755 = vmatpush1.msra.mxu0 0.0
    %1756 = vmatprep.subr.mxu0 0.0
    %1757 = vmatpush1.msra.mxu0 %v1718
    %1758 = vmatprep.subr.mxu0 0.0
    %1759 = vmatpush1.msra.mxu0 %v1717
    %1760 = vmatprep.subr.mxu0 0.0
    %1761 = vmatpush1.msra.mxu0 %v1716
    %1762 = vmatprep.subr.mxu0 0.0
    %1763 = vmatpush1.msra.mxu0 %v1715
    %1764 = vmatprep.subr.mxu0 0.0
    %1765 = vmatpush2.msra.mxu0 0.0
    %1766 = vmatprep.subr.mxu0 0.0
    %1767 = vmatpush2.msra.mxu0 0.0
    %1768 = vmatprep.subr.mxu0 0.0
    %1769 = vmatpush2.msra.mxu0 0.0
    %1770 = vmatprep.subr.mxu0 0.0
    %1771 = vmatpush2.msra.mxu0 0.0
    %1772 = vmatprep.subr.mxu0 0.0
    %1773 = vmatpush2.msra.mxu0 0.0
    %1774 = vmatprep.subr.mxu0 0.0
    %1775 = vmatpush2.msra.mxu0 0.0
    %1776 = vmatprep.subr.mxu0 0.0
    %1777 = vmatpush2.msra.mxu0 0.0
    %1778 = vmatprep.subr.mxu0 0.0
    %1779 = vmatpush2.msra.mxu0 0.0
    %1780 = vmatprep.subr.mxu0 0.0
    %1781 = vmatpush2.msra.mxu0 0.0
    %1782 = vmatprep.subr.mxu0 0.0
    %1783 = vmatpush2.msra.mxu0 0.0
    %1784 = vmatprep.subr.mxu0 0.0
    %1785 = vmatpush2.msra.mxu0 0.0
    %1786 = vmatprep.subr.mxu0 0.0
    %1787 = vmatpush2.msra.mxu0 0.0
    %1788 = vmatprep.subr.mxu0 0.0
    %1789 = vmatpush2.msra.mxu0 0.0
    %1790 = vmatprep.subr.mxu0 0.0
    %1791 = vmatpush2.msra.mxu0 0.0
    %1792 = vmatprep.subr.mxu0 0.0
    %1793 = vmatpush2.msra.mxu0 0.0
    %1794 = vmatprep.subr.mxu0 0.0
    %1795 = vmatpush2.msra.mxu0 0.0
    %1796 = vmatprep.mubr.f32.mxu0 0.0
    %1797 = vmatmul.mubr.f32.gmra.mxu0 %v1727
    %v1798 = vpop.f32.mrf.mxu0
    %v1799 = vadd.f32 %v1724, %v1798
    %v1800 = vpop.f32.mrf.mxu0
    %1801 = vmatprep.mubr.f32.mxu0 0.0
    %1802 = vmatmul.mubr.f32.gmra.mxu0 %v1730
    %v1803 = vpop.f32.mrf.mxu0
    %v1804 = vadd.f32 %v1724, %v1803
    %v1805 = vpop.f32.mrf.mxu0
    %1806 = vdwg.mxu0
    %v1807 = vmul.f32 %v1799, %v1799
    %v1808 = vmul.f32 %v1804, %v1804
    %v1809 = vmul.f32 %v1799, %v1807
    %v1810 = vmul.f32 %v1804, %v1808
    %v1811 = vmul.f32 %v1809, 0.044715
    %v1812 = vmul.f32 %v1810, 0.044715
    %v1813 = vadd.f32 %v1799, %v1811
    %v1814 = vadd.f32 %v1804, %v1812
    %v1815 = vmul.f32 %v1813, 0.7978846
    %v1816 = vmul.f32 %v1814, 0.7978846
    %v1817 = vtanh.pop %v1815
    %v1818 = vtanh.pop %v1816
    %v1819 = vadd.f32 %v1817, 1.0
    %v1820 = vadd.f32 %v1818, 1.0
    %v1821 = vmul.f32 %v1819, 0.5
    %v1822 = vmul.f32 %v1820, 0.5
    %v1823 = vmul.f32 %v1799, %v1821
    %v1824 = vmul.f32 %v1804, %v1822
    %v1825 = vld [vmem:[%s13] sm:$0xff]
    %v1826 = vld [vmem:[%s13 + $0x8] sm:$0xff]
    %v1827 = vld [vmem:[%s13 + $0x10] sm:$0xff]
    %v1828 = vld [vmem:[%s13 + $0x18] sm:$0xff]
    %v1829 = vld [vmem:[%s13 + $0x20] sm:$0xff]
    %v1830 = vld [vmem:[%s13 + $0x28] sm:$0xff]
    %v1831 = vld [vmem:[%s13 + $0x30] sm:$0xff]
    %v1832 = vld [vmem:[%s13 + $0x38] sm:$0xff]
    %v1833 = vld [vmem:[%s14] sm:$0x1]
    %v1835 = vlaneseq
    %v1836 = vshrl.u32 %v1835, 7
    %v1837 = vsub.s32 0, %v1836
    %v1838 = vrot.slane %v1833, %v1837
    %vm1840 = vcmask 523264
    %v1842 = vsel %vm1840, %v1823, 0
    %v1845 = vsel %vm1840, %v1824, 0
    %1847 = vmatprep.subr.mxu0 0.0
    %1848 = vmatpush1.msra.mxu0 0.0
    %1849 = vmatprep.subr.mxu0 0.0
    %1850 = vmatpush1.msra.mxu0 0.0
    %1851 = vmatprep.subr.mxu0 0.0
    %1852 = vmatpush1.msra.mxu0 0.0
    %1853 = vmatprep.subr.mxu0 0.0
    %1854 = vmatpush1.msra.mxu0 0.0
    %1855 = vmatprep.subr.mxu0 0.0
    %1856 = vmatpush1.msra.mxu0 0.0
    %1857 = vmatprep.subr.mxu0 0.0
    %1858 = vmatpush1.msra.mxu0 0.0
    %1859 = vmatprep.subr.mxu0 0.0
    %1860 = vmatpush1.msra.mxu0 0.0
    %1861 = vmatprep.subr.mxu0 0.0
    %1862 = vmatpush1.msra.mxu0 0.0
    %1863 = vmatprep.subr.mxu0 0.0
    %1864 = vmatpush1.msra.mxu0 %v1832
    %1865 = vmatprep.subr.mxu0 0.0
    %1866 = vmatpush1.msra.mxu0 %v1831
    %1867 = vmatprep.subr.mxu0 0.0
    %1868 = vmatpush1.msra.mxu0 %v1830
    %1869 = vmatprep.subr.mxu0 0.0
    %1870 = vmatpush1.msra.mxu0 %v1829
    %1871 = vmatprep.subr.mxu0 0.0
    %1872 = vmatpush1.msra.mxu0 %v1828
    %1873 = vmatprep.subr.mxu0 0.0
    %1874 = vmatpush1.msra.mxu0 %v1827
    %1875 = vmatprep.subr.mxu0 0.0
    %1876 = vmatpush1.msra.mxu0 %v1826
    %1877 = vmatprep.subr.mxu0 0.0
    %1878 = vmatpush1.msra.mxu0 %v1825
    %1879 = vmatprep.subr.mxu0 0.0
    %1880 = vmatpush2.msra.mxu0 0.0
    %1881 = vmatprep.subr.mxu0 0.0
    %1882 = vmatpush2.msra.mxu0 0.0
    %1883 = vmatprep.subr.mxu0 0.0
    %1884 = vmatpush2.msra.mxu0 0.0
    %1885 = vmatprep.subr.mxu0 0.0
    %1886 = vmatpush2.msra.mxu0 0.0
    %1887 = vmatprep.subr.mxu0 0.0
    %1888 = vmatpush2.msra.mxu0 0.0
    %1889 = vmatprep.subr.mxu0 0.0
    %1890 = vmatpush2.msra.mxu0 0.0
    %1891 = vmatprep.subr.mxu0 0.0
    %1892 = vmatpush2.msra.mxu0 0.0
    %1893 = vmatprep.subr.mxu0 0.0
    %1894 = vmatpush2.msra.mxu0 0.0
    %1895 = vmatprep.subr.mxu0 0.0
    %1896 = vmatpush2.msra.mxu0 0.0
    %1897 = vmatprep.subr.mxu0 0.0
    %1898 = vmatpush2.msra.mxu0 0.0
    %1899 = vmatprep.subr.mxu0 0.0
    %1900 = vmatpush2.msra.mxu0 0.0
    %1901 = vmatprep.subr.mxu0 0.0
    %1902 = vmatpush2.msra.mxu0 0.0
    %1903 = vmatprep.subr.mxu0 0.0
    %1904 = vmatpush2.msra.mxu0 0.0
    %1905 = vmatprep.subr.mxu0 0.0
    %1906 = vmatpush2.msra.mxu0 0.0
    %1907 = vmatprep.subr.mxu0 0.0
    %1908 = vmatpush2.msra.mxu0 0.0
    %1909 = vmatprep.subr.mxu0 0.0
    %1910 = vmatpush2.msra.mxu0 0.0
    %1911 = vmatprep.mubr.f32.mxu0 0.0
    %1912 = vmatmul.mubr.f32.gmra.mxu0 %v1842
    %v1913 = vpop.f32.mrf.mxu0
    %v1914 = vadd.f32 %v1838, %v1913
    %v1915 = vpop.f32.mrf.mxu0
    %1916 = vmatprep.mubr.f32.mxu0 0.0
    %1917 = vmatmul.mubr.f32.gmra.mxu0 %v1845
    %v1918 = vpop.f32.mrf.mxu0
    %v1919 = vadd.f32 %v1838, %v1918
    %v1920 = vpop.f32.mrf.mxu0
    %1921 = vdwg.mxu0
    %v1922 = vadd.f32 %v1914, %v1713
    %v1923 = vadd.f32 %v1919, %v1714
    %v1924 = vld [vmem:[%s15] sm:$0x1]
    %v1925 = vld [vmem:[%s16] sm:$0x1]
    %v1926 = vsel %vm67, %v1922, 0.0
    %1927 = vadd.xlane.f32.xlu0 %v1926
    %v1928 = vpop.xlane.xlu0 %1927
    %v1929 = vsel %vm67, %v1923, 0.0
    %1930 = vadd.xlane.f32.xlu0 %v1929
    %v1931 = vpop.xlane.xlu0 %1930
    %v1932 = vmul.f32 %v1928, %v74
    %v1933 = vmul.f32 %v1931, %v74
    %v1934 = vsub.f32 %v1922, %v1932
    %v1935 = vsub.f32 %v1923, %v1933
    %v1936 = vmul.f32 %v1934, %v1934
    %v1937 = vmul.f32 %v1935, %v1935
    %v1938 = vsel %vm67, %v1936, 0.0
    %1939 = vadd.xlane.f32.xlu0 %v1938
    %v1940 = vpop.xlane.xlu0 %1939
    %v1941 = vsel %vm67, %v1937, 0.0
    %1942 = vadd.xlane.f32.xlu0 %v1941
    %v1943 = vpop.xlane.xlu0 %1942
    %v1944 = vmul.f32 %v1940, %v74
    %v1945 = vmul.f32 %v1943, %v74
    %v1946 = vadd.f32 %v1944, 1e-12
    %v1947 = vadd.f32 %v1945, 1e-12
    %v1948 = vrsqrt.pop %v1946
    %v1949 = vrsqrt.pop %v1947
    %v1950 = vmul.f32 %v1934, %v1948
    %v1951 = vmul.f32 %v1935, %v1949
    %v1953 = vlaneseq
    %v1954 = vshrl.u32 %v1953, 7
    %v1955 = vsub.s32 0, %v1954
    %v1956 = vrot.slane %v1924, %v1955
    %v1958 = vmul.f32 %v1950, %v1956
    %v1959 = vmul.f32 %v1951, %v1956
    %v1961 = vlaneseq
    %v1962 = vshrl.u32 %v1961, 7
    %v1963 = vsub.s32 0, %v1962
    %v1964 = vrot.slane %v1925, %v1963
    %v1966 = vadd.f32 %v1958, %v1964
    %v1967 = vadd.f32 %v1959, %v1964
    %s1968 = scalar_lea.vmem %s5, 32
    %v1969 = vld [vmem:[%s1968] sm:$0xff]
    %v1970 = vld [vmem:[%s1968 + $0x8] sm:$0xff]
    %v1971 = vld [vmem:[%s1968 + $0x10] sm:$0xff]
    %v1972 = vld [vmem:[%s1968 + $0x18] sm:$0xff]
    %s1973 = scalar_lea.vmem %s6, 1
    %v1974 = vld [vmem:[%s1973] sm:$0x1]
    %v1976 = vlaneseq
    %v1977 = vshrl.u32 %v1976, 7
    %v1978 = vsub.s32 0, %v1977
    %v1979 = vrot.slane %v1974, %v1978
    %v1982 = vsel %vm67, %v1966, 0
    %v1985 = vsel %vm67, %v1967, 0
    %1987 = vmatprep.subr.mxu0 0.0
    %1988 = vmatpush1.msra.mxu0 0.0
    %1989 = vmatprep.subr.mxu0 0.0
    %1990 = vmatpush1.msra.mxu0 0.0
    %1991 = vmatprep.subr.mxu0 0.0
    %1992 = vmatpush1.msra.mxu0 0.0
    %1993 = vmatprep.subr.mxu0 0.0
    %1994 = vmatpush1.msra.mxu0 0.0
    %1995 = vmatprep.subr.mxu0 0.0
    %1996 = vmatpush1.msra.mxu0 0.0
    %1997 = vmatprep.subr.mxu0 0.0
    %1998 = vmatpush1.msra.mxu0 0.0
    %1999 = vmatprep.subr.mxu0 0.0
    %2000 = vmatpush1.msra.mxu0 0.0
    %2001 = vmatprep.subr.mxu0 0.0
    %2002 = vmatpush1.msra.mxu0 0.0
    %2003 = vmatprep.subr.mxu0 0.0
    %2004 = vmatpush1.msra.mxu0 0.0
    %2005 = vmatprep.subr.mxu0 0.0
    %2006 = vmatpush1.msra.mxu0 0.0
    %2007 = vmatprep.subr.mxu0 0.0
    %2008 = vmatpush1.msra.mxu0 0.0
    %2009 = vmatprep.subr.mxu0 0.0
    %2010 = vmatpush1.msra.mxu0 0.0
    %2011 = vmatprep.subr.mxu0 0.0
    %2012 = vmatpush1.msra.mxu0 %v1972
    %2013 = vmatprep.subr.mxu0 0.0
    %2014 = vmatpush1.msra.mxu0 %v1971
    %2015 = vmatprep.subr.mxu0 0.0
    %2016 = vmatpush1.msra.mxu0 %v1970
    %2017 = vmatprep.subr.mxu0 0.0
    %2018 = vmatpush1.msra.mxu0 %v1969
    %2019 = vmatprep.subr.mxu0 0.0
    %2020 = vmatpush2.msra.mxu0 0.0
    %2021 = vmatprep.subr.mxu0 0.0
    %2022 = vmatpush2.msra.mxu0 0.0
    %2023 = vmatprep.subr.mxu0 0.0
    %2024 = vmatpush2.msra.mxu0 0.0
    %2025 = vmatprep.subr.mxu0 0.0
    %2026 = vmatpush2.msra.mxu0 0.0
    %2027 = vmatprep.subr.mxu0 0.0
    %2028 = vmatpush2.msra.mxu0 0.0
    %2029 = vmatprep.subr.mxu0 0.0
    %2030 = vmatpush2.msra.mxu0 0.0
    %2031 = vmatprep.subr.mxu0 0.0
    %2032 = vmatpush2.msra.mxu0 0.0
    %2033 = vmatprep.subr.mxu0 0.0
    %2034 = vmatpush2.msra.mxu0 0.0
    %2035 = vmatprep.subr.mxu0 0.0
    %2036 = vmatpush2.msra.mxu0 0.0
    %2037 = vmatprep.subr.mxu0 0.0
    %2038 = vmatpush2.msra.mxu0 0.0
    %2039 = vmatprep.subr.mxu0 0.0
    %2040 = vmatpush2.msra.mxu0 0.0
    %2041 = vmatprep.subr.mxu0 0.0
    %2042 = vmatpush2.msra.mxu0 0.0
    %2043 = vmatprep.subr.mxu0 0.0
    %2044 = vmatpush2.msra.mxu0 0.0
    %2045 = vmatprep.subr.mxu0 0.0
    %2046 = vmatpush2.msra.mxu0 0.0
    %2047 = vmatprep.subr.mxu0 0.0
    %2048 = vmatpush2.msra.mxu0 0.0
    %2049 = vmatprep.subr.mxu0 0.0
    %2050 = vmatpush2.msra.mxu0 0.0
    %2051 = vmatprep.mubr.f32.mxu0 0.0
    %2052 = vmatmul.mubr.f32.gmra.mxu0 %v1982
    %v2053 = vpop.f32.mrf.mxu0
    %v2054 = vadd.f32 %v1979, %v2053
    %v2055 = vpop.f32.mrf.mxu0
    %2056 = vmatprep.mubr.f32.mxu0 0.0
    %2057 = vmatmul.mubr.f32.gmra.mxu0 %v1985
    %v2058 = vpop.f32.mrf.mxu0
    %v2059 = vadd.f32 %v1979, %v2058
    %v2060 = vpop.f32.mrf.mxu0
    %2061 = vdwg.mxu0
    %2063 = vrot.lane.b32.xlu0 %v2054, 96
    %v2064 = vpop.permute.xlu0 %2063
    %v2065 = vsel %vm208, %v2054, 0
    %v2067 = vsel %vm208, %v2064, 0
    %2069 = vmatprep.subr.mxu0 0.0
    %2070 = vmatpush1.xpose.msra.mxu0 0.0
    %2071 = vmatprep.subr.mxu0 0.0
    %2072 = vmatpush1.xpose.msra.mxu0 0.0
    %2073 = vmatprep.subr.mxu0 0.0
    %2074 = vmatpush1.xpose.msra.mxu0 0.0
    %2075 = vmatprep.subr.mxu0 0.0
    %2076 = vmatpush1.xpose.msra.mxu0 0.0
    %2077 = vmatprep.subr.mxu0 0.0
    %2078 = vmatpush1.xpose.msra.mxu0 0.0
    %2079 = vmatprep.subr.mxu0 0.0
    %2080 = vmatpush1.xpose.msra.mxu0 0.0
    %2081 = vmatprep.subr.mxu0 0.0
    %2082 = vmatpush1.xpose.msra.mxu0 0.0
    %2083 = vmatprep.subr.mxu0 0.0
    %2084 = vmatpush1.xpose.msra.mxu0 0.0
    %2085 = vmatprep.subr.mxu0 0.0
    %2086 = vmatpush1.xpose.msra.mxu0 0.0
    %2087 = vmatprep.subr.mxu0 0.0
    %2088 = vmatpush1.xpose.msra.mxu0 0.0
    %2089 = vmatprep.subr.mxu0 0.0
    %2090 = vmatpush1.xpose.msra.mxu0 0.0
    %2091 = vmatprep.subr.mxu0 0.0
    %2092 = vmatpush1.xpose.msra.mxu0 0.0
    %2093 = vmatprep.subr.mxu0 0.0
    %2094 = vmatpush1.xpose.msra.mxu0 0.0
    %2095 = vmatprep.subr.mxu0 0.0
    %2096 = vmatpush1.xpose.msra.mxu0 0.0
    %2097 = vmatprep.subr.mxu0 0.0
    %2098 = vmatpush1.xpose.msra.mxu0 0.0
    %2099 = vmatprep.subr.mxu0 0.0
    %2100 = vmatpush1.xpose.msra.mxu0 %v2067
    %2101 = vmatprep.subr.mxu0 0.0
    %2102 = vmatpush2.xpose.msra.mxu0 0.0
    %2103 = vmatprep.subr.mxu0 0.0
    %2104 = vmatpush2.xpose.msra.mxu0 0.0
    %2105 = vmatprep.subr.mxu0 0.0
    %2106 = vmatpush2.xpose.msra.mxu0 0.0
    %2107 = vmatprep.subr.mxu0 0.0
    %2108 = vmatpush2.xpose.msra.mxu0 0.0
    %2109 = vmatprep.subr.mxu0 0.0
    %2110 = vmatpush2.xpose.msra.mxu0 0.0
    %2111 = vmatprep.subr.mxu0 0.0
    %2112 = vmatpush2.xpose.msra.mxu0 0.0
    %2113 = vmatprep.subr.mxu0 0.0
    %2114 = vmatpush2.xpose.msra.mxu0 0.0
    %2115 = vmatprep.subr.mxu0 0.0
    %2116 = vmatpush2.xpose.msra.mxu0 0.0
    %2117 = vmatprep.subr.mxu0 0.0
    %2118 = vmatpush2.xpose.msra.mxu0 0.0
    %2119 = vmatprep.subr.mxu0 0.0
    %2120 = vmatpush2.xpose.msra.mxu0 0.0
    %2121 = vmatprep.subr.mxu0 0.0
    %2122 = vmatpush2.xpose.msra.mxu0 0.0
    %2123 = vmatprep.subr.mxu0 0.0
    %2124 = vmatpush2.xpose.msra.mxu0 0.0
    %2125 = vmatprep.subr.mxu0 0.0
    %2126 = vmatpush2.xpose.msra.mxu0 0.0
    %2127 = vmatprep.subr.mxu0 0.0
    %2128 = vmatpush2.xpose.msra.mxu0 0.0
    %2129 = vmatprep.subr.mxu0 0.0
    %2130 = vmatpush2.xpose.msra.mxu0 0.0
    %2131 = vmatprep.subr.mxu0 0.0
    %2132 = vmatpush2.xpose.msra.mxu0 0.0
    %2133 = vmatprep.mubr.f32.mxu0 0.0
    %2134 = vmatmul.mubr.f32.gmra.mxu0 %v2065
    %v2135 = vpop.f32.mrf.mxu0
    %v2136 = vadd.f32 0.0, %v2135
    %v2137 = vpop.f32.mrf.mxu0
    %2138 = vdwg.mxu0
    %2140 = vrot.lane.b32.xlu0 %v2059, 96
    %v2141 = vpop.permute.xlu0 %2140
    %v2142 = vsel %vm208, %v2059, 0
    %v2144 = vsel %vm208, %v2141, 0
    %2146 = vmatprep.subr.mxu0 0.0
    %2147 = vmatpush1.xpose.msra.mxu0 0.0
    %2148 = vmatprep.subr.mxu0 0.0
    %2149 = vmatpush1.xpose.msra.mxu0 0.0
    %2150 = vmatprep.subr.mxu0 0.0
    %2151 = vmatpush1.xpose.msra.mxu0 0.0
    %2152 = vmatprep.subr.mxu0 0.0
    %2153 = vmatpush1.xpose.msra.mxu0 0.0
    %2154 = vmatprep.subr.mxu0 0.0
    %2155 = vmatpush1.xpose.msra.mxu0 0.0
    %2156 = vmatprep.subr.mxu0 0.0
    %2157 = vmatpush1.xpose.msra.mxu0 0.0
    %2158 = vmatprep.subr.mxu0 0.0
    %2159 = vmatpush1.xpose.msra.mxu0 0.0
    %2160 = vmatprep.subr.mxu0 0.0
    %2161 = vmatpush1.xpose.msra.mxu0 0.0
    %2162 = vmatprep.subr.mxu0 0.0
    %2163 = vmatpush1.xpose.msra.mxu0 0.0
    %2164 = vmatprep.subr.mxu0 0.0
    %2165 = vmatpush1.xpose.msra.mxu0 0.0
    %2166 = vmatprep.subr.mxu0 0.0
    %2167 = vmatpush1.xpose.msra.mxu0 0.0
    %2168 = vmatprep.subr.mxu0 0.0
    %2169 = vmatpush1.xpose.msra.mxu0 0.0
    %2170 = vmatprep.subr.mxu0 0.0
    %2171 = vmatpush1.xpose.msra.mxu0 0.0
    %2172 = vmatprep.subr.mxu0 0.0
    %2173 = vmatpush1.xpose.msra.mxu0 0.0
    %2174 = vmatprep.subr.mxu0 0.0
    %2175 = vmatpush1.xpose.msra.mxu0 0.0
    %2176 = vmatprep.subr.mxu0 0.0
    %2177 = vmatpush1.xpose.msra.mxu0 %v2144
    %2178 = vmatprep.subr.mxu0 0.0
    %2179 = vmatpush2.xpose.msra.mxu0 0.0
    %2180 = vmatprep.subr.mxu0 0.0
    %2181 = vmatpush2.xpose.msra.mxu0 0.0
    %2182 = vmatprep.subr.mxu0 0.0
    %2183 = vmatpush2.xpose.msra.mxu0 0.0
    %2184 = vmatprep.subr.mxu0 0.0
    %2185 = vmatpush2.xpose.msra.mxu0 0.0
    %2186 = vmatprep.subr.mxu0 0.0
    %2187 = vmatpush2.xpose.msra.mxu0 0.0
    %2188 = vmatprep.subr.mxu0 0.0
    %2189 = vmatpush2.xpose.msra.mxu0 0.0
    %2190 = vmatprep.subr.mxu0 0.0
    %2191 = vmatpush2.xpose.msra.mxu0 0.0
    %2192 = vmatprep.subr.mxu0 0.0
    %2193 = vmatpush2.xpose.msra.mxu0 0.0
    %2194 = vmatprep.subr.mxu0 0.0
    %2195 = vmatpush2.xpose.msra.mxu0 0.0
    %2196 = vmatprep.subr.mxu0 0.0
    %2197 = vmatpush2.xpose.msra.mxu0 0.0
    %2198 = vmatprep.subr.mxu0 0.0
    %2199 = vmatpush2.xpose.msra.mxu0 0.0
    %2200 = vmatprep.subr.mxu0 0.0
    %2201 = vmatpush2.xpose.msra.mxu0 0.0
    %2202 = vmatprep.subr.mxu0 0.0
    %2203 = vmatpush2.xpose.msra.mxu0 0.0
    %2204 = vmatprep.subr.mxu0 0.0
    %2205 = vmatpush2.xpose.msra.mxu0 0.0
    %2206 = vmatprep.subr.mxu0 0.0
    %2207 = vmatpush2.xpose.msra.mxu0 0.0
    %2208 = vmatprep.subr.mxu0 0.0
    %2209 = vmatpush2.xpose.msra.mxu0 0.0
    %2210 = vmatprep.mubr.f32.mxu0 0.0
    %2211 = vmatmul.mubr.f32.gmra.mxu0 %v2142
    %v2212 = vpop.f32.mrf.mxu0
    %v2213 = vadd.f32 0.0, %v2212
    %v2214 = vpop.f32.mrf.mxu0
    %2215 = vdwg.mxu0
    %v2216 = vmul.f32 %v2136, 0.35355338
    %v2217 = vmul.f32 %v2213, 0.35355338
    %v2218 = vadd.f32 %v2216, %v111
    %v2219 = vadd.f32 %v2217, %v112
    %v2220 = vsel %vm208, %v2218, -inf
    %2221 = vmax.xlane.f32.xlu0 %v2220
    %v2222 = vpop.xlane.xlu0 %2221
    %v2223 = vsel %vm208, %v2219, -inf
    %2224 = vmax.xlane.f32.xlu0 %v2223
    %v2225 = vpop.xlane.xlu0 %2224
    %v2226 = vsub.f32 %v2218, %v2222
    %v2227 = vsub.f32 %v2219, %v2225
    %v2228 = vmul.f32 %v2226, 1.442695
    %v2229 = vpow.pop %v2228
    %v2230 = vmul.f32 %v2227, 1.442695
    %v2231 = vpow.pop %v2230
    %v2232 = vsel %vm208, %v2229, 0.0
    %2233 = vadd.xlane.f32.xlu0 %v2232
    %v2234 = vpop.xlane.xlu0 %2233
    %v2235 = vsel %vm208, %v2231, 0.0
    %2236 = vadd.xlane.f32.xlu0 %v2235
    %v2237 = vpop.xlane.xlu0 %2236
    %v2238 = vrcp.pop %v2234
    %v2239 = vmul.f32 %v2229, %v2238
    %v2240 = vrcp.pop %v2237
    %v2241 = vmul.f32 %v2231, %v2240
    %2242 = vrot.lane.b32.xlu0 %v2054, 64
    %v2243 = vpop.permute.xlu0 %2242
    %v2246 = vsel %vm208, %v2239, 0
    %2248 = vmatprep.subr.mxu0 0.0
    %2249 = vmatpush1.msra.mxu0 0.0
    %2250 = vmatprep.subr.mxu0 0.0
    %2251 = vmatpush1.msra.mxu0 0.0
    %2252 = vmatprep.subr.mxu0 0.0
    %2253 = vmatpush1.msra.mxu0 0.0
    %2254 = vmatprep.subr.mxu0 0.0
    %2255 = vmatpush1.msra.mxu0 0.0
    %2256 = vmatprep.subr.mxu0 0.0
    %2257 = vmatpush1.msra.mxu0 0.0
    %2258 = vmatprep.subr.mxu0 0.0
    %2259 = vmatpush1.msra.mxu0 0.0
    %2260 = vmatprep.subr.mxu0 0.0
    %2261 = vmatpush1.msra.mxu0 0.0
    %2262 = vmatprep.subr.mxu0 0.0
    %2263 = vmatpush1.msra.mxu0 0.0
    %2264 = vmatprep.subr.mxu0 0.0
    %2265 = vmatpush1.msra.mxu0 0.0
    %2266 = vmatprep.subr.mxu0 0.0
    %2267 = vmatpush1.msra.mxu0 0.0
    %2268 = vmatprep.subr.mxu0 0.0
    %2269 = vmatpush1.msra.mxu0 0.0
    %2270 = vmatprep.subr.mxu0 0.0
    %2271 = vmatpush1.msra.mxu0 0.0
    %2272 = vmatprep.subr.mxu0 0.0
    %2273 = vmatpush1.msra.mxu0 0.0
    %2274 = vmatprep.subr.mxu0 0.0
    %2275 = vmatpush1.msra.mxu0 0.0
    %2276 = vmatprep.subr.mxu0 0.0
    %2277 = vmatpush1.msra.mxu0 0.0
    %2278 = vmatprep.subr.mxu0 0.0
    %2279 = vmatpush1.msra.mxu0 %v2243
    %2280 = vmatprep.subr.mxu0 0.0
    %2281 = vmatpush2.msra.mxu0 0.0
    %2282 = vmatprep.subr.mxu0 0.0
    %2283 = vmatpush2.msra.mxu0 0.0
    %2284 = vmatprep.subr.mxu0 0.0
    %2285 = vmatpush2.msra.mxu0 0.0
    %2286 = vmatprep.subr.mxu0 0.0
    %2287 = vmatpush2.msra.mxu0 0.0
    %2288 = vmatprep.subr.mxu0 0.0
    %2289 = vmatpush2.msra.mxu0 0.0
    %2290 = vmatprep.subr.mxu0 0.0
    %2291 = vmatpush2.msra.mxu0 0.0
    %2292 = vmatprep.subr.mxu0 0.0
    %2293 = vmatpush2.msra.mxu0 0.0
    %2294 = vmatprep.subr.mxu0 0.0
    %2295 = vmatpush2.msra.mxu0 0.0
    %2296 = vmatprep.subr.mxu0 0.0
    %2297 = vmatpush2.msra.mxu0 0.0
    %2298 = vmatprep.subr.mxu0 0.0
    %2299 = vmatpush2.msra.mxu0 0.0
    %2300 = vmatprep.subr.mxu0 0.0
    %2301 = vmatpush2.msra.mxu0 0.0
    %2302 = vmatprep.subr.mxu0 0.0
    %2303 = vmatpush2.msra.mxu0 0.0
    %2304 = vmatprep.subr.mxu0 0.0
    %2305 = vmatpush2.msra.mxu0 0.0
    %2306 = vmatprep.subr.mxu0 0.0
    %2307 = vmatpush2.msra.mxu0 0.0
    %2308 = vmatprep.subr.mxu0 0.0
    %2309 = vmatpush2.msra.mxu0 0.0
    %2310 = vmatprep.subr.mxu0 0.0
    %2311 = vmatpush2.msra.mxu0 0.0
    %2312 = vmatprep.mubr.f32.mxu0 0.0
    %2313 = vmatmul.mubr.f32.gmra.mxu0 %v2246
    %v2314 = vpop.f32.mrf.mxu0
    %v2315 = vadd.f32 0.0, %v2314
    %v2316 = vpop.f32.mrf.mxu0
    %2317 = vdwg.mxu0
    %2318 = vrot.lane.b32.xlu0 %v2059, 64
    %v2319 = vpop.permute.xlu0 %2318
    %v2322 = vsel %vm208, %v2241, 0
    %2324 = vmatprep.subr.mxu0 0.0
    %2325 = vmatpush1.msra.mxu0 0.0
    %2326 = vmatprep.subr.mxu0 0.0
    %2327 = vmatpush1.msra.mxu0 0.0
    %2328 = vmatprep.subr.mxu0 0.0
    %2329 = vmatpush1.msra.mxu0 0.0
    %2330 = vmatprep.subr.mxu0 0.0
    %2331 = vmatpush1.msra.mxu0 0.0
    %2332 = vmatprep.subr.mxu0 0.0
    %2333 = vmatpush1.msra.mxu0 0.0
    %2334 = vmatprep.subr.mxu0 0.0
    %2335 = vmatpush1.msra.mxu0 0.0
    %2336 = vmatprep.subr.mxu0 0.0
    %2337 = vmatpush1.msra.mxu0 0.0
    %2338 = vmatprep.subr.mxu0 0.0
    %2339 = vmatpush1.msra.mxu0 0.0
    %2340 = vmatprep.subr.mxu0 0.0
    %2341 = vmatpush1.msra.mxu0 0.0
    %2342 = vmatprep.subr.mxu0 0.0
    %2343 = vmatpush1.msra.mxu0 0.0
    %2344 = vmatprep.subr.mxu0 0.0
    %2345 = vmatpush1.msra.mxu0 0.0
    %2346 = vmatprep.subr.mxu0 0.0
    %2347 = vmatpush1.msra.mxu0 0.0
    %2348 = vmatprep.subr.mxu0 0.0
    %2349 = vmatpush1.msra.mxu0 0.0
    %2350 = vmatprep.subr.mxu0 0.0
    %2351 = vmatpush1.msra.mxu0 0.0
    %2352 = vmatprep.subr.mxu0 0.0
    %2353 = vmatpush1.msra.mxu0 0.0
    %2354 = vmatprep.subr.mxu0 0.0
    %2355 = vmatpush1.msra.mxu0 %v2319
    %2356 = vmatprep.subr.mxu0 0.0
    %2357 = vmatpush2.msra.mxu0 0.0
    %2358 = vmatprep.subr.mxu0 0.0
    %2359 = vmatpush2.msra.mxu0 0.0
    %2360 = vmatprep.subr.mxu0 0.0
    %2361 = vmatpush2.msra.mxu0 0.0
    %2362 = vmatprep.subr.mxu0 0.0
    %2363 = vmatpush2.msra.mxu0 0.0
    %2364 = vmatprep.subr.mxu0 0.0
    %2365 = vmatpush2.msra.mxu0 0.0
    %2366 = vmatprep.subr.mxu0 0.0
    %2367 = vmatpush2.msra.mxu0 0.0
    %2368 = vmatprep.subr.mxu0 0.0
    %2369 = vmatpush2.msra.mxu0 0.0
    %2370 = vmatprep.subr.mxu0 0.0
    %2371 = vmatpush2.msra.mxu0 0.0
    %2372 = vmatprep.subr.mxu0 0.0
    %2373 = vmatpush2.msra.mxu0 0.0
    %2374 = vmatprep.subr.mxu0 0.0
    %2375 = vmatpush2.msra.mxu0 0.0
    %2376 = vmatprep.subr.mxu0 0.0
    %2377 = vmatpush2.msra.mxu0 0.0
    %2378 = vmatprep.subr.mxu0 0.0
    %2379 = vmatpush2.msra.mxu0 0.0
    %2380 = vmatprep.subr.mxu0 0.0
    %2381 = vmatpush2.msra.mxu0 0.0
    %2382 = vmatprep.subr.mxu0 0.0
    %2383 = vmatpush2.msra.mxu0 0.0
    %2384 = vmatprep.subr.mxu0 0.0
    %2385 = vmatpush2.msra.mxu0 0.0
    %2386 = vmatprep.subr.mxu0 0.0
    %2387 = vmatpush2.msra.mxu0 0.0
    %2388 = vmatprep.mubr.f32.mxu0 0.0
    %2389 = vmatmul.mubr.f32.gmra.mxu0 %v2322
    %v2390 = vpop.f32.mrf.mxu0
    %v2391 = vadd.f32 0.0, %v2390
    %v2392 = vpop.f32.mrf.mxu0
    %2393 = vdwg.mxu0
    %2394 = vst.msk [vmem:[#allocation2] sm:$0xff] %vm208, %v2315
    %2395 = vst.msk [vmem:[#allocation2 + $0x8] sm:$0xff] %vm208, %v2391
    %2396 = vrot.lane.b32.xlu0 %v2054, 120
    %v2397 = vpop.permute.xlu0 %2396
    %2398 = vrot.lane.b32.xlu0 %v2054, 88
    %v2399 = vpop.permute.xlu0 %2398
    %v2400 = vsel %vm208, %v2397, 0
    %v2402 = vsel %vm208, %v2399, 0
    %2404 = vmatprep.subr.mxu0 0.0
    %2405 = vmatpush1.xpose.msra.mxu0 0.0
    %2406 = vmatprep.subr.mxu0 0.0
    %2407 = vmatpush1.xpose.msra.mxu0 0.0
    %2408 = vmatprep.subr.mxu0 0.0
    %2409 = vmatpush1.xpose.msra.mxu0 0.0
    %2410 = vmatprep.subr.mxu0 0.0
    %2411 = vmatpush1.xpose.msra.mxu0 0.0
    %2412 = vmatprep.subr.mxu0 0.0
    %2413 = vmatpush1.xpose.msra.mxu0 0.0
    %2414 = vmatprep.subr.mxu0 0.0
    %2415 = vmatpush1.xpose.msra.mxu0 0.0
    %2416 = vmatprep.subr.mxu0 0.0
    %2417 = vmatpush1.xpose.msra.mxu0 0.0
    %2418 = vmatprep.subr.mxu0 0.0
    %2419 = vmatpush1.xpose.msra.mxu0 0.0
    %2420 = vmatprep.subr.mxu0 0.0
    %2421 = vmatpush1.xpose.msra.mxu0 0.0
    %2422 = vmatprep.subr.mxu0 0.0
    %2423 = vmatpush1.xpose.msra.mxu0 0.0
    %2424 = vmatprep.subr.mxu0 0.0
    %2425 = vmatpush1.xpose.msra.mxu0 0.0
    %2426 = vmatprep.subr.mxu0 0.0
    %2427 = vmatpush1.xpose.msra.mxu0 0.0
    %2428 = vmatprep.subr.mxu0 0.0
    %2429 = vmatpush1.xpose.msra.mxu0 0.0
    %2430 = vmatprep.subr.mxu0 0.0
    %2431 = vmatpush1.xpose.msra.mxu0 0.0
    %2432 = vmatprep.subr.mxu0 0.0
    %2433 = vmatpush1.xpose.msra.mxu0 0.0
    %2434 = vmatprep.subr.mxu0 0.0
    %2435 = vmatpush1.xpose.msra.mxu0 %v2402
    %2436 = vmatprep.subr.mxu0 0.0
    %2437 = vmatpush2.xpose.msra.mxu0 0.0
    %2438 = vmatprep.subr.mxu0 0.0
    %2439 = vmatpush2.xpose.msra.mxu0 0.0
    %2440 = vmatprep.subr.mxu0 0.0
    %2441 = vmatpush2.xpose.msra.mxu0 0.0
    %2442 = vmatprep.subr.mxu0 0.0
    %2443 = vmatpush2.xpose.msra.mxu0 0.0
    %2444 = vmatprep.subr.mxu0 0.0
    %2445 = vmatpush2.xpose.msra.mxu0 0.0
    %2446 = vmatprep.subr.mxu0 0.0
    %2447 = vmatpush2.xpose.msra.mxu0 0.0
    %2448 = vmatprep.subr.mxu0 0.0
    %2449 = vmatpush2.xpose.msra.mxu0 0.0
    %2450 = vmatprep.subr.mxu0 0.0
    %2451 = vmatpush2.xpose.msra.mxu0 0.0
    %2452 = vmatprep.subr.mxu0 0.0
    %2453 = vmatpush2.xpose.msra.mxu0 0.0
    %2454 = vmatprep.subr.mxu0 0.0
    %2455 = vmatpush2.xpose.msra.mxu0 0.0
    %2456 = vmatprep.subr.mxu0 0.0
    %2457 = vmatpush2.xpose.msra.mxu0 0.0
    %2458 = vmatprep.subr.mxu0 0.0
    %2459 = vmatpush2.xpose.msra.mxu0 0.0
    %2460 = vmatprep.subr.mxu0 0.0
    %2461 = vmatpush2.xpose.msra.mxu0 0.0
    %2462 = vmatprep.subr.mxu0 0.0
    %2463 = vmatpush2.xpose.msra.mxu0 0.0
    %2464 = vmatprep.subr.mxu0 0.0
    %2465 = vmatpush2.xpose.msra.mxu0 0.0
    %2466 = vmatprep.subr.mxu0 0.0
    %2467 = vmatpush2.xpose.msra.mxu0 0.0
    %2468 = vmatprep.mubr.f32.mxu0 0.0
    %2469 = vmatmul.mubr.f32.gmra.mxu0 %v2400
    %v2470 = vpop.f32.mrf.mxu0
    %v2471 = vadd.f32 0.0, %v2470
    %v2472 = vpop.f32.mrf.mxu0
    %2473 = vdwg.mxu0
    %2474 = vrot.lane.b32.xlu0 %v2059, 120
    %v2475 = vpop.permute.xlu0 %2474
    %2476 = vrot.lane.b32.xlu0 %v2059, 88
    %v2477 = vpop.permute.xlu0 %2476
    %v2478 = vsel %vm208, %v2475, 0
    %v2480 = vsel %vm208, %v2477, 0
    %2482 = vmatprep.subr.mxu0 0.0
    %2483 = vmatpush1.xpose.msra.mxu0 0.0
    %2484 = vmatprep.subr.mxu0 0.0
    %2485 = vmatpush1.xpose.msra.mxu0 0.0
    %2486 = vmatprep.subr.mxu0 0.0
    %2487 = vmatpush1.xpose.msra.mxu0 0.0
    %2488 = vmatprep.subr.mxu0 0.0
    %2489 = vmatpush1.xpose.msra.mxu0 0.0
    %2490 = vmatprep.subr.mxu0 0.0
    %2491 = vmatpush1.xpose.msra.mxu0 0.0
    %2492 = vmatprep.subr.mxu0 0.0
    %2493 = vmatpush1.xpose.msra.mxu0 0.0
    %2494 = vmatprep.subr.mxu0 0.0
    %2495 = vmatpush1.xpose.msra.mxu0 0.0
    %2496 = vmatprep.subr.mxu0 0.0
    %2497 = vmatpush1.xpose.msra.mxu0 0.0
    %2498 = vmatprep.subr.mxu0 0.0
    %2499 = vmatpush1.xpose.msra.mxu0 0.0
    %2500 = vmatprep.subr.mxu0 0.0
    %2501 = vmatpush1.xpose.msra.mxu0 0.0
    %2502 = vmatprep.subr.mxu0 0.0
    %2503 = vmatpush1.xpose.msra.mxu0 0.0
    %2504 = vmatprep.subr.mxu0 0.0
    %2505 = vmatpush1.xpose.msra.mxu0 0.0
    %2506 = vmatprep.subr.mxu0 0.0
    %2507 = vmatpush1.xpose.msra.mxu0 0.0
    %2508 = vmatprep.subr.mxu0 0.0
    %2509 = vmatpush1.xpose.msra.mxu0 0.0
    %2510 = vmatprep.subr.mxu0 0.0
    %2511 = vmatpush1.xpose.msra.mxu0 0.0
    %2512 = vmatprep.subr.mxu0 0.0
    %2513 = vmatpush1.xpose.msra.mxu0 %v2480
    %2514 = vmatprep.subr.mxu0 0.0
    %2515 = vmatpush2.xpose.msra.mxu0 0.0
    %2516 = vmatprep.subr.mxu0 0.0
    %2517 = vmatpush2.xpose.msra.mxu0 0.0
    %2518 = vmatprep.subr.mxu0 0.0
    %2519 = vmatpush2.xpose.msra.mxu0 0.0
    %2520 = vmatprep.subr.mxu0 0.0
    %2521 = vmatpush2.xpose.msra.mxu0 0.0
    %2522 = vmatprep.subr.mxu0 0.0
    %2523 = vmatpush2.xpose.msra.mxu0 0.0
    %2524 = vmatprep.subr.mxu0 0.0
    %2525 = vmatpush2.xpose.msra.mxu0 0.0
    %2526 = vmatprep.subr.mxu0 0.0
    %2527 = vmatpush2.xpose.msra.mxu0 0.0
    %2528 = vmatprep.subr.mxu0 0.0
    %2529 = vmatpush2.xpose.msra.mxu0 0.0
    %2530 = vmatprep.subr.mxu0 0.0
    %2531 = vmatpush2.xpose.msra.mxu0 0.0
    %2532 = vmatprep.subr.mxu0 0.0
    %2533 = vmatpush2.xpose.msra.mxu0 0.0
    %2534 = vmatprep.subr.mxu0 0.0
    %2535 = vmatpush2.xpose.msra.mxu0 0.0
    %2536 = vmatprep.subr.mxu0 0.0
    %2537 = vmatpush2.xpose.msra.mxu0 0.0
    %2538 = vmatprep.subr.mxu0 0.0
    %2539 = vmatpush2.xpose.msra.mxu0 0.0
    %2540 = vmatprep.subr.mxu0 0.0
    %2541 = vmatpush2.xpose.msra.mxu0 0.0
    %2542 = vmatprep.subr.mxu0 0.0
    %2543 = vmatpush2.xpose.msra.mxu0 0.0
    %2544 = vmatprep.subr.mxu0 0.0
    %2545 = vmatpush2.xpose.msra.mxu0 0.0
    %2546 = vmatprep.mubr.f32.mxu0 0.0
    %2547 = vmatmul.mubr.f32.gmra.mxu0 %v2478
    %v2548 = vpop.f32.mrf.mxu0
    %v2549 = vadd.f32 0.0, %v2548
    %v2550 = vpop.f32.mrf.mxu0
    %2551 = vdwg.mxu0
    %v2552 = vmul.f32 %v2471, 0.35355338
    %v2553 = vmul.f32 %v2549, 0.35355338
    %v2554 = vadd.f32 %v2552, %v111
    %v2555 = vadd.f32 %v2553, %v112
    %v2556 = vsel %vm208, %v2554, -inf
    %2557 = vmax.xlane.f32.xlu0 %v2556
    %v2558 = vpop.xlane.xlu0 %2557
    %v2559 = vsel %vm208, %v2555, -inf
    %2560 = vmax.xlane.f32.xlu0 %v2559
    %v2561 = vpop.xlane.xlu0 %2560
    %v2562 = vsub.f32 %v2554, %v2558
    %v2563 = vsub.f32 %v2555, %v2561
    %v2564 = vmul.f32 %v2562, 1.442695
    %v2565 = vpow.pop %v2564
    %v2566 = vmul.f32 %v2563, 1.442695
    %v2567 = vpow.pop %v2566
    %v2568 = vsel %vm208, %v2565, 0.0
    %2569 = vadd.xlane.f32.xlu0 %v2568
    %v2570 = vpop.xlane.xlu0 %2569
    %v2571 = vsel %vm208, %v2567, 0.0
    %2572 = vadd.xlane.f32.xlu0 %v2571
    %v2573 = vpop.xlane.xlu0 %2572
    %v2574 = vrcp.pop %v2570
    %v2575 = vmul.f32 %v2565, %v2574
    %v2576 = vrcp.pop %v2573
    %v2577 = vmul.f32 %v2567, %v2576
    %2578 = vrot.lane.b32.xlu0 %v2054, 56
    %v2579 = vpop.permute.xlu0 %2578
    %v2582 = vsel %vm208, %v2575, 0
    %2584 = vmatprep.subr.mxu0 0.0
    %2585 = vmatpush1.msra.mxu0 0.0
    %2586 = vmatprep.subr.mxu0 0.0
    %2587 = vmatpush1.msra.mxu0 0.0
    %2588 = vmatprep.subr.mxu0 0.0
    %2589 = vmatpush1.msra.mxu0 0.0
    %2590 = vmatprep.subr.mxu0 0.0
    %2591 = vmatpush1.msra.mxu0 0.0
    %2592 = vmatprep.subr.mxu0 0.0
    %2593 = vmatpush1.msra.mxu0 0.0
    %2594 = vmatprep.subr.mxu0 0.0
    %2595 = vmatpush1.msra.mxu0 0.0
    %2596 = vmatprep.subr.mxu0 0.0
    %2597 = vmatpush1.msra.mxu0 0.0
    %2598 = vmatprep.subr.mxu0 0.0
    %2599 = vmatpush1.msra.mxu0 0.0
    %2600 = vmatprep.subr.mxu0 0.0
    %2601 = vmatpush1.msra.mxu0 0.0
    %2602 = vmatprep.subr.mxu0 0.0
    %2603 = vmatpush1.msra.mxu0 0.0
    %2604 = vmatprep.subr.mxu0 0.0
    %2605 = vmatpush1.msra.mxu0 0.0
    %2606 = vmatprep.subr.mxu0 0.0
    %2607 = vmatpush1.msra.mxu0 0.0
    %2608 = vmatprep.subr.mxu0 0.0
    %2609 = vmatpush1.msra.mxu0 0.0
    %2610 = vmatprep.subr.mxu0 0.0
    %2611 = vmatpush1.msra.mxu0 0.0
    %2612 = vmatprep.subr.mxu0 0.0
    %2613 = vmatpush1.msra.mxu0 0.0
    %2614 = vmatprep.subr.mxu0 0.0
    %2615 = vmatpush1.msra.mxu0 %v2579
    %2616 = vmatprep.subr.mxu0 0.0
    %2617 = vmatpush2.msra.mxu0 0.0
    %2618 = vmatprep.subr.mxu0 0.0
    %2619 = vmatpush2.msra.mxu0 0.0
    %2620 = vmatprep.subr.mxu0 0.0
    %2621 = vmatpush2.msra.mxu0 0.0
    %2622 = vmatprep.subr.mxu0 0.0
    %2623 = vmatpush2.msra.mxu0 0.0
    %2624 = vmatprep.subr.mxu0 0.0
    %2625 = vmatpush2.msra.mxu0 0.0
    %2626 = vmatprep.subr.mxu0 0.0
    %2627 = vmatpush2.msra.mxu0 0.0
    %2628 = vmatprep.subr.mxu0 0.0
    %2629 = vmatpush2.msra.mxu0 0.0
    %2630 = vmatprep.subr.mxu0 0.0
    %2631 = vmatpush2.msra.mxu0 0.0
    %2632 = vmatprep.subr.mxu0 0.0
    %2633 = vmatpush2.msra.mxu0 0.0
    %2634 = vmatprep.subr.mxu0 0.0
    %2635 = vmatpush2.msra.mxu0 0.0
    %2636 = vmatprep.subr.mxu0 0.0
    %2637 = vmatpush2.msra.mxu0 0.0
    %2638 = vmatprep.subr.mxu0 0.0
    %2639 = vmatpush2.msra.mxu0 0.0
    %2640 = vmatprep.subr.mxu0 0.0
    %2641 = vmatpush2.msra.mxu0 0.0
    %2642 = vmatprep.subr.mxu0 0.0
    %2643 = vmatpush2.msra.mxu0 0.0
    %2644 = vmatprep.subr.mxu0 0.0
    %2645 = vmatpush2.msra.mxu0 0.0
    %2646 = vmatprep.subr.mxu0 0.0
    %2647 = vmatpush2.msra.mxu0 0.0
    %2648 = vmatprep.mubr.f32.mxu0 0.0
    %2649 = vmatmul.mubr.f32.gmra.mxu0 %v2582
    %v2650 = vpop.f32.mrf.mxu0
    %v2651 = vadd.f32 0.0, %v2650
    %v2652 = vpop.f32.mrf.mxu0
    %2653 = vdwg.mxu0
    %2654 = vrot.lane.b32.xlu0 %v2059, 56
    %v2655 = vpop.permute.xlu0 %2654
    %v2658 = vsel %vm208, %v2577, 0
    %2660 = vmatprep.subr.mxu0 0.0
    %2661 = vmatpush1.msra.mxu0 0.0
    %2662 = vmatprep.subr.mxu0 0.0
    %2663 = vmatpush1.msra.mxu0 0.0
    %2664 = vmatprep.subr.mxu0 0.0
    %2665 = vmatpush1.msra.mxu0 0.0
    %2666 = vmatprep.subr.mxu0 0.0
    %2667 = vmatpush1.msra.mxu0 0.0
    %2668 = vmatprep.subr.mxu0 0.0
    %2669 = vmatpush1.msra.mxu0 0.0
    %2670 = vmatprep.subr.mxu0 0.0
    %2671 = vmatpush1.msra.mxu0 0.0
    %2672 = vmatprep.subr.mxu0 0.0
    %2673 = vmatpush1.msra.mxu0 0.0
    %2674 = vmatprep.subr.mxu0 0.0
    %2675 = vmatpush1.msra.mxu0 0.0
    %2676 = vmatprep.subr.mxu0 0.0
    %2677 = vmatpush1.msra.mxu0 0.0
    %2678 = vmatprep.subr.mxu0 0.0
    %2679 = vmatpush1.msra.mxu0 0.0
    %2680 = vmatprep.subr.mxu0 0.0
    %2681 = vmatpush1.msra.mxu0 0.0
    %2682 = vmatprep.subr.mxu0 0.0
    %2683 = vmatpush1.msra.mxu0 0.0
    %2684 = vmatprep.subr.mxu0 0.0
    %2685 = vmatpush1.msra.mxu0 0.0
    %2686 = vmatprep.subr.mxu0 0.0
    %2687 = vmatpush1.msra.mxu0 0.0
    %2688 = vmatprep.subr.mxu0 0.0
    %2689 = vmatpush1.msra.mxu0 0.0
    %2690 = vmatprep.subr.mxu0 0.0
    %2691 = vmatpush1.msra.mxu0 %v2655
    %2692 = vmatprep.subr.mxu0 0.0
    %2693 = vmatpush2.msra.mxu0 0.0
    %2694 = vmatprep.subr.mxu0 0.0
    %2695 = vmatpush2.msra.mxu0 0.0
    %2696 = vmatprep.subr.mxu0 0.0
    %2697 = vmatpush2.msra.mxu0 0.0
    %2698 = vmatprep.subr.mxu0 0.0
    %2699 = vmatpush2.msra.mxu0 0.0
    %2700 = vmatprep.subr.mxu0 0.0
    %2701 = vmatpush2.msra.mxu0 0.0
    %2702 = vmatprep.subr.mxu0 0.0
    %2703 = vmatpush2.msra.mxu0 0.0
    %2704 = vmatprep.subr.mxu0 0.0
    %2705 = vmatpush2.msra.mxu0 0.0
    %2706 = vmatprep.subr.mxu0 0.0
    %2707 = vmatpush2.msra.mxu0 0.0
    %2708 = vmatprep.subr.mxu0 0.0
    %2709 = vmatpush2.msra.mxu0 0.0
    %2710 = vmatprep.subr.mxu0 0.0
    %2711 = vmatpush2.msra.mxu0 0.0
    %2712 = vmatprep.subr.mxu0 0.0
    %2713 = vmatpush2.msra.mxu0 0.0
    %2714 = vmatprep.subr.mxu0 0.0
    %2715 = vmatpush2.msra.mxu0 0.0
    %2716 = vmatprep.subr.mxu0 0.0
    %2717 = vmatpush2.msra.mxu0 0.0
    %2718 = vmatprep.subr.mxu0 0.0
    %2719 = vmatpush2.msra.mxu0 0.0
    %2720 = vmatprep.subr.mxu0 0.0
    %2721 = vmatpush2.msra.mxu0 0.0
    %2722 = vmatprep.subr.mxu0 0.0
    %2723 = vmatpush2.msra.mxu0 0.0
    %2724 = vmatprep.mubr.f32.mxu0 0.0
    %2725 = vmatmul.mubr.f32.gmra.mxu0 %v2658
    %v2726 = vpop.f32.mrf.mxu0
    %v2727 = vadd.f32 0.0, %v2726
    %v2728 = vpop.f32.mrf.mxu0
    %2729 = vdwg.mxu0
    %2732 = vrot.lane.b32.xlu0 %v2651, 8
    %v2733 = vpop.permute.xlu0 %2732
    %2734 = vrot.lane.b32.xlu0 %v2727, 8
    %v2735 = vpop.permute.xlu0 %2734
    %2738 = vst.msk [vmem:[#allocation2] sm:$0xff] %vm882, %v2733
    %2739 = vst.msk [vmem:[#allocation2 + $0x8] sm:$0xff] %vm882, %v2735
    %2740 = vrot.lane.b32.xlu0 %v2054, 112
    %v2741 = vpop.permute.xlu0 %2740
    %2742 = vrot.lane.b32.xlu0 %v2054, 80
    %v2743 = vpop.permute.xlu0 %2742
    %v2744 = vsel %vm208, %v2741, 0
    %v2746 = vsel %vm208, %v2743, 0
    %2748 = vmatprep.subr.mxu0 0.0
    %2749 = vmatpush1.xpose.msra.mxu0 0.0
    %2750 = vmatprep.subr.mxu0 0.0
    %2751 = vmatpush1.xpose.msra.mxu0 0.0
    %2752 = vmatprep.subr.mxu0 0.0
    %2753 = vmatpush1.xpose.msra.mxu0 0.0
    %2754 = vmatprep.subr.mxu0 0.0
    %2755 = vmatpush1.xpose.msra.mxu0 0.0
    %2756 = vmatprep.subr.mxu0 0.0
    %2757 = vmatpush1.xpose.msra.mxu0 0.0
    %2758 = vmatprep.subr.mxu0 0.0
    %2759 = vmatpush1.xpose.msra.mxu0 0.0
    %2760 = vmatprep.subr.mxu0 0.0
    %2761 = vmatpush1.xpose.msra.mxu0 0.0
    %2762 = vmatprep.subr.mxu0 0.0
    %2763 = vmatpush1.xpose.msra.mxu0 0.0
    %2764 = vmatprep.subr.mxu0 0.0
    %2765 = vmatpush1.xpose.msra.mxu0 0.0
    %2766 = vmatprep.subr.mxu0 0.0
    %2767 = vmatpush1.xpose.msra.mxu0 0.0
    %2768 = vmatprep.subr.mxu0 0.0
    %2769 = vmatpush1.xpose.msra.mxu0 0.0
    %2770 = vmatprep.subr.mxu0 0.0
    %2771 = vmatpush1.xpose.msra.mxu0 0.0
    %2772 = vmatprep.subr.mxu0 0.0
    %2773 = vmatpush1.xpose.msra.mxu0 0.0
    %2774 = vmatprep.subr.mxu0 0.0
    %2775 = vmatpush1.xpose.msra.mxu0 0.0
    %2776 = vmatprep.subr.mxu0 0.0
    %2777 = vmatpush1.xpose.msra.mxu0 0.0
    %2778 = vmatprep.subr.mxu0 0.0
    %2779 = vmatpush1.xpose.msra.mxu0 %v2746
    %2780 = vmatprep.subr.mxu0 0.0
    %2781 = vmatpush2.xpose.msra.mxu0 0.0
    %2782 = vmatprep.subr.mxu0 0.0
    %2783 = vmatpush2.xpose.msra.mxu0 0.0
    %2784 = vmatprep.subr.mxu0 0.0
    %2785 = vmatpush2.xpose.msra.mxu0 0.0
    %2786 = vmatprep.subr.mxu0 0.0
    %2787 = vmatpush2.xpose.msra.mxu0 0.0
    %2788 = vmatprep.subr.mxu0 0.0
    %2789 = vmatpush2.xpose.msra.mxu0 0.0
    %2790 = vmatprep.subr.mxu0 0.0
    %2791 = vmatpush2.xpose.msra.mxu0 0.0
    %2792 = vmatprep.subr.mxu0 0.0
    %2793 = vmatpush2.xpose.msra.mxu0 0.0
    %2794 = vmatprep.subr.mxu0 0.0
    %2795 = vmatpush2.xpose.msra.mxu0 0.0
    %2796 = vmatprep.subr.mxu0 0.0
    %2797 = vmatpush2.xpose.msra.mxu0 0.0
    %2798 = vmatprep.subr.mxu0 0.0
    %2799 = vmatpush2.xpose.msra.mxu0 0.0
    %2800 = vmatprep.subr.mxu0 0.0
    %2801 = vmatpush2.xpose.msra.mxu0 0.0
    %2802 = vmatprep.subr.mxu0 0.0
    %2803 = vmatpush2.xpose.msra.mxu0 0.0
    %2804 = vmatprep.subr.mxu0 0.0
    %2805 = vmatpush2.xpose.msra.mxu0 0.0
    %2806 = vmatprep.subr.mxu0 0.0
    %2807 = vmatpush2.xpose.msra.mxu0 0.0
    %2808 = vmatprep.subr.mxu0 0.0
    %2809 = vmatpush2.xpose.msra.mxu0 0.0
    %2810 = vmatprep.subr.mxu0 0.0
    %2811 = vmatpush2.xpose.msra.mxu0 0.0
    %2812 = vmatprep.mubr.f32.mxu0 0.0
    %2813 = vmatmul.mubr.f32.gmra.mxu0 %v2744
    %v2814 = vpop.f32.mrf.mxu0
    %v2815 = vadd.f32 0.0, %v2814
    %v2816 = vpop.f32.mrf.mxu0
    %2817 = vdwg.mxu0
    %2818 = vrot.lane.b32.xlu0 %v2059, 112
    %v2819 = vpop.permute.xlu0 %2818
    %2820 = vrot.lane.b32.xlu0 %v2059, 80
    %v2821 = vpop.permute.xlu0 %2820
    %v2822 = vsel %vm208, %v2819, 0
    %v2824 = vsel %vm208, %v2821, 0
    %2826 = vmatprep.subr.mxu0 0.0
    %2827 = vmatpush1.xpose.msra.mxu0 0.0
    %2828 = vmatprep.subr.mxu0 0.0
    %2829 = vmatpush1.xpose.msra.mxu0 0.0
    %2830 = vmatprep.subr.mxu0 0.0
    %2831 = vmatpush1.xpose.msra.mxu0 0.0
    %2832 = vmatprep.subr.mxu0 0.0
    %2833 = vmatpush1.xpose.msra.mxu0 0.0
    %2834 = vmatprep.subr.mxu0 0.0
    %2835 = vmatpush1.xpose.msra.mxu0 0.0
    %2836 = vmatprep.subr.mxu0 0.0
    %2837 = vmatpush1.xpose.msra.mxu0 0.0
    %2838 = vmatprep.subr.mxu0 0.0
    %2839 = vmatpush1.xpose.msra.mxu0 0.0
    %2840 = vmatprep.subr.mxu0 0.0
    %2841 = vmatpush1.xpose.msra.mxu0 0.0
    %2842 = vmatprep.subr.mxu0 0.0
    %2843 = vmatpush1.xpose.msra.mxu0 0.0
    %2844 = vmatprep.subr.mxu0 0.0
    %2845 = vmatpush1.xpose.msra.mxu0 0.0
    %2846 = vmatprep.subr.mxu0 0.0
    %2847 = vmatpush1.xpose.msra.mxu0 0.0
    %2848 = vmatprep.subr.mxu0 0.0
    %2849 = vmatpush1.xpose.msra.mxu0 0.0
    %2850 = vmatprep.subr.mxu0 0.0
    %2851 = vmatpush1.xpose.msra.mxu0 0.0
    %2852 = vmatprep.subr.mxu0 0.0
    %2853 = vmatpush1.xpose.msra.mxu0 0.0
    %2854 = vmatprep.subr.mxu0 0.0
    %2855 = vmatpush1.xpose.msra.mxu0 0.0
    %2856 = vmatprep.subr.mxu0 0.0
    %2857 = vmatpush1.xpose.msra.mxu0 %v2824
    %2858 = vmatprep.subr.mxu0 0.0
    %2859 = vmatpush2.xpose.msra.mxu0 0.0
    %2860 = vmatprep.subr.mxu0 0.0
    %2861 = vmatpush2.xpose.msra.mxu0 0.0
    %2862 = vmatprep.subr.mxu0 0.0
    %2863 = vmatpush2.xpose.msra.mxu0 0.0
    %2864 = vmatprep.subr.mxu0 0.0
    %2865 = vmatpush2.xpose.msra.mxu0 0.0
    %2866 = vmatprep.subr.mxu0 0.0
    %2867 = vmatpush2.xpose.msra.mxu0 0.0
    %2868 = vmatprep.subr.mxu0 0.0
    %2869 = vmatpush2.xpose.msra.mxu0 0.0
    %2870 = vmatprep.subr.mxu0 0.0
    %2871 = vmatpush2.xpose.msra.mxu0 0.0
    %2872 = vmatprep.subr.mxu0 0.0
    %2873 = vmatpush2.xpose.msra.mxu0 0.0
    %2874 = vmatprep.subr.mxu0 0.0
    %2875 = vmatpush2.xpose.msra.mxu0 0.0
    %2876 = vmatprep.subr.mxu0 0.0
    %2877 = vmatpush2.xpose.msra.mxu0 0.0
    %2878 = vmatprep.subr.mxu0 0.0
    %2879 = vmatpush2.xpose.msra.mxu0 0.0
    %2880 = vmatprep.subr.mxu0 0.0
    %2881 = vmatpush2.xpose.msra.mxu0 0.0
    %2882 = vmatprep.subr.mxu0 0.0
    %2883 = vmatpush2.xpose.msra.mxu0 0.0
    %2884 = vmatprep.subr.mxu0 0.0
    %2885 = vmatpush2.xpose.msra.mxu0 0.0
    %2886 = vmatprep.subr.mxu0 0.0
    %2887 = vmatpush2.xpose.msra.mxu0 0.0
    %2888 = vmatprep.subr.mxu0 0.0
    %2889 = vmatpush2.xpose.msra.mxu0 0.0
    %2890 = vmatprep.mubr.f32.mxu0 0.0
    %2891 = vmatmul.mubr.f32.gmra.mxu0 %v2822
    %v2892 = vpop.f32.mrf.mxu0
    %v2893 = vadd.f32 0.0, %v2892
    %v2894 = vpop.f32.mrf.mxu0
    %2895 = vdwg.mxu0
    %v2896 = vmul.f32 %v2815, 0.35355338
    %v2897 = vmul.f32 %v2893, 0.35355338
    %v2898 = vadd.f32 %v2896, %v111
    %v2899 = vadd.f32 %v2897, %v112
    %v2900 = vsel %vm208, %v2898, -inf
    %2901 = vmax.xlane.f32.xlu0 %v2900
    %v2902 = vpop.xlane.xlu0 %2901
    %v2903 = vsel %vm208, %v2899, -inf
    %2904 = vmax.xlane.f32.xlu0 %v2903
    %v2905 = vpop.xlane.xlu0 %2904
    %v2906 = vsub.f32 %v2898, %v2902
    %v2907 = vsub.f32 %v2899, %v2905
    %v2908 = vmul.f32 %v2906, 1.442695
    %v2909 = vpow.pop %v2908
    %v2910 = vmul.f32 %v2907, 1.442695
    %v2911 = vpow.pop %v2910
    %v2912 = vsel %vm208, %v2909, 0.0
    %2913 = vadd.xlane.f32.xlu0 %v2912
    %v2914 = vpop.xlane.xlu0 %2913
    %v2915 = vsel %vm208, %v2911, 0.0
    %2916 = vadd.xlane.f32.xlu0 %v2915
    %v2917 = vpop.xlane.xlu0 %2916
    %v2918 = vrcp.pop %v2914
    %v2919 = vmul.f32 %v2909, %v2918
    %v2920 = vrcp.pop %v2917
    %v2921 = vmul.f32 %v2911, %v2920
    %2922 = vrot.lane.b32.xlu0 %v2054, 48
    %v2923 = vpop.permute.xlu0 %2922
    %v2926 = vsel %vm208, %v2919, 0
    %2928 = vmatprep.subr.mxu0 0.0
    %2929 = vmatpush1.msra.mxu0 0.0
    %2930 = vmatprep.subr.mxu0 0.0
    %2931 = vmatpush1.msra.mxu0 0.0
    %2932 = vmatprep.subr.mxu0 0.0
    %2933 = vmatpush1.msra.mxu0 0.0
    %2934 = vmatprep.subr.mxu0 0.0
    %2935 = vmatpush1.msra.mxu0 0.0
    %2936 = vmatprep.subr.mxu0 0.0
    %2937 = vmatpush1.msra.mxu0 0.0
    %2938 = vmatprep.subr.mxu0 0.0
    %2939 = vmatpush1.msra.mxu0 0.0
    %2940 = vmatprep.subr.mxu0 0.0
    %2941 = vmatpush1.msra.mxu0 0.0
    %2942 = vmatprep.subr.mxu0 0.0
    %2943 = vmatpush1.msra.mxu0 0.0
    %2944 = vmatprep.subr.mxu0 0.0
    %2945 = vmatpush1.msra.mxu0 0.0
    %2946 = vmatprep.subr.mxu0 0.0
    %2947 = vmatpush1.msra.mxu0 0.0
    %2948 = vmatprep.subr.mxu0 0.0
    %2949 = vmatpush1.msra.mxu0 0.0
    %2950 = vmatprep.subr.mxu0 0.0
    %2951 = vmatpush1.msra.mxu0 0.0
    %2952 = vmatprep.subr.mxu0 0.0
    %2953 = vmatpush1.msra.mxu0 0.0
    %2954 = vmatprep.subr.mxu0 0.0
    %2955 = vmatpush1.msra.mxu0 0.0
    %2956 = vmatprep.subr.mxu0 0.0
    %2957 = vmatpush1.msra.mxu0 0.0
    %2958 = vmatprep.subr.mxu0 0.0
    %2959 = vmatpush1.msra.mxu0 %v2923
    %2960 = vmatprep.subr.mxu0 0.0
    %2961 = vmatpush2.msra.mxu0 0.0
    %2962 = vmatprep.subr.mxu0 0.0
    %2963 = vmatpush2.msra.mxu0 0.0
    %2964 = vmatprep.subr.mxu0 0.0
    %2965 = vmatpush2.msra.mxu0 0.0
    %2966 = vmatprep.subr.mxu0 0.0
    %2967 = vmatpush2.msra.mxu0 0.0
    %2968 = vmatprep.subr.mxu0 0.0
    %2969 = vmatpush2.msra.mxu0 0.0
    %2970 = vmatprep.subr.mxu0 0.0
    %2971 = vmatpush2.msra.mxu0 0.0
    %2972 = vmatprep.subr.mxu0 0.0
    %2973 = vmatpush2.msra.mxu0 0.0
    %2974 = vmatprep.subr.mxu0 0.0
    %2975 = vmatpush2.msra.mxu0 0.0
    %2976 = vmatprep.subr.mxu0 0.0
    %2977 = vmatpush2.msra.mxu0 0.0
    %2978 = vmatprep.subr.mxu0 0.0
    %2979 = vmatpush2.msra.mxu0 0.0
    %2980 = vmatprep.subr.mxu0 0.0
    %2981 = vmatpush2.msra.mxu0 0.0
    %2982 = vmatprep.subr.mxu0 0.0
    %2983 = vmatpush2.msra.mxu0 0.0
    %2984 = vmatprep.subr.mxu0 0.0
    %2985 = vmatpush2.msra.mxu0 0.0
    %2986 = vmatprep.subr.mxu0 0.0
    %2987 = vmatpush2.msra.mxu0 0.0
    %2988 = vmatprep.subr.mxu0 0.0
    %2989 = vmatpush2.msra.mxu0 0.0
    %2990 = vmatprep.subr.mxu0 0.0
    %2991 = vmatpush2.msra.mxu0 0.0
    %2992 = vmatprep.mubr.f32.mxu0 0.0
    %2993 = vmatmul.mubr.f32.gmra.mxu0 %v2926
    %v2994 = vpop.f32.mrf.mxu0
    %v2995 = vadd.f32 0.0, %v2994
    %v2996 = vpop.f32.mrf.mxu0
    %2997 = vdwg.mxu0
    %2998 = vrot.lane.b32.xlu0 %v2059, 48
    %v2999 = vpop.permute.xlu0 %2998
    %v3002 = vsel %vm208, %v2921, 0
    %3004 = vmatprep.subr.mxu0 0.0
    %3005 = vmatpush1.msra.mxu0 0.0
    %3006 = vmatprep.subr.mxu0 0.0
    %3007 = vmatpush1.msra.mxu0 0.0
    %3008 = vmatprep.subr.mxu0 0.0
    %3009 = vmatpush1.msra.mxu0 0.0
    %3010 = vmatprep.subr.mxu0 0.0
    %3011 = vmatpush1.msra.mxu0 0.0
    %3012 = vmatprep.subr.mxu0 0.0
    %3013 = vmatpush1.msra.mxu0 0.0
    %3014 = vmatprep.subr.mxu0 0.0
    %3015 = vmatpush1.msra.mxu0 0.0
    %3016 = vmatprep.subr.mxu0 0.0
    %3017 = vmatpush1.msra.mxu0 0.0
    %3018 = vmatprep.subr.mxu0 0.0
    %3019 = vmatpush1.msra.mxu0 0.0
    %3020 = vmatprep.subr.mxu0 0.0
    %3021 = vmatpush1.msra.mxu0 0.0
    %3022 = vmatprep.subr.mxu0 0.0
    %3023 = vmatpush1.msra.mxu0 0.0
    %3024 = vmatprep.subr.mxu0 0.0
    %3025 = vmatpush1.msra.mxu0 0.0
    %3026 = vmatprep.subr.mxu0 0.0
    %3027 = vmatpush1.msra.mxu0 0.0
    %3028 = vmatprep.subr.mxu0 0.0
    %3029 = vmatpush1.msra.mxu0 0.0
    %3030 = vmatprep.subr.mxu0 0.0
    %3031 = vmatpush1.msra.mxu0 0.0
    %3032 = vmatprep.subr.mxu0 0.0
    %3033 = vmatpush1.msra.mxu0 0.0
    %3034 = vmatprep.subr.mxu0 0.0
    %3035 = vmatpush1.msra.mxu0 %v2999
    %3036 = vmatprep.subr.mxu0 0.0
    %3037 = vmatpush2.msra.mxu0 0.0
    %3038 = vmatprep.subr.mxu0 0.0
    %3039 = vmatpush2.msra.mxu0 0.0
    %3040 = vmatprep.subr.mxu0 0.0
    %3041 = vmatpush2.msra.mxu0 0.0
    %3042 = vmatprep.subr.mxu0 0.0
    %3043 = vmatpush2.msra.mxu0 0.0
    %3044 = vmatprep.subr.mxu0 0.0
    %3045 = vmatpush2.msra.mxu0 0.0
    %3046 = vmatprep.subr.mxu0 0.0
    %3047 = vmatpush2.msra.mxu0 0.0
    %3048 = vmatprep.subr.mxu0 0.0
    %3049 = vmatpush2.msra.mxu0 0.0
    %3050 = vmatprep.subr.mxu0 0.0
    %3051 = vmatpush2.msra.mxu0 0.0
    %3052 = vmatprep.subr.mxu0 0.0
    %3053 = vmatpush2.msra.mxu0 0.0
    %3054 = vmatprep.subr.mxu0 0.0
    %3055 = vmatpush2.msra.mxu0 0.0
    %3056 = vmatprep.subr.mxu0 0.0
    %3057 = vmatpush2.msra.mxu0 0.0
    %3058 = vmatprep.subr.mxu0 0.0
    %3059 = vmatpush2.msra.mxu0 0.0
    %3060 = vmatprep.subr.mxu0 0.0
    %3061 = vmatpush2.msra.mxu0 0.0
    %3062 = vmatprep.subr.mxu0 0.0
    %3063 = vmatpush2.msra.mxu0 0.0
    %3064 = vmatprep.subr.mxu0 0.0
    %3065 = vmatpush2.msra.mxu0 0.0
    %3066 = vmatprep.subr.mxu0 0.0
    %3067 = vmatpush2.msra.mxu0 0.0
    %3068 = vmatprep.mubr.f32.mxu0 0.0
    %3069 = vmatmul.mubr.f32.gmra.mxu0 %v3002
    %v3070 = vpop.f32.mrf.mxu0
    %v3071 = vadd.f32 0.0, %v3070
    %v3072 = vpop.f32.mrf.mxu0
    %3073 = vdwg.mxu0
    %3076 = vrot.lane.b32.xlu0 %v2995, 16
    %v3077 = vpop.permute.xlu0 %3076
    %3078 = vrot.lane.b32.xlu0 %v3071, 16
    %v3079 = vpop.permute.xlu0 %3078
    %3082 = vst.msk [vmem:[#allocation2] sm:$0xff] %vm1227, %v3077
    %3083 = vst.msk [vmem:[#allocation2 + $0x8] sm:$0xff] %vm1227, %v3079
    %3084 = vrot.lane.b32.xlu0 %v2054, 104
    %v3085 = vpop.permute.xlu0 %3084
    %3086 = vrot.lane.b32.xlu0 %v2054, 72
    %v3087 = vpop.permute.xlu0 %3086
    %v3088 = vsel %vm208, %v3085, 0
    %v3090 = vsel %vm208, %v3087, 0
    %3092 = vmatprep.subr.mxu0 0.0
    %3093 = vmatpush1.xpose.msra.mxu0 0.0
    %3094 = vmatprep.subr.mxu0 0.0
    %3095 = vmatpush1.xpose.msra.mxu0 0.0
    %3096 = vmatprep.subr.mxu0 0.0
    %3097 = vmatpush1.xpose.msra.mxu0 0.0
    %3098 = vmatprep.subr.mxu0 0.0
    %3099 = vmatpush1.xpose.msra.mxu0 0.0
    %3100 = vmatprep.subr.mxu0 0.0
    %3101 = vmatpush1.xpose.msra.mxu0 0.0
    %3102 = vmatprep.subr.mxu0 0.0
    %3103 = vmatpush1.xpose.msra.mxu0 0.0
    %3104 = vmatprep.subr.mxu0 0.0
    %3105 = vmatpush1.xpose.msra.mxu0 0.0
    %3106 = vmatprep.subr.mxu0 0.0
    %3107 = vmatpush1.xpose.msra.mxu0 0.0
    %3108 = vmatprep.subr.mxu0 0.0
    %3109 = vmatpush1.xpose.msra.mxu0 0.0
    %3110 = vmatprep.subr.mxu0 0.0
    %3111 = vmatpush1.xpose.msra.mxu0 0.0
    %3112 = vmatprep.subr.mxu0 0.0
    %3113 = vmatpush1.xpose.msra.mxu0 0.0
    %3114 = vmatprep.subr.mxu0 0.0
    %3115 = vmatpush1.xpose.msra.mxu0 0.0
    %3116 = vmatprep.subr.mxu0 0.0
    %3117 = vmatpush1.xpose.msra.mxu0 0.0
    %3118 = vmatprep.subr.mxu0 0.0
    %3119 = vmatpush1.xpose.msra.mxu0 0.0
    %3120 = vmatprep.subr.mxu0 0.0
    %3121 = vmatpush1.xpose.msra.mxu0 0.0
    %3122 = vmatprep.subr.mxu0 0.0
    %3123 = vmatpush1.xpose.msra.mxu0 %v3090
    %3124 = vmatprep.subr.mxu0 0.0
    %3125 = vmatpush2.xpose.msra.mxu0 0.0
    %3126 = vmatprep.subr.mxu0 0.0
    %3127 = vmatpush2.xpose.msra.mxu0 0.0
    %3128 = vmatprep.subr.mxu0 0.0
    %3129 = vmatpush2.xpose.msra.mxu0 0.0
    %3130 = vmatprep.subr.mxu0 0.0
    %3131 = vmatpush2.xpose.msra.mxu0 0.0
    %3132 = vmatprep.subr.mxu0 0.0
    %3133 = vmatpush2.xpose.msra.mxu0 0.0
    %3134 = vmatprep.subr.mxu0 0.0
    %3135 = vmatpush2.xpose.msra.mxu0 0.0
    %3136 = vmatprep.subr.mxu0 0.0
    %3137 = vmatpush2.xpose.msra.mxu0 0.0
    %3138 = vmatprep.subr.mxu0 0.0
    %3139 = vmatpush2.xpose.msra.mxu0 0.0
    %3140 = vmatprep.subr.mxu0 0.0
    %3141 = vmatpush2.xpose.msra.mxu0 0.0
    %3142 = vmatprep.subr.mxu0 0.0
    %3143 = vmatpush2.xpose.msra.mxu0 0.0
    %3144 = vmatprep.subr.mxu0 0.0
    %3145 = vmatpush2.xpose.msra.mxu0 0.0
    %3146 = vmatprep.subr.mxu0 0.0
    %3147 = vmatpush2.xpose.msra.mxu0 0.0
    %3148 = vmatprep.subr.mxu0 0.0
    %3149 = vmatpush2.xpose.msra.mxu0 0.0
    %3150 = vmatprep.subr.mxu0 0.0
    %3151 = vmatpush2.xpose.msra.mxu0 0.0
    %3152 = vmatprep.subr.mxu0 0.0
    %3153 = vmatpush2.xpose.msra.mxu0 0.0
    %3154 = vmatprep.subr.mxu0 0.0
    %3155 = vmatpush2.xpose.msra.mxu0 0.0
    %3156 = vmatprep.mubr.f32.mxu0 0.0
    %3157 = vmatmul.mubr.f32.gmra.mxu0 %v3088
    %v3158 = vpop.f32.mrf.mxu0
    %v3159 = vadd.f32 0.0, %v3158
    %v3160 = vpop.f32.mrf.mxu0
    %3161 = vdwg.mxu0
    %3162 = vrot.lane.b32.xlu0 %v2059, 104
    %v3163 = vpop.permute.xlu0 %3162
    %3164 = vrot.lane.b32.xlu0 %v2059, 72
    %v3165 = vpop.permute.xlu0 %3164
    %v3166 = vsel %vm208, %v3163, 0
    %v3168 = vsel %vm208, %v3165, 0
    %3170 = vmatprep.subr.mxu0 0.0
    %3171 = vmatpush1.xpose.msra.mxu0 0.0
    %3172 = vmatprep.subr.mxu0 0.0
    %3173 = vmatpush1.xpose.msra.mxu0 0.0
    %3174 = vmatprep.subr.mxu0 0.0
    %3175 = vmatpush1.xpose.msra.mxu0 0.0
    %3176 = vmatprep.subr.mxu0 0.0
    %3177 = vmatpush1.xpose.msra.mxu0 0.0
    %3178 = vmatprep.subr.mxu0 0.0
    %3179 = vmatpush1.xpose.msra.mxu0 0.0
    %3180 = vmatprep.subr.mxu0 0.0
    %3181 = vmatpush1.xpose.msra.mxu0 0.0
    %3182 = vmatprep.subr.mxu0 0.0
    %3183 = vmatpush1.xpose.msra.mxu0 0.0
    %3184 = vmatprep.subr.mxu0 0.0
    %3185 = vmatpush1.xpose.msra.mxu0 0.0
    %3186 = vmatprep.subr.mxu0 0.0
    %3187 = vmatpush1.xpose.msra.mxu0 0.0
    %3188 = vmatprep.subr.mxu0 0.0
    %3189 = vmatpush1.xpose.msra.mxu0 0.0
    %3190 = vmatprep.subr.mxu0 0.0
    %3191 = vmatpush1.xpose.msra.mxu0 0.0
    %3192 = vmatprep.subr.mxu0 0.0
    %3193 = vmatpush1.xpose.msra.mxu0 0.0
    %3194 = vmatprep.subr.mxu0 0.0
    %3195 = vmatpush1.xpose.msra.mxu0 0.0
    %3196 = vmatprep.subr.mxu0 0.0
    %3197 = vmatpush1.xpose.msra.mxu0 0.0
    %3198 = vmatprep.subr.mxu0 0.0
    %3199 = vmatpush1.xpose.msra.mxu0 0.0
    %3200 = vmatprep.subr.mxu0 0.0
    %3201 = vmatpush1.xpose.msra.mxu0 %v3168
    %3202 = vmatprep.subr.mxu0 0.0
    %3203 = vmatpush2.xpose.msra.mxu0 0.0
    %3204 = vmatprep.subr.mxu0 0.0
    %3205 = vmatpush2.xpose.msra.mxu0 0.0
    %3206 = vmatprep.subr.mxu0 0.0
    %3207 = vmatpush2.xpose.msra.mxu0 0.0
    %3208 = vmatprep.subr.mxu0 0.0
    %3209 = vmatpush2.xpose.msra.mxu0 0.0
    %3210 = vmatprep.subr.mxu0 0.0
    %3211 = vmatpush2.xpose.msra.mxu0 0.0
    %3212 = vmatprep.subr.mxu0 0.0
    %3213 = vmatpush2.xpose.msra.mxu0 0.0
    %3214 = vmatprep.subr.mxu0 0.0
    %3215 = vmatpush2.xpose.msra.mxu0 0.0
    %3216 = vmatprep.subr.mxu0 0.0
    %3217 = vmatpush2.xpose.msra.mxu0 0.0
    %3218 = vmatprep.subr.mxu0 0.0
    %3219 = vmatpush2.xpose.msra.mxu0 0.0
    %3220 = vmatprep.subr.mxu0 0.0
    %3221 = vmatpush2.xpose.msra.mxu0 0.0
    %3222 = vmatprep.subr.mxu0 0.0
    %3223 = vmatpush2.xpose.msra.mxu0 0.0
    %3224 = vmatprep.subr.mxu0 0.0
    %3225 = vmatpush2.xpose.msra.mxu0 0.0
    %3226 = vmatprep.subr.mxu0 0.0
    %3227 = vmatpush2.xpose.msra.mxu0 0.0
    %3228 = vmatprep.subr.mxu0 0.0
    %3229 = vmatpush2.xpose.msra.mxu0 0.0
    %3230 = vmatprep.subr.mxu0 0.0
    %3231 = vmatpush2.xpose.msra.mxu0 0.0
    %3232 = vmatprep.subr.mxu0 0.0
    %3233 = vmatpush2.xpose.msra.mxu0 0.0
    %3234 = vmatprep.mubr.f32.mxu0 0.0
    %3235 = vmatmul.mubr.f32.gmra.mxu0 %v3166
    %v3236 = vpop.f32.mrf.mxu0
    %v3237 = vadd.f32 0.0, %v3236
    %v3238 = vpop.f32.mrf.mxu0
    %3239 = vdwg.mxu0
    %v3240 = vmul.f32 %v3159, 0.35355338
    %v3241 = vmul.f32 %v3237, 0.35355338
    %v3242 = vadd.f32 %v3240, %v111
    %v3243 = vadd.f32 %v3241, %v112
    %v3244 = vsel %vm208, %v3242, -inf
    %3245 = vmax.xlane.f32.xlu0 %v3244
    %v3246 = vpop.xlane.xlu0 %3245
    %v3247 = vsel %vm208, %v3243, -inf
    %3248 = vmax.xlane.f32.xlu0 %v3247
    %v3249 = vpop.xlane.xlu0 %3248
    %v3250 = vsub.f32 %v3242, %v3246
    %v3251 = vsub.f32 %v3243, %v3249
    %v3252 = vmul.f32 %v3250, 1.442695
    %v3253 = vpow.pop %v3252
    %v3254 = vmul.f32 %v3251, 1.442695
    %v3255 = vpow.pop %v3254
    %v3256 = vsel %vm208, %v3253, 0.0
    %3257 = vadd.xlane.f32.xlu0 %v3256
    %v3258 = vpop.xlane.xlu0 %3257
    %v3259 = vsel %vm208, %v3255, 0.0
    %3260 = vadd.xlane.f32.xlu0 %v3259
    %v3261 = vpop.xlane.xlu0 %3260
    %v3262 = vrcp.pop %v3258
    %v3263 = vmul.f32 %v3253, %v3262
    %v3264 = vrcp.pop %v3261
    %v3265 = vmul.f32 %v3255, %v3264
    %3266 = vrot.lane.b32.xlu0 %v2054, 40
    %v3267 = vpop.permute.xlu0 %3266
    %v3270 = vsel %vm208, %v3263, 0
    %3272 = vmatprep.subr.mxu0 0.0
    %3273 = vmatpush1.msra.mxu0 0.0
    %3274 = vmatprep.subr.mxu0 0.0
    %3275 = vmatpush1.msra.mxu0 0.0
    %3276 = vmatprep.subr.mxu0 0.0
    %3277 = vmatpush1.msra.mxu0 0.0
    %3278 = vmatprep.subr.mxu0 0.0
    %3279 = vmatpush1.msra.mxu0 0.0
    %3280 = vmatprep.subr.mxu0 0.0
    %3281 = vmatpush1.msra.mxu0 0.0
    %3282 = vmatprep.subr.mxu0 0.0
    %3283 = vmatpush1.msra.mxu0 0.0
    %3284 = vmatprep.subr.mxu0 0.0
    %3285 = vmatpush1.msra.mxu0 0.0
    %3286 = vmatprep.subr.mxu0 0.0
    %3287 = vmatpush1.msra.mxu0 0.0
    %3288 = vmatprep.subr.mxu0 0.0
    %3289 = vmatpush1.msra.mxu0 0.0
    %3290 = vmatprep.subr.mxu0 0.0
    %3291 = vmatpush1.msra.mxu0 0.0
    %3292 = vmatprep.subr.mxu0 0.0
    %3293 = vmatpush1.msra.mxu0 0.0
    %3294 = vmatprep.subr.mxu0 0.0
    %3295 = vmatpush1.msra.mxu0 0.0
    %3296 = vmatprep.subr.mxu0 0.0
    %3297 = vmatpush1.msra.mxu0 0.0
    %3298 = vmatprep.subr.mxu0 0.0
    %3299 = vmatpush1.msra.mxu0 0.0
    %3300 = vmatprep.subr.mxu0 0.0
    %3301 = vmatpush1.msra.mxu0 0.0
    %3302 = vmatprep.subr.mxu0 0.0
    %3303 = vmatpush1.msra.mxu0 %v3267
    %3304 = vmatprep.subr.mxu0 0.0
    %3305 = vmatpush2.msra.mxu0 0.0
    %3306 = vmatprep.subr.mxu0 0.0
    %3307 = vmatpush2.msra.mxu0 0.0
    %3308 = vmatprep.subr.mxu0 0.0
    %3309 = vmatpush2.msra.mxu0 0.0
    %3310 = vmatprep.subr.mxu0 0.0
    %3311 = vmatpush2.msra.mxu0 0.0
    %3312 = vmatprep.subr.mxu0 0.0
    %3313 = vmatpush2.msra.mxu0 0.0
    %3314 = vmatprep.subr.mxu0 0.0
    %3315 = vmatpush2.msra.mxu0 0.0
    %3316 = vmatprep.subr.mxu0 0.0
    %3317 = vmatpush2.msra.mxu0 0.0
    %3318 = vmatprep.subr.mxu0 0.0
    %3319 = vmatpush2.msra.mxu0 0.0
    %3320 = vmatprep.subr.mxu0 0.0
    %3321 = vmatpush2.msra.mxu0 0.0
    %3322 = vmatprep.subr.mxu0 0.0
    %3323 = vmatpush2.msra.mxu0 0.0
    %3324 = vmatprep.subr.mxu0 0.0
    %3325 = vmatpush2.msra.mxu0 0.0
    %3326 = vmatprep.subr.mxu0 0.0
    %3327 = vmatpush2.msra.mxu0 0.0
    %3328 = vmatprep.subr.mxu0 0.0
    %3329 = vmatpush2.msra.mxu0 0.0
    %3330 = vmatprep.subr.mxu0 0.0
    %3331 = vmatpush2.msra.mxu0 0.0
    %3332 = vmatprep.subr.mxu0 0.0
    %3333 = vmatpush2.msra.mxu0 0.0
    %3334 = vmatprep.subr.mxu0 0.0
    %3335 = vmatpush2.msra.mxu0 0.0
    %3336 = vmatprep.mubr.f32.mxu0 0.0
    %3337 = vmatmul.mubr.f32.gmra.mxu0 %v3270
    %v3338 = vpop.f32.mrf.mxu0
    %v3339 = vadd.f32 0.0, %v3338
    %v3340 = vpop.f32.mrf.mxu0
    %3341 = vdwg.mxu0
    %3342 = vrot.lane.b32.xlu0 %v2059, 40
    %v3343 = vpop.permute.xlu0 %3342
    %v3346 = vsel %vm208, %v3265, 0
    %3348 = vmatprep.subr.mxu0 0.0
    %3349 = vmatpush1.msra.mxu0 0.0
    %3350 = vmatprep.subr.mxu0 0.0
    %3351 = vmatpush1.msra.mxu0 0.0
    %3352 = vmatprep.subr.mxu0 0.0
    %3353 = vmatpush1.msra.mxu0 0.0
    %3354 = vmatprep.subr.mxu0 0.0
    %3355 = vmatpush1.msra.mxu0 0.0
    %3356 = vmatprep.subr.mxu0 0.0
    %3357 = vmatpush1.msra.mxu0 0.0
    %3358 = vmatprep.subr.mxu0 0.0
    %3359 = vmatpush1.msra.mxu0 0.0
    %3360 = vmatprep.subr.mxu0 0.0
    %3361 = vmatpush1.msra.mxu0 0.0
    %3362 = vmatprep.subr.mxu0 0.0
    %3363 = vmatpush1.msra.mxu0 0.0
    %3364 = vmatprep.subr.mxu0 0.0
    %3365 = vmatpush1.msra.mxu0 0.0
    %3366 = vmatprep.subr.mxu0 0.0
    %3367 = vmatpush1.msra.mxu0 0.0
    %3368 = vmatprep.subr.mxu0 0.0
    %3369 = vmatpush1.msra.mxu0 0.0
    %3370 = vmatprep.subr.mxu0 0.0
    %3371 = vmatpush1.msra.mxu0 0.0
    %3372 = vmatprep.subr.mxu0 0.0
    %3373 = vmatpush1.msra.mxu0 0.0
    %3374 = vmatprep.subr.mxu0 0.0
    %3375 = vmatpush1.msra.mxu0 0.0
    %3376 = vmatprep.subr.mxu0 0.0
    %3377 = vmatpush1.msra.mxu0 0.0
    %3378 = vmatprep.subr.mxu0 0.0
    %3379 = vmatpush1.msra.mxu0 %v3343
    %3380 = vmatprep.subr.mxu0 0.0
    %3381 = vmatpush2.msra.mxu0 0.0
    %3382 = vmatprep.subr.mxu0 0.0
    %3383 = vmatpush2.msra.mxu0 0.0
    %3384 = vmatprep.subr.mxu0 0.0
    %3385 = vmatpush2.msra.mxu0 0.0
    %3386 = vmatprep.subr.mxu0 0.0
    %3387 = vmatpush2.msra.mxu0 0.0
    %3388 = vmatprep.subr.mxu0 0.0
    %3389 = vmatpush2.msra.mxu0 0.0
    %3390 = vmatprep.subr.mxu0 0.0
    %3391 = vmatpush2.msra.mxu0 0.0
    %3392 = vmatprep.subr.mxu0 0.0
    %3393 = vmatpush2.msra.mxu0 0.0
    %3394 = vmatprep.subr.mxu0 0.0
    %3395 = vmatpush2.msra.mxu0 0.0
    %3396 = vmatprep.subr.mxu0 0.0
    %3397 = vmatpush2.msra.mxu0 0.0
    %3398 = vmatprep.subr.mxu0 0.0
    %3399 = vmatpush2.msra.mxu0 0.0
    %3400 = vmatprep.subr.mxu0 0.0
    %3401 = vmatpush2.msra.mxu0 0.0
    %3402 = vmatprep.subr.mxu0 0.0
    %3403 = vmatpush2.msra.mxu0 0.0
    %3404 = vmatprep.subr.mxu0 0.0
    %3405 = vmatpush2.msra.mxu0 0.0
    %3406 = vmatprep.subr.mxu0 0.0
    %3407 = vmatpush2.msra.mxu0 0.0
    %3408 = vmatprep.subr.mxu0 0.0
    %3409 = vmatpush2.msra.mxu0 0.0
    %3410 = vmatprep.subr.mxu0 0.0
    %3411 = vmatpush2.msra.mxu0 0.0
    %3412 = vmatprep.mubr.f32.mxu0 0.0
    %3413 = vmatmul.mubr.f32.gmra.mxu0 %v3346
    %v3414 = vpop.f32.mrf.mxu0
    %v3415 = vadd.f32 0.0, %v3414
    %v3416 = vpop.f32.mrf.mxu0
    %3417 = vdwg.mxu0
    %3420 = vrot.lane.b32.xlu0 %v3339, 24
    %v3421 = vpop.permute.xlu0 %3420
    %3422 = vrot.lane.b32.xlu0 %v3415, 24
    %v3423 = vpop.permute.xlu0 %3422
    %3426 = vst.msk [vmem:[#allocation2] sm:$0xff] %vm1572, %v3421
    %3427 = vst.msk [vmem:[#allocation2 + $0x8] sm:$0xff] %vm1572, %v3423
    %v3428 = vld [vmem:[#allocation2] sm:$0xff]
    %v3429 = vld [vmem:[#allocation2 + $0x8] sm:$0xff]
    %s3430 = scalar_lea.vmem %s7, 32
    %v3431 = vld [vmem:[%s3430] sm:$0xff]
    %v3432 = vld [vmem:[%s3430 + $0x8] sm:$0xff]
    %v3433 = vld [vmem:[%s3430 + $0x10] sm:$0xff]
    %v3434 = vld [vmem:[%s3430 + $0x18] sm:$0xff]
    %s3435 = scalar_lea.vmem %s8, 1
    %v3436 = vld [vmem:[%s3435] sm:$0x1]
    %v3438 = vlaneseq
    %v3439 = vshrl.u32 %v3438, 7
    %v3440 = vsub.s32 0, %v3439
    %v3441 = vrot.slane %v3436, %v3440
    %v3444 = vsel %vm67, %v3428, 0
    %v3447 = vsel %vm67, %v3429, 0
    %3449 = vmatprep.subr.mxu0 0.0
    %3450 = vmatpush1.msra.mxu0 0.0
    %3451 = vmatprep.subr.mxu0 0.0
    %3452 = vmatpush1.msra.mxu0 0.0
    %3453 = vmatprep.subr.mxu0 0.0
    %3454 = vmatpush1.msra.mxu0 0.0
    %3455 = vmatprep.subr.mxu0 0.0
    %3456 = vmatpush1.msra.mxu0 0.0
    %3457 = vmatprep.subr.mxu0 0.0
    %3458 = vmatpush1.msra.mxu0 0.0
    %3459 = vmatprep.subr.mxu0 0.0
    %3460 = vmatpush1.msra.mxu0 0.0
    %3461 = vmatprep.subr.mxu0 0.0
    %3462 = vmatpush1.msra.mxu0 0.0
    %3463 = vmatprep.subr.mxu0 0.0
    %3464 = vmatpush1.msra.mxu0 0.0
    %3465 = vmatprep.subr.mxu0 0.0
    %3466 = vmatpush1.msra.mxu0 0.0
    %3467 = vmatprep.subr.mxu0 0.0
    %3468 = vmatpush1.msra.mxu0 0.0
    %3469 = vmatprep.subr.mxu0 0.0
    %3470 = vmatpush1.msra.mxu0 0.0
    %3471 = vmatprep.subr.mxu0 0.0
    %3472 = vmatpush1.msra.mxu0 0.0
    %3473 = vmatprep.subr.mxu0 0.0
    %3474 = vmatpush1.msra.mxu0 %v3434
    %3475 = vmatprep.subr.mxu0 0.0
    %3476 = vmatpush1.msra.mxu0 %v3433
    %3477 = vmatprep.subr.mxu0 0.0
    %3478 = vmatpush1.msra.mxu0 %v3432
    %3479 = vmatprep.subr.mxu0 0.0
    %3480 = vmatpush1.msra.mxu0 %v3431
    %3481 = vmatprep.subr.mxu0 0.0
    %3482 = vmatpush2.msra.mxu0 0.0
    %3483 = vmatprep.subr.mxu0 0.0
    %3484 = vmatpush2.msra.mxu0 0.0
    %3485 = vmatprep.subr.mxu0 0.0
    %3486 = vmatpush2.msra.mxu0 0.0
    %3487 = vmatprep.subr.mxu0 0.0
    %3488 = vmatpush2.msra.mxu0 0.0
    %3489 = vmatprep.subr.mxu0 0.0
    %3490 = vmatpush2.msra.mxu0 0.0
    %3491 = vmatprep.subr.mxu0 0.0
    %3492 = vmatpush2.msra.mxu0 0.0
    %3493 = vmatprep.subr.mxu0 0.0
    %3494 = vmatpush2.msra.mxu0 0.0
    %3495 = vmatprep.subr.mxu0 0.0
    %3496 = vmatpush2.msra.mxu0 0.0
    %3497 = vmatprep.subr.mxu0 0.0
    %3498 = vmatpush2.msra.mxu0 0.0
    %3499 = vmatprep.subr.mxu0 0.0
    %3500 = vmatpush2.msra.mxu0 0.0
    %3501 = vmatprep.subr.mxu0 0.0
    %3502 = vmatpush2.msra.mxu0 0.0
    %3503 = vmatprep.subr.mxu0 0.0
    %3504 = vmatpush2.msra.mxu0 0.0
    %3505 = vmatprep.subr.mxu0 0.0
    %3506 = vmatpush2.msra.mxu0 0.0
    %3507 = vmatprep.subr.mxu0 0.0
    %3508 = vmatpush2.msra.mxu0 0.0
    %3509 = vmatprep.subr.mxu0 0.0
    %3510 = vmatpush2.msra.mxu0 0.0
    %3511 = vmatprep.subr.mxu0 0.0
    %3512 = vmatpush2.msra.mxu0 0.0
    %3513 = vmatprep.mubr.f32.mxu0 0.0
    %3514 = vmatmul.mubr.f32.gmra.mxu0 %v3444
    %v3515 = vpop.f32.mrf.mxu0
    %v3516 = vadd.f32 %v3441, %v3515
    %v3517 = vpop.f32.mrf.mxu0
    %3518 = vmatprep.mubr.f32.mxu0 0.0
    %3519 = vmatmul.mubr.f32.gmra.mxu0 %v3447
    %v3520 = vpop.f32.mrf.mxu0
    %v3521 = vadd.f32 %v3441, %v3520
    %v3522 = vpop.f32.mrf.mxu0
    %3523 = vdwg.mxu0
    %v3524 = vadd.f32 %v3516, %v1966
    %v3525 = vadd.f32 %v3521, %v1967
    %s3526 = scalar_lea.vmem %s9, 1
    %v3527 = vld [vmem:[%s3526] sm:$0x1]
    %s3528 = scalar_lea.vmem %s10, 1
    %v3529 = vld [vmem:[%s3528] sm:$0x1]
    %v3530 = vsel %vm67, %v3524, 0.0
    %3531 = vadd.xlane.f32.xlu0 %v3530
    %v3532 = vpop.xlane.xlu0 %3531
    %v3533 = vsel %vm67, %v3525, 0.0
    %3534 = vadd.xlane.f32.xlu0 %v3533
    %v3535 = vpop.xlane.xlu0 %3534
    %v3536 = vmul.f32 %v3532, %v74
    %v3537 = vmul.f32 %v3535, %v74
    %v3538 = vsub.f32 %v3524, %v3536
    %v3539 = vsub.f32 %v3525, %v3537
    %v3540 = vmul.f32 %v3538, %v3538
    %v3541 = vmul.f32 %v3539, %v3539
    %v3542 = vsel %vm67, %v3540, 0.0
    %3543 = vadd.xlane.f32.xlu0 %v3542
    %v3544 = vpop.xlane.xlu0 %3543
    %v3545 = vsel %vm67, %v3541, 0.0
    %3546 = vadd.xlane.f32.xlu0 %v3545
    %v3547 = vpop.xlane.xlu0 %3546
    %v3548 = vmul.f32 %v3544, %v74
    %v3549 = vmul.f32 %v3547, %v74
    %v3550 = vadd.f32 %v3548, 1e-12
    %v3551 = vadd.f32 %v3549, 1e-12
    %v3552 = vrsqrt.pop %v3550
    %v3553 = vrsqrt.pop %v3551
    %v3554 = vmul.f32 %v3538, %v3552
    %v3555 = vmul.f32 %v3539, %v3553
    %v3557 = vlaneseq
    %v3558 = vshrl.u32 %v3557, 7
    %v3559 = vsub.s32 0, %v3558
    %v3560 = vrot.slane %v3527, %v3559
    %v3562 = vmul.f32 %v3554, %v3560
    %v3563 = vmul.f32 %v3555, %v3560
    %v3565 = vlaneseq
    %v3566 = vshrl.u32 %v3565, 7
    %v3567 = vsub.s32 0, %v3566
    %v3568 = vrot.slane %v3529, %v3567
    %v3570 = vadd.f32 %v3562, %v3568
    %v3571 = vadd.f32 %v3563, %v3568
    %s3572 = scalar_lea.vmem %s11, 32
    %v3573 = vld [vmem:[%s3572] sm:$0xff]
    %v3574 = vld [vmem:[%s3572 + $0x8] sm:$0xff]
    %v3575 = vld [vmem:[%s3572 + $0x10] sm:$0xff]
    %v3576 = vld [vmem:[%s3572 + $0x18] sm:$0xff]
    %s3577 = scalar_lea.vmem %s12, 1
    %v3578 = vld [vmem:[%s3577] sm:$0x1]
    %v3580 = vlaneseq
    %v3581 = vshrl.u32 %v3580, 7
    %v3582 = vsub.s32 0, %v3581
    %v3583 = vrot.slane %v3578, %v3582
    %v3586 = vsel %vm67, %v3570, 0
    %v3589 = vsel %vm67, %v3571, 0
    %3591 = vmatprep.subr.mxu0 0.0
    %3592 = vmatpush1.msra.mxu0 0.0
    %3593 = vmatprep.subr.mxu0 0.0
    %3594 = vmatpush1.msra.mxu0 0.0
    %3595 = vmatprep.subr.mxu0 0.0
    %3596 = vmatpush1.msra.mxu0 0.0
    %3597 = vmatprep.subr.mxu0 0.0
    %3598 = vmatpush1.msra.mxu0 0.0
    %3599 = vmatprep.subr.mxu0 0.0
    %3600 = vmatpush1.msra.mxu0 0.0
    %3601 = vmatprep.subr.mxu0 0.0
    %3602 = vmatpush1.msra.mxu0 0.0
    %3603 = vmatprep.subr.mxu0 0.0
    %3604 = vmatpush1.msra.mxu0 0.0
    %3605 = vmatprep.subr.mxu0 0.0
    %3606 = vmatpush1.msra.mxu0 0.0
    %3607 = vmatprep.subr.mxu0 0.0
    %3608 = vmatpush1.msra.mxu0 0.0
    %3609 = vmatprep.subr.mxu0 0.0
    %3610 = vmatpush1.msra.mxu0 0.0
    %3611 = vmatprep.subr.mxu0 0.0
    %3612 = vmatpush1.msra.mxu0 0.0
    %3613 = vmatprep.subr.mxu0 0.0
    %3614 = vmatpush1.msra.mxu0 0.0
    %3615 = vmatprep.subr.mxu0 0.0
    %3616 = vmatpush1.msra.mxu0 %v3576
    %3617 = vmatprep.subr.mxu0 0.0
    %3618 = vmatpush1.msra.mxu0 %v3575
    %3619 = vmatprep.subr.mxu0 0.0
    %3620 = vmatpush1.msra.mxu0 %v3574
    %3621 = vmatprep.subr.mxu0 0.0
    %3622 = vmatpush1.msra.mxu0 %v3573
    %3623 = vmatprep.subr.mxu0 0.0
    %3624 = vmatpush2.msra.mxu0 0.0
    %3625 = vmatprep.subr.mxu0 0.0
    %3626 = vmatpush2.msra.mxu0 0.0
    %3627 = vmatprep.subr.mxu0 0.0
    %3628 = vmatpush2.msra.mxu0 0.0
    %3629 = vmatprep.subr.mxu0 0.0
    %3630 = vmatpush2.msra.mxu0 0.0
    %3631 = vmatprep.subr.mxu0 0.0
    %3632 = vmatpush2.msra.mxu0 0.0
    %3633 = vmatprep.subr.mxu0 0.0
    %3634 = vmatpush2.msra.mxu0 0.0
    %3635 = vmatprep.subr.mxu0 0.0
    %3636 = vmatpush2.msra.mxu0 0.0
    %3637 = vmatprep.subr.mxu0 0.0
    %3638 = vmatpush2.msra.mxu0 0.0
    %3639 = vmatprep.subr.mxu0 0.0
    %3640 = vmatpush2.msra.mxu0 0.0
    %3641 = vmatprep.subr.mxu0 0.0
    %3642 = vmatpush2.msra.mxu0 0.0
    %3643 = vmatprep.subr.mxu0 0.0
    %3644 = vmatpush2.msra.mxu0 0.0
    %3645 = vmatprep.subr.mxu0 0.0
    %3646 = vmatpush2.msra.mxu0 0.0
    %3647 = vmatprep.subr.mxu0 0.0
    %3648 = vmatpush2.msra.mxu0 0.0
    %3649 = vmatprep.subr.mxu0 0.0
    %3650 = vmatpush2.msra.mxu0 0.0
    %3651 = vmatprep.subr.mxu0 0.0
    %3652 = vmatpush2.msra.mxu0 0.0
    %3653 = vmatprep.subr.mxu0 0.0
    %3654 = vmatpush2.msra.mxu0 0.0
    %3655 = vmatprep.mubr.f32.mxu0 0.0
    %3656 = vmatmul.mubr.f32.gmra.mxu0 %v3586
    %v3657 = vpop.f32.mrf.mxu0
    %v3658 = vadd.f32 %v3583, %v3657
    %v3659 = vpop.f32.mrf.mxu0
    %3660 = vmatprep.mubr.f32.mxu0 0.0
    %3661 = vmatmul.mubr.f32.gmra.mxu0 %v3589
    %v3662 = vpop.f32.mrf.mxu0
    %v3663 = vadd.f32 %v3583, %v3662
    %v3664 = vpop.f32.mrf.mxu0
    %3665 = vdwg.mxu0
    %v3666 = vmul.f32 %v3658, %v3658
    %v3667 = vmul.f32 %v3663, %v3663
    %v3668 = vmul.f32 %v3658, %v3666
    %v3669 = vmul.f32 %v3663, %v3667
    %v3670 = vmul.f32 %v3668, 0.044715
    %v3671 = vmul.f32 %v3669, 0.044715
    %v3672 = vadd.f32 %v3658, %v3670
    %v3673 = vadd.f32 %v3663, %v3671
    %v3674 = vmul.f32 %v3672, 0.7978846
    %v3675 = vmul.f32 %v3673, 0.7978846
    %v3676 = vtanh.pop %v3674
    %v3677 = vtanh.pop %v3675
    %v3678 = vadd.f32 %v3676, 1.0
    %v3679 = vadd.f32 %v3677, 1.0
    %v3680 = vmul.f32 %v3678, 0.5
    %v3681 = vmul.f32 %v3679, 0.5
    %v3682 = vmul.f32 %v3658, %v3680
    %v3683 = vmul.f32 %v3663, %v3681
    %s3684 = scalar_lea.vmem %s13, 64
    %v3685 = vld [vmem:[%s3684] sm:$0xff]
    %v3686 = vld [vmem:[%s3684 + $0x8] sm:$0xff]
    %v3687 = vld [vmem:[%s3684 + $0x10] sm:$0xff]
    %v3688 = vld [vmem:[%s3684 + $0x18] sm:$0xff]
    %v3689 = vld [vmem:[%s3684 + $0x20] sm:$0xff]
    %v3690 = vld [vmem:[%s3684 + $0x28] sm:$0xff]
    %v3691 = vld [vmem:[%s3684 + $0x30] sm:$0xff]
    %v3692 = vld [vmem:[%s3684 + $0x38] sm:$0xff]
    %s3693 = scalar_lea.vmem %s14, 1
    %v3694 = vld [vmem:[%s3693] sm:$0x1]
    %v3696 = vlaneseq
    %v3697 = vshrl.u32 %v3696, 7
    %v3698 = vsub.s32 0, %v3697
    %v3699 = vrot.slane %v3694, %v3698
    %v3702 = vsel %vm1840, %v3682, 0
    %v3705 = vsel %vm1840, %v3683, 0
    %3707 = vmatprep.subr.mxu0 0.0
    %3708 = vmatpush1.msra.mxu0 0.0
    %3709 = vmatprep.subr.mxu0 0.0
    %3710 = vmatpush1.msra.mxu0 0.0
    %3711 = vmatprep.subr.mxu0 0.0
    %3712 = vmatpush1.msra.mxu0 0.0
    %3713 = vmatprep.subr.mxu0 0.0
    %3714 = vmatpush1.msra.mxu0 0.0
    %3715 = vmatprep.subr.mxu0 0.0
    %3716 = vmatpush1.msra.mxu0 0.0
    %3717 = vmatprep.subr.mxu0 0.0
    %3718 = vmatpush1.msra.mxu0 0.0
    %3719 = vmatprep.subr.mxu0 0.0
    %3720 = vmatpush1.msra.mxu0 0.0
    %3721 = vmatprep.subr.mxu0 0.0
    %3722 = vmatpush1.msra.mxu0 0.0
    %3723 = vmatprep.subr.mxu0 0.0
    %3724 = vmatpush1.msra.mxu0 %v3692
    %3725 = vmatprep.subr.mxu0 0.0
    %3726 = vmatpush1.msra.mxu0 %v3691
    %3727 = vmatprep.subr.mxu0 0.0
    %3728 = vmatpush1.msra.mxu0 %v3690
    %3729 = vmatprep.subr.mxu0 0.0
    %3730 = vmatpush1.msra.mxu0 %v3689
    %3731 = vmatprep.subr.mxu0 0.0
    %3732 = vmatpush1.msra.mxu0 %v3688
    %3733 = vmatprep.subr.mxu0 0.0
    %3734 = vmatpush1.msra.mxu0 %v3687
    %3735 = vmatprep.subr.mxu0 0.0
    %3736 = vmatpush1.msra.mxu0 %v3686
    %3737 = vmatprep.subr.mxu0 0.0
    %3738 = vmatpush1.msra.mxu0 %v3685
    %3739 = vmatprep.subr.mxu0 0.0
    %3740 = vmatpush2.msra.mxu0 0.0
    %3741 = vmatprep.subr.mxu0 0.0
    %3742 = vmatpush2.msra.mxu0 0.0
    %3743 = vmatprep.subr.mxu0 0.0
    %3744 = vmatpush2.msra.mxu0 0.0
    %3745 = vmatprep.subr.mxu0 0.0
    %3746 = vmatpush2.msra.mxu0 0.0
    %3747 = vmatprep.subr.mxu0 0.0
    %3748 = vmatpush2.msra.mxu0 0.0
    %3749 = vmatprep.subr.mxu0 0.0
    %3750 = vmatpush2.msra.mxu0 0.0
    %3751 = vmatprep.subr.mxu0 0.0
    %3752 = vmatpush2.msra.mxu0 0.0
    %3753 = vmatprep.subr.mxu0 0.0
    %3754 = vmatpush2.msra.mxu0 0.0
    %3755 = vmatprep.subr.mxu0 0.0
    %3756 = vmatpush2.msra.mxu0 0.0
    %3757 = vmatprep.subr.mxu0 0.0
    %3758 = vmatpush2.msra.mxu0 0.0
    %3759 = vmatprep.subr.mxu0 0.0
    %3760 = vmatpush2.msra.mxu0 0.0
    %3761 = vmatprep.subr.mxu0 0.0
    %3762 = vmatpush2.msra.mxu0 0.0
    %3763 = vmatprep.subr.mxu0 0.0
    %3764 = vmatpush2.msra.mxu0 0.0
    %3765 = vmatprep.subr.mxu0 0.0
    %3766 = vmatpush2.msra.mxu0 0.0
    %3767 = vmatprep.subr.mxu0 0.0
    %3768 = vmatpush2.msra.mxu0 0.0
    %3769 = vmatprep.subr.mxu0 0.0
    %3770 = vmatpush2.msra.mxu0 0.0
    %3771 = vmatprep.mubr.f32.mxu0 0.0
    %3772 = vmatmul.mubr.f32.gmra.mxu0 %v3702
    %v3773 = vpop.f32.mrf.mxu0
    %v3774 = vadd.f32 %v3699, %v3773
    %v3775 = vpop.f32.mrf.mxu0
    %3776 = vmatprep.mubr.f32.mxu0 0.0
    %3777 = vmatmul.mubr.f32.gmra.mxu0 %v3705
    %v3778 = vpop.f32.mrf.mxu0
    %v3779 = vadd.f32 %v3699, %v3778
    %v3780 = vpop.f32.mrf.mxu0
    %3781 = vdwg.mxu0
    %v3782 = vadd.f32 %v3774, %v3570
    %v3783 = vadd.f32 %v3779, %v3571
    %s3784 = scalar_lea.vmem %s15, 1
    %v3785 = vld [vmem:[%s3784] sm:$0x1]
    %s3786 = scalar_lea.vmem %s16, 1
    %v3787 = vld [vmem:[%s3786] sm:$0x1]
    %v3788 = vsel %vm67, %v3782, 0.0
    %3789 = vadd.xlane.f32.xlu0 %v3788
    %v3790 = vpop.xlane.xlu0 %3789
    %v3791 = vsel %vm67, %v3783, 0.0
    %3792 = vadd.xlane.f32.xlu0 %v3791
    %v3793 = vpop.xlane.xlu0 %3792
    %v3794 = vmul.f32 %v3790, %v74
    %v3795 = vmul.f32 %v3793, %v74
    %v3796 = vsub.f32 %v3782, %v3794
    %v3797 = vsub.f32 %v3783, %v3795
    %v3798 = vmul.f32 %v3796, %v3796
    %v3799 = vmul.f32 %v3797, %v3797
    %v3800 = vsel %vm67, %v3798, 0.0
    %3801 = vadd.xlane.f32.xlu0 %v3800
    %v3802 = vpop.xlane.xlu0 %3801
    %v3803 = vsel %vm67, %v3799, 0.0
    %3804 = vadd.xlane.f32.xlu0 %v3803
    %v3805 = vpop.xlane.xlu0 %3804
    %v3806 = vmul.f32 %v3802, %v74
    %v3807 = vmul.f32 %v3805, %v74
    %v3808 = vadd.f32 %v3806, 1e-12
    %v3809 = vadd.f32 %v3807, 1e-12
    %v3810 = vrsqrt.pop %v3808
    %v3811 = vrsqrt.pop %v3809
    %v3812 = vmul.f32 %v3796, %v3810
    %v3813 = vmul.f32 %v3797, %v3811
    %v3815 = vlaneseq
    %v3816 = vshrl.u32 %v3815, 7
    %v3817 = vsub.s32 0, %v3816
    %v3818 = vrot.slane %v3785, %v3817
    %v3820 = vmul.f32 %v3812, %v3818
    %v3821 = vmul.f32 %v3813, %v3818
    %v3823 = vlaneseq
    %v3824 = vshrl.u32 %v3823, 7
    %v3825 = vsub.s32 0, %v3824
    %v3826 = vrot.slane %v3787, %v3825
    %v3828 = vadd.f32 %v3820, %v3826
    %v3829 = vadd.f32 %v3821, %v3826
    %v3830 = vld [vmem:[%s17] sm:$0xff]
    %v3831 = vld [vmem:[%s17 + $0x8] sm:$0xff]
    %v3832 = vld [vmem:[%s17 + $0x10] sm:$0xff]
    %v3833 = vld [vmem:[%s17 + $0x18] sm:$0xff]
    %v3834 = vld [vmem:[%s18] sm:$0x1]
    %v3836 = vlaneseq
    %v3837 = vshrl.u32 %v3836, 7
    %v3838 = vsub.s32 0, %v3837
    %v3839 = vrot.slane %v3834, %v3838
    %v3842 = vsel %vm67, %v3828, 0
    %v3845 = vsel %vm67, %v3829, 0
    %3847 = vmatprep.subr.mxu0 0.0
    %3848 = vmatpush1.msra.mxu0 0.0
    %3849 = vmatprep.subr.mxu0 0.0
    %3850 = vmatpush1.msra.mxu0 0.0
    %3851 = vmatprep.subr.mxu0 0.0
    %3852 = vmatpush1.msra.mxu0 0.0
    %3853 = vmatprep.subr.mxu0 0.0
    %3854 = vmatpush1.msra.mxu0 0.0
    %3855 = vmatprep.subr.mxu0 0.0
    %3856 = vmatpush1.msra.mxu0 0.0
    %3857 = vmatprep.subr.mxu0 0.0
    %3858 = vmatpush1.msra.mxu0 0.0
    %3859 = vmatprep.subr.mxu0 0.0
    %3860 = vmatpush1.msra.mxu0 0.0
    %3861 = vmatprep.subr.mxu0 0.0
    %3862 = vmatpush1.msra.mxu0 0.0
    %3863 = vmatprep.subr.mxu0 0.0
    %3864 = vmatpush1.msra.mxu0 0.0
    %3865 = vmatprep.subr.mxu0 0.0
    %3866 = vmatpush1.msra.mxu0 0.0
    %3867 = vmatprep.subr.mxu0 0.0
    %3868 = vmatpush1.msra.mxu0 0.0
    %3869 = vmatprep.subr.mxu0 0.0
    %3870 = vmatpush1.msra.mxu0 0.0
    %3871 = vmatprep.subr.mxu0 0.0
    %3872 = vmatpush1.msra.mxu0 %v3833
    %3873 = vmatprep.subr.mxu0 0.0
    %3874 = vmatpush1.msra.mxu0 %v3832
    %3875 = vmatprep.subr.mxu0 0.0
    %3876 = vmatpush1.msra.mxu0 %v3831
    %3877 = vmatprep.subr.mxu0 0.0
    %3878 = vmatpush1.msra.mxu0 %v3830
    %3879 = vmatprep.subr.mxu0 0.0
    %3880 = vmatpush2.msra.mxu0 0.0
    %3881 = vmatprep.subr.mxu0 0.0
    %3882 = vmatpush2.msra.mxu0 0.0
    %3883 = vmatprep.subr.mxu0 0.0
    %3884 = vmatpush2.msra.mxu0 0.0
    %3885 = vmatprep.subr.mxu0 0.0
    %3886 = vmatpush2.msra.mxu0 0.0
    %3887 = vmatprep.subr.mxu0 0.0
    %3888 = vmatpush2.msra.mxu0 0.0
    %3889 = vmatprep.subr.mxu0 0.0
    %3890 = vmatpush2.msra.mxu0 0.0
    %3891 = vmatprep.subr.mxu0 0.0
    %3892 = vmatpush2.msra.mxu0 0.0
    %3893 = vmatprep.subr.mxu0 0.0
    %3894 = vmatpush2.msra.mxu0 0.0
    %3895 = vmatprep.subr.mxu0 0.0
    %3896 = vmatpush2.msra.mxu0 0.0
    %3897 = vmatprep.subr.mxu0 0.0
    %3898 = vmatpush2.msra.mxu0 0.0
    %3899 = vmatprep.subr.mxu0 0.0
    %3900 = vmatpush2.msra.mxu0 0.0
    %3901 = vmatprep.subr.mxu0 0.0
    %3902 = vmatpush2.msra.mxu0 0.0
    %3903 = vmatprep.subr.mxu0 0.0
    %3904 = vmatpush2.msra.mxu0 0.0
    %3905 = vmatprep.subr.mxu0 0.0
    %3906 = vmatpush2.msra.mxu0 0.0
    %3907 = vmatprep.subr.mxu0 0.0
    %3908 = vmatpush2.msra.mxu0 0.0
    %3909 = vmatprep.subr.mxu0 0.0
    %3910 = vmatpush2.msra.mxu0 0.0
    %3911 = vmatprep.mubr.f32.mxu0 0.0
    %3912 = vmatmul.mubr.f32.gmra.mxu0 %v3842
    %v3913 = vpop.f32.mrf.mxu0
    %v3914 = vadd.f32 %v3839, %v3913
    %v3915 = vpop.f32.mrf.mxu0
    %3916 = vmatprep.mubr.f32.mxu0 0.0
    %3917 = vmatmul.mubr.f32.gmra.mxu0 %v3845
    %v3918 = vpop.f32.mrf.mxu0
    %v3919 = vadd.f32 %v3839, %v3918
    %v3920 = vpop.f32.mrf.mxu0
    %3921 = vdwg.mxu0
    %v3922 = vld [vmem:[%s2] sm:$0xff]
    %v3923 = vld [vmem:[%s2 + $0x8] sm:$0xff]
    %v3924 = vsel %vm1840, %v3914, -inf
    %3925 = vmax.xlane.f32.xlu0 %v3924
    %v3926 = vpop.xlane.xlu0 %3925
    %v3927 = vsel %vm1840, %v3919, -inf
    %3928 = vmax.xlane.f32.xlu0 %v3927
    %v3929 = vpop.xlane.xlu0 %3928
    %v3930 = vsub.f32 %v3914, %v3926
    %v3931 = vsub.f32 %v3919, %v3929
    %v3932 = vmul.f32 %v3930, 1.442695
    %v3933 = vpow.pop %v3932
    %v3934 = vmul.f32 %v3931, 1.442695
    %v3935 = vpow.pop %v3934
    %v3936 = vsel %vm1840, %v3933, 0.0
    %3937 = vadd.xlane.f32.xlu0 %v3936
    %v3938 = vpop.xlane.xlu0 %3937
    %v3939 = vsel %vm1840, %v3935, 0.0
    %3940 = vadd.xlane.f32.xlu0 %v3939
    %v3941 = vpop.xlane.xlu0 %3940
    %v3942 = vlog2.pop %v3938
    %v3943 = vmul.f32 %v3942, 0.6931472
    %v3944 = vlog2.pop %v3941
    %v3945 = vmul.f32 %v3944, 0.6931472
    %v3946 = vadd.f32 %v3943, %v3926
    %v3947 = vadd.f32 %v3945, %v3929
    %v3948 = vlaneseq
    %v3949 = vand.u32 %v3948, 127
    %3950 = vset.pattern.permute.xlu0 0
    %3951 = vperm.xlu0 %3950, %v3922
    %v3952 = vpop.permute.xlu0 %3951
    %3953 = vset.pattern.permute.xlu0 0
    %3954 = vperm.xlu0 %3953, %v3923
    %v3955 = vpop.permute.xlu0 %3954
    %vm3956 = vcmp.eq.s32.totalorder %v3949, %v3952
    %vm3957 = vcmp.eq.s32.totalorder %v3949, %v3955
    %v3958 = vsel %vm3956, 1, 0
    %v3959 = vsel %vm3957, 1, 0
    %v3960 = vcvt.s32.f32 %v3958
    %v3961 = vcvt.s32.f32 %v3959
    %v3962 = vmul.f32 %v3914, %v3960
    %v3963 = vmul.f32 %v3919, %v3961
    %v3964 = vsel %vm1840, %v3962, 0.0
    %3965 = vadd.xlane.f32.xlu0 %v3964
    %v3966 = vpop.xlane.xlu0 %3965
    %v3967 = vsel %vm1840, %v3963, 0.0
    %3968 = vadd.xlane.f32.xlu0 %v3967
    %v3969 = vpop.xlane.xlu0 %3968
    %v3970 = vsub.f32 %v3966, %v3946
    %v3971 = vsub.f32 %v3969, %v3947
    %vm3972 = vcmp.ne.s32.totalorder %v3922, 4294967295
    %vm3973 = vcmp.ne.s32.totalorder %v3923, 4294967295
    %v3974 = vsel %vm3972, 1, 0
    %v3975 = vsel %vm3973, 1, 0
    %v3976 = vcvt.s32.f32 %v3974
    %v3977 = vcvt.s32.f32 %v3975
    %v3978 = vsub.f32 0.0, %v3970
    %v3979 = vsub.f32 0.0, %v3971
    %v3980 = vmul.f32 %v3978, %v3976
    %v3981 = vmul.f32 %v3979, %v3977
    %vm3982 = vcmask 7168
    %v3983 = vsel %vm3982, %v3980, 0.0
    %v3984 = vsel %vm3982, %v3981, 0.0
    %v3985 = vadd.f32 %v3983, %v3984
    %3986 = vadd.xlane.f32.xlu0 %v3985
    %v3987 = vpop.xlane.xlu0 %3986
    %v3988 = vrot.slane %v3987, 4
    %v3989 = vadd.f32 %v3987, %v3988
    %v3990 = vrot.slane %v3989, 2
    %v3991 = vadd.f32 %v3989, %v3990
    %v3992 = vrot.slane %v3991, 1
    %v3993 = vadd.f32 %v3991, %v3992
    %s3994 = vtos %v3993
    %v3995 = vsel %vm3982, %v3976, 0.0
    %v3996 = vsel %vm3982, %v3977, 0.0
    %v3997 = vadd.f32 %v3995, %v3996
    %3998 = vadd.xlane.f32.xlu0 %v3997
    %v3999 = vpop.xlane.xlu0 %3998
    %v4000 = vrot.slane %v3999, 4
    %v4001 = vadd.f32 %v3999, %v4000
    %v4002 = vrot.slane %v4001, 2
    %v4003 = vadd.f32 %v4001, %v4002
    %v4004 = vrot.slane %v4003, 1
    %v4005 = vadd.f32 %v4003, %v4004
    %s4006 = vtos %v4005
    %v4007 = vstv %s4006
    %v4008 = vrcp.pop %v4007
    %s4009 = vtos %v4008
    %s4010 = smul.f32 %s3994, %s4009
    %v4011 = vstv %s4010
    %vm4012 = vcmask 0
    %4013 = vst.msk [vmem:[#allocation3] sm:$0x1] %vm4012, %v4011
    // Predicated region
    $region78: #{train_step.1} parent=1 // pred_check
      _
    $region79: #{train_step.1} parent=1 // pred_check_branch
      %4015 = sbr.rel (0) target = $region81
    $region80: #{train_step.1} parent=1 // pred_region
      %s4017 = ssub.s32 16, 16
      %4018 = vsyncadd [#allocation4], %s4017
      %s4020 = sshll.u32 [#allocation3], 4
      %s4021 = int_to_ptr.vmem [resolvable:$true] %s4020
      %4023 = dma.vmem_to_hbm [thread:$0]  %s4021, 16, %s19, [#allocation4]
    $region81: #{train_step.1} parent=1 // pred_fallthru
      _
    // Predicated region
    $region82: #{train_step.1} parent=1 // pred_check
      _
    $region83: #{train_step.1} parent=1 // pred_check_branch
      %4025 = sbr.rel (0) target = $region85
    $region84: #{train_step.1} parent=1 // pred_region
      %4026 = dma.done [#allocation4], 16
    $region85: #{train_step.1} parent=1 // pred_fallthru
      _
    %4027 = vsyncpa [#allocation4], 1

</llo_original>
